<compile_context>
chip_gen: v7x
topology: tpu7x:2x2x1
jax: 0.10.0
libtpu: 0.0.40
codegen_flags: <defaults>
</compile_context>

<pallas_src>
import functools
import numpy as np
import jax
import jax.numpy as jnp
from jax.experimental import pallas as pl
from jax.experimental.pallas import tpu as pltpu


def fdffn_kernel(x_ref, w1_ref, b1_ref, fr_ref, fi_ref,
                 rd_ref, id_ref, rb_ref, ib_ref,
                 w2_ref, b2_ref, o_ref, h_s, *, tb, d):
    """One grid step processes TB batch elements (channels-first layout).

    x_ref : (TB, C, N) bf16            o_ref : (TB, C, N)
    w1_ref: (D, C) bf16 (BN1 scale folded)     b1_ref: (D, 1) f32
    fr_ref/fi_ref: (N, N) DFT matrices  Fr = cos(2*pi*k*n/N)/sqrt(N),
                   Fi = -sin(2*pi*k*n/N)/sqrt(N).  Both symmetric, so they
                   serve the forward AND the inverse transform (no finv).
    rd/id/rb/ib_ref: (TB*D, 1) f32 per-channel freq params (row r = t*D + d)
    w2_ref: (C, D) bf16 (BN2 scale folded)     b2_ref: (C, 1) f32
    h_s   : VMEM scratch (TB*D, N) bf16 — fc1 outputs stacked over the batch.
    """
    # ---- fc1: 1x1 conv (BN scale pre-folded) + shift + ReLU, per batch elem ----
    # tb is kept small by the wrapper heuristic, so a static unroll is cheap.
    for t in range(tb):
        ht = jnp.dot(w1_ref[...], x_ref[t],
                     preferred_element_type=jnp.float32)          # (D, N) f32
        ht = jnp.maximum(ht + b1_ref[...], 0.0)
        h_s[t * d:(t + 1) * d, :] = ht.astype(h_s.dtype)

    # ---- forward DFT (ortho): Xr = H @ Fr, Xi = H @ Fi ----
    h = h_s[...]
    fr = fr_ref[...]
    fi = fi_ref[...]
    xr = jnp.dot(h, fr, preferred_element_type=jnp.float32)       # (R, N) f32
    xi = jnp.dot(h, fi, preferred_element_type=jnp.float32)       # (R, N) f32

    # ---- complex per-channel (diagonal) scaling + bias + ReLU ----
    rd = rd_ref[...]
    idg = id_ref[...]
    xr2 = jnp.maximum(xr * rd - xi * idg + rb_ref[...], 0.0).astype(fr.dtype)
    xi2 = jnp.maximum(xi * rd + xr * idg + ib_ref[...], 0.0).astype(fr.dtype)

    # ---- inverse DFT real part (Fr, Fi symmetric): y = Xr' @ Fr + Xi' @ Fi ----
    y = (jnp.dot(xr2, fr, preferred_element_type=jnp.float32)
         + jnp.dot(xi2, fi, preferred_element_type=jnp.float32))  # (R, N) f32
    yb = y.astype(jnp.bfloat16)

    # ---- fc2: 1x1 conv (BN scale pre-folded) + shift, per batch elem ----
    for t in range(tb):
        ot = jnp.dot(w2_ref[...], yb[t * d:(t + 1) * d, :],
                     preferred_element_type=jnp.float32)          # (C, N) f32
        o_ref[t] = (ot + b2_ref[...]).astype(o_ref.dtype)


def _tpu_budgets():
    """(vmem_limit_bytes, parallel_core_count) for the current TPU generation."""
    vmem = 128 * 1024 * 1024
    cores = 1
    try:
        vmem = int(pltpu.get_tpu_info().vmem_capacity_bytes)
    except Exception:
        pass
    kind = ""
    try:
        kind = jax.devices()[0].device_kind.lower()
    except Exception:
        pass
    if "v7" in kind:                       # 2 TensorCores, 64 MiB VMEM per TC
        cores = 2
        vmem = min(vmem, 64 * 1024 * 1024)
    # Leave headroom for compiler-internal scratch / spill.
    limit = min(vmem * 3 // 4, 112 * 1024 * 1024)
    return limit, cores


def _choose_block_b(B, N, D, *, cores, vmem_limit):
    """Batch several examples per grid step (wider DFT matmuls), bounded so the
    (R, N) f32 frequency-stage intermediates fit comfortably in VMEM.  The
    '>= cores grid steps' constraint is only enforced on multi-TC chips."""
    rows_cap = max(1, 512 // max(D, 1))                      # R = tb*D <= ~512
    vmem_cap = max(1, (vmem_limit // 3) // max(24 * N * D, 1))
    tb = max(1, min(B, rows_cap, vmem_cap, 16))
    while B % tb:
        tb -= 1
    if cores >= 2:
        while tb > 1 and B // tb < cores:
            tb -= 1
            while B % tb:
                tb -= 1
    return tb


def frequencydomain_ffn(x_bcn, params, *, block_b=None,
                        dft_dtype=jnp.bfloat16, out_dtype=jnp.float32):
    """x_bcn: (B, C, N) float32 — the PyTorch module's input layout."""
    B, C, N = x_bcn.shape
    D = params["w1"].shape[0]
    vmem_limit, cores = _tpu_budgets()
    tb = (_choose_block_b(B, N, D, cores=cores, vmem_limit=vmem_limit)
          if block_b is None else block_b)
    assert B % tb == 0
    R = tb * D

    # Ortho DFT matrices (symmetric): used for forward and inverse transforms.
    k = np.arange(N)
    ang = 2.0 * np.pi * np.outer(k, k) / N
    fr = jnp.asarray(np.cos(ang) / np.sqrt(N), dft_dtype)   # (N, N)
    fi = jnp.asarray(-np.sin(ang) / np.sqrt(N), dft_dtype)  # (N, N)

    # Fold eval-mode BN scales into the conv weights (one-time wrapper cost).
    w1s = (params["bn1_scale"][:, None] * params["w1"]).astype(jnp.bfloat16)  # (D, C)
    w2s = (params["bn2_scale"][:, None] * params["w2"]).astype(jnp.bfloat16)  # (C, D)
    b1 = params["bn1_shift"].reshape(D, 1).astype(jnp.float32)
    b2 = params["bn2_shift"].reshape(C, 1).astype(jnp.float32)

    # Per-channel frequency-domain params, tiled over TB (row r = t*D + d).
    col = lambda v: jnp.tile(v.astype(jnp.float32), tb).reshape(R, 1)
    rd_c = col(params["r_diag"])
    id_c = col(params["i_diag"])
    rb_c = col(params["rb"])
    ib_c = col(params["ib"])

    xb = x_bcn.astype(jnp.bfloat16)   # halves HBM->VMEM DMA bytes
    args = (xb, w1s, b1, fr, fi, rd_c, id_c, rb_c, ib_c, w2s, b2)
    kernel = functools.partial(fdffn_kernel, tb=tb, d=D)

    itemsize = jnp.dtype(dft_dtype).itemsize
    cost = pl.CostEstimate(
        flops=8 * B * D * N * N + 4 * B * C * D * N,
        transcendentals=0,
        bytes_accessed=(B * C * N * 2 + B * C * N * jnp.dtype(out_dtype).itemsize
                        + 2 * N * N * itemsize + 4 * C * D + 4 * (D + C + 4 * R)))

    def build(single_buffer):
        def const(arr):
            idx = lambda g, _nd=arr.ndim: (0,) * _nd
            if single_buffer and hasattr(pl, "Buffered"):
                # Grid-invariant inputs: 1-deep buffering halves their VMEM.
                return pl.BlockSpec(arr.shape, idx, pipeline_mode=pl.Buffered(1))
            return pl.BlockSpec(arr.shape, idx)

        return pl.pallas_call(
            kernel,
            out_shape=jax.ShapeDtypeStruct((B, C, N), out_dtype),
            grid=(B // tb,),
            in_specs=[pl.BlockSpec((tb, C, N), lambda g: (g, 0, 0))]
                     + [const(a) for a in args[1:]],
            out_specs=pl.BlockSpec((tb, C, N), lambda g: (g, 0, 0)),
            scratch_shapes=[pltpu.VMEM((R, N), jnp.bfloat16)],
            compiler_params=pltpu.CompilerParams(
                dimension_semantics=("parallel",),
                vmem_limit_bytes=vmem_limit),
            cost_estimate=cost,
        )

    try:
        return build(True)(*args)
    except Exception:
        # Fallback for jax versions without BlockSpec pipeline_mode / Buffered(1).
        return build(False)(*args)


def reference(x_bcn, params):
    """Pure-JAX f32 reference mirroring the PyTorch forward (eval-mode BN)."""
    w1 = params["w1"]; w2 = params["w2"]
    h = jnp.einsum("dc,bcn->bdn", w1, x_bcn)
    h = h * params["bn1_scale"][None, :, None] + params["bn1_shift"][None, :, None]
    h = jax.nn.relu(h)
    h = jnp.transpose(h, (0, 2, 1))                                       # (B, N, D)
    xf = jnp.fft.fft(h, axis=1, norm="ortho")
    x_real = jax.nn.relu(xf.real * params["r_diag"] - xf.imag * params["i_diag"] + params["rb"])
    x_imag = jax.nn.relu(xf.imag * params["r_diag"] + xf.real * params["i_diag"] + params["ib"])
    y = jnp.fft.ifft(x_real + 1j * x_imag, axis=1, norm="ortho").real     # (B, N, D)
    out = jnp.einsum("cd,bnd->bcn", w2, y)
    out = out * params["bn2_scale"][None, :, None] + params["bn2_shift"][None, :, None]
    return out


def make_params(key, dim, mlp_ratio):
    D = dim * mlp_ratio
    scale = 0.02
    ks = jax.random.split(key, 6)
    r = scale * jax.random.normal(ks[0], (D, D), jnp.float32)
    i = scale * jax.random.normal(ks[1], (D, D), jnp.float32)
    rb = scale * jax.random.normal(ks[2], (D,), jnp.float32)
    ib = scale * jax.random.normal(ks[3], (D,), jnp.float32)
    w1 = 0.1 * jax.random.normal(ks[4], (D, dim), jnp.float32)   # Conv1d(dim->D, k=1), no bias
    w2 = 0.1 * jax.random.normal(ks[5], (dim, D), jnp.float32)   # Conv1d(D->dim, k=1), no bias
    eps = 1e-5
    # PyTorch BN init: gamma=1, beta=0, running_mean=0, running_var=1 (eval mode)
    bn1_scale = jnp.full((D,), 1.0 / np.sqrt(1.0 + eps), jnp.float32)
    bn1_shift = jnp.zeros((D,), jnp.float32)
    bn2_scale = jnp.full((dim,), 1.0 / np.sqrt(1.0 + eps), jnp.float32)
    bn2_shift = jnp.zeros((dim,), jnp.float32)
    return {
        "w1": w1, "w2": w2,
        "bn1_scale": bn1_scale, "bn1_shift": bn1_shift,
        "bn2_scale": bn2_scale, "bn2_shift": bn2_shift,
        # torch.einsum('bnc,cc->bnc', X, W) only uses the diagonal of W
        "r_diag": jnp.diagonal(r), "i_diag": jnp.diagonal(i),
        "rb": rb, "ib": ib,
    }


if __name__ == "__main__":
    dim, mlp_ratio = 4, 4       # D = 16
    B, N = 4, 16

    key = jax.random.PRNGKey(0)
    kx, kp = jax.random.split(key)
    x = jax.random.normal(kx, (B, dim, N), jnp.float32)     # PyTorch layout (B, C, N)
    params = make_params(kp, dim, mlp_ratio)

    out = jax.block_until_ready(frequencydomain_ffn(x, params))
    ref = jax.block_until_ready(reference(x, params))

    # Tolerance relaxed vs. a pure-f32 kernel because matmul operands
    # (including the DFT matrices) are bf16 with f32 accumulation.
    np.testing.assert_allclose(np.asarray(out), np.asarray(ref), rtol=2e-2, atol=3e-3)

    print("KERNEL_OK")
</pallas_src>

<mosaic_0001>
module attributes {stable_mosaic.version = 11 : i64} {
  func.func @fdffn_kernel(%arg0: i32, %arg1: memref<4x4x16xbf16, #tpu.memory_space<vmem>>, %arg2: memref<16x4xbf16, #tpu.memory_space<vmem>>, %arg3: memref<16x1xf32, #tpu.memory_space<vmem>>, %arg4: memref<16x16xbf16, #tpu.memory_space<vmem>>, %arg5: memref<16x16xbf16, #tpu.memory_space<vmem>>, %arg6: memref<64x1xf32, #tpu.memory_space<vmem>>, %arg7: memref<64x1xf32, #tpu.memory_space<vmem>>, %arg8: memref<64x1xf32, #tpu.memory_space<vmem>>, %arg9: memref<64x1xf32, #tpu.memory_space<vmem>>, %arg10: memref<4x16xbf16, #tpu.memory_space<vmem>>, %arg11: memref<4x1xf32, #tpu.memory_space<vmem>>, %arg12: memref<4x4x16xf32, #tpu.memory_space<vmem>>, %arg13: memref<64x16xbf16, #tpu.memory_space<vmem>>) attributes {dimension_semantics = [#tpu.dimension_semantics<parallel>], iteration_bounds = array<i64: 1>, scalar_prefetch = 0 : i64, scratch_operands = 1 : i64, tpu.core_type = #tpu.core_type<tc>, window_params = [{transform_indices = @transform_0, window_bounds = array<i64: 4, 4, 16>}, {pipeline_mode = #tpu.pipeline_mode<synchronous>, transform_indices = @transform_1, window_bounds = array<i64: 16, 4>}, {pipeline_mode = #tpu.pipeline_mode<synchronous>, transform_indices = @transform_2, window_bounds = array<i64: 16, 1>}, {pipeline_mode = #tpu.pipeline_mode<synchronous>, transform_indices = @transform_3, window_bounds = array<i64: 16, 16>}, {pipeline_mode = #tpu.pipeline_mode<synchronous>, transform_indices = @transform_4, window_bounds = array<i64: 16, 16>}, {pipeline_mode = #tpu.pipeline_mode<synchronous>, transform_indices = @transform_5, window_bounds = array<i64: 64, 1>}, {pipeline_mode = #tpu.pipeline_mode<synchronous>, transform_indices = @transform_6, window_bounds = array<i64: 64, 1>}, {pipeline_mode = #tpu.pipeline_mode<synchronous>, transform_indices = @transform_7, window_bounds = array<i64: 64, 1>}, {pipeline_mode = #tpu.pipeline_mode<synchronous>, transform_indices = @transform_8, window_bounds = array<i64: 64, 1>}, {pipeline_mode = #tpu.pipeline_mode<synchronous>, transform_indices = @transform_9, window_bounds = array<i64: 4, 16>}, {pipeline_mode = #tpu.pipeline_mode<synchronous>, transform_indices = @transform_10, window_bounds = array<i64: 4, 1>}, {transform_indices = @transform_11, window_bounds = array<i64: 4, 4, 16>}]} {
    %c0 = arith.constant 0 : index
    %c0_0 = arith.constant 0 : index
    %0 = vector.load %arg2[%c0, %c0_0] : memref<16x4xbf16, #tpu.memory_space<vmem>>, vector<16x4xbf16>
    %c0_1 = arith.constant 0 : index
    %c0_2 = arith.constant 0 : index
    %c0_3 = arith.constant 0 : index
    %1 = vector.load %arg1[%c0_1, %c0_2, %c0_3] : memref<4x4x16xbf16, #tpu.memory_space<vmem>>, vector<1x4x16xbf16>
    %2 = vector.shape_cast %1 : vector<1x4x16xbf16> to vector<4x16xbf16>
    %cst = arith.constant dense<0.000000e+00> : vector<16x16xf32>
    %3 = tpu.matmul %0, %2, %cst {dimension_numbers = #tpu.dot_dimension_numbers<[1], [0], [0], [1], [0, 0, 1, 1], [], []>} : vector<16x4xbf16>, vector<4x16xbf16>, vector<16x16xf32> -> vector<16x16xf32>
    %c0_4 = arith.constant 0 : index
    %c0_5 = arith.constant 0 : index
    %4 = vector.load %arg3[%c0_4, %c0_5] : memref<16x1xf32, #tpu.memory_space<vmem>>, vector<16x1xf32>
    %5 = vector.broadcast %4 : vector<16x1xf32> to vector<16x16xf32>
    %6 = arith.addf %3, %5 : vector<16x16xf32>
    %cst_6 = arith.constant 0.000000e+00 : f32
    %7 = vector.broadcast %cst_6 : f32 to vector<16x16xf32>
    %8 = arith.maximumf %6, %7 : vector<16x16xf32>
    %9 = arith.truncf %8 : vector<16x16xf32> to vector<16x16xbf16>
    %c0_7 = arith.constant 0 : index
    %c0_8 = arith.constant 0 : index
    %10 = vector.load %arg13[%c0_7, %c0_8] : memref<64x16xbf16, #tpu.memory_space<vmem>>, vector<16x16xbf16>
    tpu.vector_store %arg13[%c0_7, %c0_8], %9 {strides = array<i32>} : memref<64x16xbf16, #tpu.memory_space<vmem>>, vector<16x16xbf16>,
    %c0_9 = arith.constant 0 : index
    %c0_10 = arith.constant 0 : index
    %11 = vector.load %arg2[%c0_9, %c0_10] : memref<16x4xbf16, #tpu.memory_space<vmem>>, vector<16x4xbf16>
    %c1 = arith.constant 1 : index
    %c0_11 = arith.constant 0 : index
    %c0_12 = arith.constant 0 : index
    %12 = vector.load %arg1[%c1, %c0_11, %c0_12] : memref<4x4x16xbf16, #tpu.memory_space<vmem>>, vector<1x4x16xbf16>
    %13 = vector.shape_cast %12 : vector<1x4x16xbf16> to vector<4x16xbf16>
    %cst_13 = arith.constant dense<0.000000e+00> : vector<16x16xf32>
    %14 = tpu.matmul %11, %13, %cst_13 {dimension_numbers = #tpu.dot_dimension_numbers<[1], [0], [0], [1], [0, 0, 1, 1], [], []>} : vector<16x4xbf16>, vector<4x16xbf16>, vector<16x16xf32> -> vector<16x16xf32>
    %c0_14 = arith.constant 0 : index
    %c0_15 = arith.constant 0 : index
    %15 = vector.load %arg3[%c0_14, %c0_15] : memref<16x1xf32, #tpu.memory_space<vmem>>, vector<16x1xf32>
    %16 = vector.broadcast %15 : vector<16x1xf32> to vector<16x16xf32>
    %17 = arith.addf %14, %16 : vector<16x16xf32>
    %cst_16 = arith.constant 0.000000e+00 : f32
    %18 = vector.broadcast %cst_16 : f32 to vector<16x16xf32>
    %19 = arith.maximumf %17, %18 : vector<16x16xf32>
    %20 = arith.truncf %19 : vector<16x16xf32> to vector<16x16xbf16>
    %c16 = arith.constant 16 : index
    %c0_17 = arith.constant 0 : index
    %21 = vector.load %arg13[%c16, %c0_17] : memref<64x16xbf16, #tpu.memory_space<vmem>>, vector<16x16xbf16>
    tpu.vector_store %arg13[%c16, %c0_17], %20 {strides = array<i32>} : memref<64x16xbf16, #tpu.memory_space<vmem>>, vector<16x16xbf16>,
    %c0_18 = arith.constant 0 : index
    %c0_19 = arith.constant 0 : index
    %22 = vector.load %arg2[%c0_18, %c0_19] : memref<16x4xbf16, #tpu.memory_space<vmem>>, vector<16x4xbf16>
    %c2 = arith.constant 2 : index
    %c0_20 = arith.constant 0 : index
    %c0_21 = arith.constant 0 : index
    %23 = vector.load %arg1[%c2, %c0_20, %c0_21] : memref<4x4x16xbf16, #tpu.memory_space<vmem>>, vector<1x4x16xbf16>
    %24 = vector.shape_cast %23 : vector<1x4x16xbf16> to vector<4x16xbf16>
    %cst_22 = arith.constant dense<0.000000e+00> : vector<16x16xf32>
    %25 = tpu.matmul %22, %24, %cst_22 {dimension_numbers = #tpu.dot_dimension_numbers<[1], [0], [0], [1], [0, 0, 1, 1], [], []>} : vector<16x4xbf16>, vector<4x16xbf16>, vector<16x16xf32> -> vector<16x16xf32>
    %c0_23 = arith.constant 0 : index
    %c0_24 = arith.constant 0 : index
    %26 = vector.load %arg3[%c0_23, %c0_24] : memref<16x1xf32, #tpu.memory_space<vmem>>, vector<16x1xf32>
    %27 = vector.broadcast %26 : vector<16x1xf32> to vector<16x16xf32>
    %28 = arith.addf %25, %27 : vector<16x16xf32>
    %cst_25 = arith.constant 0.000000e+00 : f32
    %29 = vector.broadcast %cst_25 : f32 to vector<16x16xf32>
    %30 = arith.maximumf %28, %29 : vector<16x16xf32>
    %31 = arith.truncf %30 : vector<16x16xf32> to vector<16x16xbf16>
    %c32 = arith.constant 32 : index
    %c0_26 = arith.constant 0 : index
    %32 = vector.load %arg13[%c32, %c0_26] : memref<64x16xbf16, #tpu.memory_space<vmem>>, vector<16x16xbf16>
    tpu.vector_store %arg13[%c32, %c0_26], %31 {strides = array<i32>} : memref<64x16xbf16, #tpu.memory_space<vmem>>, vector<16x16xbf16>,
    %c0_27 = arith.constant 0 : index
    %c0_28 = arith.constant 0 : index
    %33 = vector.load %arg2[%c0_27, %c0_28] : memref<16x4xbf16, #tpu.memory_space<vmem>>, vector<16x4xbf16>
    %c3 = arith.constant 3 : index
    %c0_29 = arith.constant 0 : index
    %c0_30 = arith.constant 0 : index
    %34 = vector.load %arg1[%c3, %c0_29, %c0_30] : memref<4x4x16xbf16, #tpu.memory_space<vmem>>, vector<1x4x16xbf16>
    %35 = vector.shape_cast %34 : vector<1x4x16xbf16> to vector<4x16xbf16>
    %cst_31 = arith.constant dense<0.000000e+00> : vector<16x16xf32>
    %36 = tpu.matmul %33, %35, %cst_31 {dimension_numbers = #tpu.dot_dimension_numbers<[1], [0], [0], [1], [0, 0, 1, 1], [], []>} : vector<16x4xbf16>, vector<4x16xbf16>, vector<16x16xf32> -> vector<16x16xf32>
    %c0_32 = arith.constant 0 : index
    %c0_33 = arith.constant 0 : index
    %37 = vector.load %arg3[%c0_32, %c0_33] : memref<16x1xf32, #tpu.memory_space<vmem>>, vector<16x1xf32>
    %38 = vector.broadcast %37 : vector<16x1xf32> to vector<16x16xf32>
    %39 = arith.addf %36, %38 : vector<16x16xf32>
    %cst_34 = arith.constant 0.000000e+00 : f32
    %40 = vector.broadcast %cst_34 : f32 to vector<16x16xf32>
    %41 = arith.maximumf %39, %40 : vector<16x16xf32>
    %42 = arith.truncf %41 : vector<16x16xf32> to vector<16x16xbf16>
    %c48 = arith.constant 48 : index
    %c0_35 = arith.constant 0 : index
    %43 = vector.load %arg13[%c48, %c0_35] : memref<64x16xbf16, #tpu.memory_space<vmem>>, vector<16x16xbf16>
    tpu.vector_store %arg13[%c48, %c0_35], %42 {strides = array<i32>} : memref<64x16xbf16, #tpu.memory_space<vmem>>, vector<16x16xbf16>,
    %c0_36 = arith.constant 0 : index
    %c0_37 = arith.constant 0 : index
    %44 = vector.load %arg13[%c0_36, %c0_37] : memref<64x16xbf16, #tpu.memory_space<vmem>>, vector<64x16xbf16>
    %c0_38 = arith.constant 0 : index
    %c0_39 = arith.constant 0 : index
    %45 = vector.load %arg4[%c0_38, %c0_39] : memref<16x16xbf16, #tpu.memory_space<vmem>>, vector<16x16xbf16>
    %c0_40 = arith.constant 0 : index
    %c0_41 = arith.constant 0 : index
    %46 = vector.load %arg5[%c0_40, %c0_41] : memref<16x16xbf16, #tpu.memory_space<vmem>>, vector<16x16xbf16>
    %cst_42 = arith.constant dense<0.000000e+00> : vector<64x16xf32>
    %47 = tpu.matmul %44, %45, %cst_42 {dimension_numbers = #tpu.dot_dimension_numbers<[1], [0], [0], [1], [0, 0, 1, 1], [], []>} : vector<64x16xbf16>, vector<16x16xbf16>, vector<64x16xf32> -> vector<64x16xf32>
    %cst_43 = arith.constant dense<0.000000e+00> : vector<64x16xf32>
    %48 = tpu.matmul %44, %46, %cst_43 {dimension_numbers = #tpu.dot_dimension_numbers<[1], [0], [0], [1], [0, 0, 1, 1], [], []>} : vector<64x16xbf16>, vector<16x16xbf16>, vector<64x16xf32> -> vector<64x16xf32>
    %c0_44 = arith.constant 0 : index
    %c0_45 = arith.constant 0 : index
    %49 = vector.load %arg6[%c0_44, %c0_45] : memref<64x1xf32, #tpu.memory_space<vmem>>, vector<64x1xf32>
    %c0_46 = arith.constant 0 : index
    %c0_47 = arith.constant 0 : index
    %50 = vector.load %arg7[%c0_46, %c0_47] : memref<64x1xf32, #tpu.memory_space<vmem>>, vector<64x1xf32>
    %51 = vector.broadcast %49 : vector<64x1xf32> to vector<64x16xf32>
    %52 = arith.mulf %47, %51 : vector<64x16xf32>
    %53 = vector.broadcast %50 : vector<64x1xf32> to vector<64x16xf32>
    %54 = arith.mulf %48, %53 : vector<64x16xf32>
    %55 = arith.subf %52, %54 : vector<64x16xf32>
    %c0_48 = arith.constant 0 : index
    %c0_49 = arith.constant 0 : index
    %56 = vector.load %arg8[%c0_48, %c0_49] : memref<64x1xf32, #tpu.memory_space<vmem>>, vector<64x1xf32>
    %57 = vector.broadcast %56 : vector<64x1xf32> to vector<64x16xf32>
    %58 = arith.addf %55, %57 : vector<64x16xf32>
    %cst_50 = arith.constant 0.000000e+00 : f32
    %59 = vector.broadcast %cst_50 : f32 to vector<64x16xf32>
    %60 = arith.maximumf %58, %59 : vector<64x16xf32>
    %61 = arith.truncf %60 : vector<64x16xf32> to vector<64x16xbf16>
    %62 = vector.broadcast %49 : vector<64x1xf32> to vector<64x16xf32>
    %63 = arith.mulf %48, %62 : vector<64x16xf32>
    %64 = vector.broadcast %50 : vector<64x1xf32> to vector<64x16xf32>
    %65 = arith.mulf %47, %64 : vector<64x16xf32>
    %66 = arith.addf %63, %65 : vector<64x16xf32>
    %c0_51 = arith.constant 0 : index
    %c0_52 = arith.constant 0 : index
    %67 = vector.load %arg9[%c0_51, %c0_52] : memref<64x1xf32, #tpu.memory_space<vmem>>, vector<64x1xf32>
    %68 = vector.broadcast %67 : vector<64x1xf32> to vector<64x16xf32>
    %69 = arith.addf %66, %68 : vector<64x16xf32>
    %cst_53 = arith.constant 0.000000e+00 : f32
    %70 = vector.broadcast %cst_53 : f32 to vector<64x16xf32>
    %71 = arith.maximumf %69, %70 : vector<64x16xf32>
    %72 = arith.truncf %71 : vector<64x16xf32> to vector<64x16xbf16>
    %cst_54 = arith.constant dense<0.000000e+00> : vector<64x16xf32>
    %73 = tpu.matmul %61, %45, %cst_54 {dimension_numbers = #tpu.dot_dimension_numbers<[1], [0], [0], [1], [0, 0, 1, 1], [], []>} : vector<64x16xbf16>, vector<16x16xbf16>, vector<64x16xf32> -> vector<64x16xf32>
    %cst_55 = arith.constant dense<0.000000e+00> : vector<64x16xf32>
    %74 = tpu.matmul %72, %46, %cst_55 {dimension_numbers = #tpu.dot_dimension_numbers<[1], [0], [0], [1], [0, 0, 1, 1], [], []>} : vector<64x16xbf16>, vector<16x16xbf16>, vector<64x16xf32> -> vector<64x16xf32>
    %75 = arith.addf %73, %74 : vector<64x16xf32>
    %76 = arith.truncf %75 : vector<64x16xf32> to vector<64x16xbf16>
    %c0_56 = arith.constant 0 : index
    %c0_57 = arith.constant 0 : index
    %77 = vector.load %arg10[%c0_56, %c0_57] : memref<4x16xbf16, #tpu.memory_space<vmem>>, vector<4x16xbf16>
    %78 = vector.extract_strided_slice %76 {offsets = [0, 0], sizes = [16, 16], strides = [1, 1]} : vector<64x16xbf16> to vector<16x16xbf16>
    %cst_58 = arith.constant dense<0.000000e+00> : vector<4x16xf32>
    %79 = tpu.matmul %77, %78, %cst_58 {dimension_numbers = #tpu.dot_dimension_numbers<[1], [0], [0], [1], [0, 0, 1, 1], [], []>} : vector<4x16xbf16>, vector<16x16xbf16>, vector<4x16xf32> -> vector<4x16xf32>
    %c0_59 = arith.constant 0 : index
    %c0_60 = arith.constant 0 : index
    %80 = vector.load %arg11[%c0_59, %c0_60] : memref<4x1xf32, #tpu.memory_space<vmem>>, vector<4x1xf32>
    %81 = vector.broadcast %80 : vector<4x1xf32> to vector<4x16xf32>
    %82 = arith.addf %79, %81 : vector<4x16xf32>
    %c0_61 = arith.constant 0 : index
    %c0_62 = arith.constant 0 : index
    %c0_63 = arith.constant 0 : index
    %83 = vector.load %arg12[%c0_61, %c0_62, %c0_63] : memref<4x4x16xf32, #tpu.memory_space<vmem>>, vector<1x4x16xf32>
    %84 = vector.shape_cast %83 : vector<1x4x16xf32> to vector<4x16xf32>
    %85 = vector.shape_cast %82 : vector<4x16xf32> to vector<1x4x16xf32>
    tpu.vector_store %arg12[%c0_61, %c0_62, %c0_63], %85 {strides = array<i32>} : memref<4x4x16xf32, #tpu.memory_space<vmem>>, vector<1x4x16xf32>,
    %c0_64 = arith.constant 0 : index
    %c0_65 = arith.constant 0 : index
    %86 = vector.load %arg10[%c0_64, %c0_65] : memref<4x16xbf16, #tpu.memory_space<vmem>>, vector<4x16xbf16>
    %87 = vector.extract_strided_slice %76 {offsets = [16, 0], sizes = [16, 16], strides = [1, 1]} : vector<64x16xbf16> to vector<16x16xbf16>
    %cst_66 = arith.constant dense<0.000000e+00> : vector<4x16xf32>
    %88 = tpu.matmul %86, %87, %cst_66 {dimension_numbers = #tpu.dot_dimension_numbers<[1], [0], [0], [1], [0, 0, 1, 1], [], []>} : vector<4x16xbf16>, vector<16x16xbf16>, vector<4x16xf32> -> vector<4x16xf32>
    %c0_67 = arith.constant 0 : index
    %c0_68 = arith.constant 0 : index
    %89 = vector.load %arg11[%c0_67, %c0_68] : memref<4x1xf32, #tpu.memory_space<vmem>>, vector<4x1xf32>
    %90 = vector.broadcast %89 : vector<4x1xf32> to vector<4x16xf32>
    %91 = arith.addf %88, %90 : vector<4x16xf32>
    %c1_69 = arith.constant 1 : index
    %c0_70 = arith.constant 0 : index
    %c0_71 = arith.constant 0 : index
    %92 = vector.load %arg12[%c1_69, %c0_70, %c0_71] : memref<4x4x16xf32, #tpu.memory_space<vmem>>, vector<1x4x16xf32>
    %93 = vector.shape_cast %92 : vector<1x4x16xf32> to vector<4x16xf32>
    %94 = vector.shape_cast %91 : vector<4x16xf32> to vector<1x4x16xf32>
    tpu.vector_store %arg12[%c1_69, %c0_70, %c0_71], %94 {strides = array<i32>} : memref<4x4x16xf32, #tpu.memory_space<vmem>>, vector<1x4x16xf32>,
    %c0_72 = arith.constant 0 : index
    %c0_73 = arith.constant 0 : index
    %95 = vector.load %arg10[%c0_72, %c0_73] : memref<4x16xbf16, #tpu.memory_space<vmem>>, vector<4x16xbf16>
    %96 = vector.extract_strided_slice %76 {offsets = [32, 0], sizes = [16, 16], strides = [1, 1]} : vector<64x16xbf16> to vector<16x16xbf16>
    %cst_74 = arith.constant dense<0.000000e+00> : vector<4x16xf32>
    %97 = tpu.matmul %95, %96, %cst_74 {dimension_numbers = #tpu.dot_dimension_numbers<[1], [0], [0], [1], [0, 0, 1, 1], [], []>} : vector<4x16xbf16>, vector<16x16xbf16>, vector<4x16xf32> -> vector<4x16xf32>
    %c0_75 = arith.constant 0 : index
    %c0_76 = arith.constant 0 : index
    %98 = vector.load %arg11[%c0_75, %c0_76] : memref<4x1xf32, #tpu.memory_space<vmem>>, vector<4x1xf32>
    %99 = vector.broadcast %98 : vector<4x1xf32> to vector<4x16xf32>
    %100 = arith.addf %97, %99 : vector<4x16xf32>
    %c2_77 = arith.constant 2 : index
    %c0_78 = arith.constant 0 : index
    %c0_79 = arith.constant 0 : index
    %101 = vector.load %arg12[%c2_77, %c0_78, %c0_79] : memref<4x4x16xf32, #tpu.memory_space<vmem>>, vector<1x4x16xf32>
    %102 = vector.shape_cast %101 : vector<1x4x16xf32> to vector<4x16xf32>
    %103 = vector.shape_cast %100 : vector<4x16xf32> to vector<1x4x16xf32>
    tpu.vector_store %arg12[%c2_77, %c0_78, %c0_79], %103 {strides = array<i32>} : memref<4x4x16xf32, #tpu.memory_space<vmem>>, vector<1x4x16xf32>,
    %c0_80 = arith.constant 0 : index
    %c0_81 = arith.constant 0 : index
    %104 = vector.load %arg10[%c0_80, %c0_81] : memref<4x16xbf16, #tpu.memory_space<vmem>>, vector<4x16xbf16>
    %105 = vector.extract_strided_slice %76 {offsets = [48, 0], sizes = [16, 16], strides = [1, 1]} : vector<64x16xbf16> to vector<16x16xbf16>
    %cst_82 = arith.constant dense<0.000000e+00> : vector<4x16xf32>
    %106 = tpu.matmul %104, %105, %cst_82 {dimension_numbers = #tpu.dot_dimension_numbers<[1], [0], [0], [1], [0, 0, 1, 1], [], []>} : vector<4x16xbf16>, vector<16x16xbf16>, vector<4x16xf32> -> vector<4x16xf32>
    %c0_83 = arith.constant 0 : index
    %c0_84 = arith.constant 0 : index
    %107 = vector.load %arg11[%c0_83, %c0_84] : memref<4x1xf32, #tpu.memory_space<vmem>>, vector<4x1xf32>
    %108 = vector.broadcast %107 : vector<4x1xf32> to vector<4x16xf32>
    %109 = arith.addf %106, %108 : vector<4x16xf32>
    %c3_85 = arith.constant 3 : index
    %c0_86 = arith.constant 0 : index
    %c0_87 = arith.constant 0 : index
    %110 = vector.load %arg12[%c3_85, %c0_86, %c0_87] : memref<4x4x16xf32, #tpu.memory_space<vmem>>, vector<1x4x16xf32>
    %111 = vector.shape_cast %110 : vector<1x4x16xf32> to vector<4x16xf32>
    %112 = vector.shape_cast %109 : vector<4x16xf32> to vector<1x4x16xf32>
    tpu.vector_store %arg12[%c3_85, %c0_86, %c0_87], %112 {strides = array<i32>} : memref<4x4x16xf32, #tpu.memory_space<vmem>>, vector<1x4x16xf32>,
    return
  }
  func.func @transform_0(%arg0: i32) -> (i32, i32, i32) {
    %c0_i32 = arith.constant 0 : i32
    %c0_i32_0 = arith.constant 0 : i32
    %c0_i32_1 = arith.constant 0 : i32
    return %arg0, %c0_i32, %c0_i32_0 : i32, i32, i32
  }
  func.func @transform_1(%arg0: i32) -> (i32, i32) {
    %c0_i32 = arith.constant 0 : i32
    %c0_i32_0 = arith.constant 0 : i32
    %c0_i32_1 = arith.constant 0 : i32
    return %c0_i32, %c0_i32_0 : i32, i32
  }
  func.func @transform_2(%arg0: i32) -> (i32, i32) {
    %c0_i32 = arith.constant 0 : i32
    %c0_i32_0 = arith.constant 0 : i32
    %c0_i32_1 = arith.constant 0 : i32
    return %c0_i32, %c0_i32_0 : i32, i32
  }
  func.func @transform_3(%arg0: i32) -> (i32, i32) {
    %c0_i32 = arith.constant 0 : i32
    %c0_i32_0 = arith.constant 0 : i32
    %c0_i32_1 = arith.constant 0 : i32
    return %c0_i32, %c0_i32_0 : i32, i32
  }
  func.func @transform_4(%arg0: i32) -> (i32, i32) {
    %c0_i32 = arith.constant 0 : i32
    %c0_i32_0 = arith.constant 0 : i32
    %c0_i32_1 = arith.constant 0 : i32
    return %c0_i32, %c0_i32_0 : i32, i32
  }
  func.func @transform_5(%arg0: i32) -> (i32, i32) {
    %c0_i32 = arith.constant 0 : i32
    %c0_i32_0 = arith.constant 0 : i32
    %c0_i32_1 = arith.constant 0 : i32
    return %c0_i32, %c0_i32_0 : i32, i32
  }
  func.func @transform_6(%arg0: i32) -> (i32, i32) {
    %c0_i32 = arith.constant 0 : i32
    %c0_i32_0 = arith.constant 0 : i32
    %c0_i32_1 = arith.constant 0 : i32
    return %c0_i32, %c0_i32_0 : i32, i32
  }
  func.func @transform_7(%arg0: i32) -> (i32, i32) {
    %c0_i32 = arith.constant 0 : i32
    %c0_i32_0 = arith.constant 0 : i32
    %c0_i32_1 = arith.constant 0 : i32
    return %c0_i32, %c0_i32_0 : i32, i32
  }
  func.func @transform_8(%arg0: i32) -> (i32, i32) {
    %c0_i32 = arith.constant 0 : i32
    %c0_i32_0 = arith.constant 0 : i32
    %c0_i32_1 = arith.constant 0 : i32
    return %c0_i32, %c0_i32_0 : i32, i32
  }
  func.func @transform_9(%arg0: i32) -> (i32, i32) {
    %c0_i32 = arith.constant 0 : i32
    %c0_i32_0 = arith.constant 0 : i32
    %c0_i32_1 = arith.constant 0 : i32
    return %c0_i32, %c0_i32_0 : i32, i32
  }
  func.func @transform_10(%arg0: i32) -> (i32, i32) {
    %c0_i32 = arith.constant 0 : i32
    %c0_i32_0 = arith.constant 0 : i32
    %c0_i32_1 = arith.constant 0 : i32
    return %c0_i32, %c0_i32_0 : i32, i32
  }
  func.func @transform_11(%arg0: i32) -> (i32, i32, i32) {
    %c0_i32 = arith.constant 0 : i32
    %c0_i32_0 = arith.constant 0 : i32
    %c0_i32_1 = arith.constant 0 : i32
    return %arg0, %c0_i32, %c0_i32_0 : i32, i32, i32
  }
}

module attributes {stable_mosaic.version = 11 : i64} {
  func.func @fdffn_kernel(%arg0: i32, %arg1: memref<4x4x16xbf16, #tpu.memory_space<vmem>>, %arg2: memref<16x4xbf16, #tpu.memory_space<vmem>>, %arg3: memref<16x1xf32, #tpu.memory_space<vmem>>, %arg4: memref<16x16xbf16, #tpu.memory_space<vmem>>, %arg5: memref<16x16xbf16, #tpu.memory_space<vmem>>, %arg6: memref<64x1xf32, #tpu.memory_space<vmem>>, %arg7: memref<64x1xf32, #tpu.memory_space<vmem>>, %arg8: memref<64x1xf32, #tpu.memory_space<vmem>>, %arg9: memref<64x1xf32, #tpu.memory_space<vmem>>, %arg10: memref<4x16xbf16, #tpu.memory_space<vmem>>, %arg11: memref<4x1xf32, #tpu.memory_space<vmem>>, %arg12: memref<4x4x16xf32, #tpu.memory_space<vmem>>, %arg13: memref<64x16xbf16, #tpu.memory_space<vmem>>) attributes {dimension_semantics = [#tpu.dimension_semantics<parallel>], iteration_bounds = array<i64: 1>, scalar_prefetch = 0 : i64, scratch_operands = 1 : i64, tpu.core_type = #tpu.core_type<tc>, window_params = [{transform_indices = @transform_0, window_bounds = array<i64: 4, 4, 16>}, {pipeline_mode = #tpu.pipeline_mode<synchronous>, transform_indices = @transform_1, window_bounds = array<i64: 16, 4>}, {pipeline_mode = #tpu.pipeline_mode<synchronous>, transform_indices = @transform_2, window_bounds = array<i64: 16, 1>}, {pipeline_mode = #tpu.pipeline_mode<synchronous>, transform_indices = @transform_3, window_bounds = array<i64: 16, 16>}, {pipeline_mode = #tpu.pipeline_mode<synchronous>, transform_indices = @transform_4, window_bounds = array<i64: 16, 16>}, {pipeline_mode = #tpu.pipeline_mode<synchronous>, transform_indices = @transform_5, window_bounds = array<i64: 64, 1>}, {pipeline_mode = #tpu.pipeline_mode<synchronous>, transform_indices = @transform_6, window_bounds = array<i64: 64, 1>}, {pipeline_mode = #tpu.pipeline_mode<synchronous>, transform_indices = @transform_7, window_bounds = array<i64: 64, 1>}, {pipeline_mode = #tpu.pipeline_mode<synchronous>, transform_indices = @transform_8, window_bounds = array<i64: 64, 1>}, {pipeline_mode = #tpu.pipeline_mode<synchronous>, transform_indices = @transform_9, window_bounds = array<i64: 4, 16>}, {pipeline_mode = #tpu.pipeline_mode<synchronous>, transform_indices = @transform_10, window_bounds = array<i64: 4, 1>}, {transform_indices = @transform_11, window_bounds = array<i64: 4, 4, 16>}]} {
    %c0 = arith.constant 0 : index
    %c0_0 = arith.constant 0 : index
    %0 = vector.load %arg2[%c0, %c0_0] : memref<16x4xbf16, #tpu.memory_space<vmem>>, vector<16x4xbf16>
    %c0_1 = arith.constant 0 : index
    %c0_2 = arith.constant 0 : index
    %c0_3 = arith.constant 0 : index
    %1 = vector.load %arg1[%c0_1, %c0_2, %c0_3] : memref<4x4x16xbf16, #tpu.memory_space<vmem>>, vector<1x4x16xbf16>
    %2 = vector.shape_cast %1 : vector<1x4x16xbf16> to vector<4x16xbf16>
    %cst = arith.constant dense<0.000000e+00> : vector<16x16xf32>
    %3 = tpu.matmul %0, %2, %cst {dimension_numbers = #tpu.dot_dimension_numbers<[1], [0], [0], [1], [0, 0, 1, 1], [], []>} : vector<16x4xbf16>, vector<4x16xbf16>, vector<16x16xf32> -> vector<16x16xf32>
    %c0_4 = arith.constant 0 : index
    %c0_5 = arith.constant 0 : index
    %4 = vector.load %arg3[%c0_4, %c0_5] : memref<16x1xf32, #tpu.memory_space<vmem>>, vector<16x1xf32>
    %5 = vector.broadcast %4 : vector<16x1xf32> to vector<16x16xf32>
    %6 = arith.addf %3, %5 : vector<16x16xf32>
    %cst_6 = arith.constant 0.000000e+00 : f32
    %7 = vector.broadcast %cst_6 : f32 to vector<16x16xf32>
    %8 = arith.maximumf %6, %7 : vector<16x16xf32>
    %9 = arith.truncf %8 : vector<16x16xf32> to vector<16x16xbf16>
    %c0_7 = arith.constant 0 : index
    %c0_8 = arith.constant 0 : index
    %10 = vector.load %arg13[%c0_7, %c0_8] : memref<64x16xbf16, #tpu.memory_space<vmem>>, vector<16x16xbf16>
    tpu.vector_store %arg13[%c0_7, %c0_8], %9 {strides = array<i32>} : memref<64x16xbf16, #tpu.memory_space<vmem>>, vector<16x16xbf16>,
    %c0_9 = arith.constant 0 : index
    %c0_10 = arith.constant 0 : index
    %11 = vector.load %arg2[%c0_9, %c0_10] : memref<16x4xbf16, #tpu.memory_space<vmem>>, vector<16x4xbf16>
    %c1 = arith.constant 1 : index
    %c0_11 = arith.constant 0 : index
    %c0_12 = arith.constant 0 : index
    %12 = vector.load %arg1[%c1, %c0_11, %c0_12] : memref<4x4x16xbf16, #tpu.memory_space<vmem>>, vector<1x4x16xbf16>
    %13 = vector.shape_cast %12 : vector<1x4x16xbf16> to vector<4x16xbf16>
    %cst_13 = arith.constant dense<0.000000e+00> : vector<16x16xf32>
    %14 = tpu.matmul %11, %13, %cst_13 {dimension_numbers = #tpu.dot_dimension_numbers<[1], [0], [0], [1], [0, 0, 1, 1], [], []>} : vector<16x4xbf16>, vector<4x16xbf16>, vector<16x16xf32> -> vector<16x16xf32>
    %c0_14 = arith.constant 0 : index
    %c0_15 = arith.constant 0 : index
    %15 = vector.load %arg3[%c0_14, %c0_15] : memref<16x1xf32, #tpu.memory_space<vmem>>, vector<16x1xf32>
    %16 = vector.broadcast %15 : vector<16x1xf32> to vector<16x16xf32>
    %17 = arith.addf %14, %16 : vector<16x16xf32>
    %cst_16 = arith.constant 0.000000e+00 : f32
    %18 = vector.broadcast %cst_16 : f32 to vector<16x16xf32>
    %19 = arith.maximumf %17, %18 : vector<16x16xf32>
    %20 = arith.truncf %19 : vector<16x16xf32> to vector<16x16xbf16>
    %c16 = arith.constant 16 : index
    %c0_17 = arith.constant 0 : index
    %21 = vector.load %arg13[%c16, %c0_17] : memref<64x16xbf16, #tpu.memory_space<vmem>>, vector<16x16xbf16>
    tpu.vector_store %arg13[%c16, %c0_17], %20 {strides = array<i32>} : memref<64x16xbf16, #tpu.memory_space<vmem>>, vector<16x16xbf16>,
    %c0_18 = arith.constant 0 : index
    %c0_19 = arith.constant 0 : index
    %22 = vector.load %arg2[%c0_18, %c0_19] : memref<16x4xbf16, #tpu.memory_space<vmem>>, vector<16x4xbf16>
    %c2 = arith.constant 2 : index
    %c0_20 = arith.constant 0 : index
    %c0_21 = arith.constant 0 : index
    %23 = vector.load %arg1[%c2, %c0_20, %c0_21] : memref<4x4x16xbf16, #tpu.memory_space<vmem>>, vector<1x4x16xbf16>
    %24 = vector.shape_cast %23 : vector<1x4x16xbf16> to vector<4x16xbf16>
    %cst_22 = arith.constant dense<0.000000e+00> : vector<16x16xf32>
    %25 = tpu.matmul %22, %24, %cst_22 {dimension_numbers = #tpu.dot_dimension_numbers<[1], [0], [0], [1], [0, 0, 1, 1], [], []>} : vector<16x4xbf16>, vector<4x16xbf16>, vector<16x16xf32> -> vector<16x16xf32>
    %c0_23 = arith.constant 0 : index
    %c0_24 = arith.constant 0 : index
    %26 = vector.load %arg3[%c0_23, %c0_24] : memref<16x1xf32, #tpu.memory_space<vmem>>, vector<16x1xf32>
    %27 = vector.broadcast %26 : vector<16x1xf32> to vector<16x16xf32>
    %28 = arith.addf %25, %27 : vector<16x16xf32>
    %cst_25 = arith.constant 0.000000e+00 : f32
    %29 = vector.broadcast %cst_25 : f32 to vector<16x16xf32>
    %30 = arith.maximumf %28, %29 : vector<16x16xf32>
    %31 = arith.truncf %30 : vector<16x16xf32> to vector<16x16xbf16>
    %c32 = arith.constant 32 : index
    %c0_26 = arith.constant 0 : index
    %32 = vector.load %arg13[%c32, %c0_26] : memref<64x16xbf16, #tpu.memory_space<vmem>>, vector<16x16xbf16>
    tpu.vector_store %arg13[%c32, %c0_26], %31 {strides = array<i32>} : memref<64x16xbf16, #tpu.memory_space<vmem>>, vector<16x16xbf16>,
    %c0_27 = arith.constant 0 : index
    %c0_28 = arith.constant 0 : index
    %33 = vector.load %arg2[%c0_27, %c0_28] : memref<16x4xbf16, #tpu.memory_space<vmem>>, vector<16x4xbf16>
    %c3 = arith.constant 3 : index
    %c0_29 = arith.constant 0 : index
    %c0_30 = arith.constant 0 : index
    %34 = vector.load %arg1[%c3, %c0_29, %c0_30] : memref<4x4x16xbf16, #tpu.memory_space<vmem>>, vector<1x4x16xbf16>
    %35 = vector.shape_cast %34 : vector<1x4x16xbf16> to vector<4x16xbf16>
    %cst_31 = arith.constant dense<0.000000e+00> : vector<16x16xf32>
    %36 = tpu.matmul %33, %35, %cst_31 {dimension_numbers = #tpu.dot_dimension_numbers<[1], [0], [0], [1], [0, 0, 1, 1], [], []>} : vector<16x4xbf16>, vector<4x16xbf16>, vector<16x16xf32> -> vector<16x16xf32>
    %c0_32 = arith.constant 0 : index
    %c0_33 = arith.constant 0 : index
    %37 = vector.load %arg3[%c0_32, %c0_33] : memref<16x1xf32, #tpu.memory_space<vmem>>, vector<16x1xf32>
    %38 = vector.broadcast %37 : vector<16x1xf32> to vector<16x16xf32>
    %39 = arith.addf %36, %38 : vector<16x16xf32>
    %cst_34 = arith.constant 0.000000e+00 : f32
    %40 = vector.broadcast %cst_34 : f32 to vector<16x16xf32>
    %41 = arith.maximumf %39, %40 : vector<16x16xf32>
    %42 = arith.truncf %41 : vector<16x16xf32> to vector<16x16xbf16>
    %c48 = arith.constant 48 : index
    %c0_35 = arith.constant 0 : index
    %43 = vector.load %arg13[%c48, %c0_35] : memref<64x16xbf16, #tpu.memory_space<vmem>>, vector<16x16xbf16>
    tpu.vector_store %arg13[%c48, %c0_35], %42 {strides = array<i32>} : memref<64x16xbf16, #tpu.memory_space<vmem>>, vector<16x16xbf16>,
    %c0_36 = arith.constant 0 : index
    %c0_37 = arith.constant 0 : index
    %44 = vector.load %arg13[%c0_36, %c0_37] : memref<64x16xbf16, #tpu.memory_space<vmem>>, vector<64x16xbf16>
    %c0_38 = arith.constant 0 : index
    %c0_39 = arith.constant 0 : index
    %45 = vector.load %arg4[%c0_38, %c0_39] : memref<16x16xbf16, #tpu.memory_space<vmem>>, vector<16x16xbf16>
    %c0_40 = arith.constant 0 : index
    %c0_41 = arith.constant 0 : index
    %46 = vector.load %arg5[%c0_40, %c0_41] : memref<16x16xbf16, #tpu.memory_space<vmem>>, vector<16x16xbf16>
    %cst_42 = arith.constant dense<0.000000e+00> : vector<64x16xf32>
    %47 = tpu.matmul %44, %45, %cst_42 {dimension_numbers = #tpu.dot_dimension_numbers<[1], [0], [0], [1], [0, 0, 1, 1], [], []>} : vector<64x16xbf16>, vector<16x16xbf16>, vector<64x16xf32> -> vector<64x16xf32>
    %cst_43 = arith.constant dense<0.000000e+00> : vector<64x16xf32>
    %48 = tpu.matmul %44, %46, %cst_43 {dimension_numbers = #tpu.dot_dimension_numbers<[1], [0], [0], [1], [0, 0, 1, 1], [], []>} : vector<64x16xbf16>, vector<16x16xbf16>, vector<64x16xf32> -> vector<64x16xf32>
    %c0_44 = arith.constant 0 : index
    %c0_45 = arith.constant 0 : index
    %49 = vector.load %arg6[%c0_44, %c0_45] : memref<64x1xf32, #tpu.memory_space<vmem>>, vector<64x1xf32>
    %c0_46 = arith.constant 0 : index
    %c0_47 = arith.constant 0 : index
    %50 = vector.load %arg7[%c0_46, %c0_47] : memref<64x1xf32, #tpu.memory_space<vmem>>, vector<64x1xf32>
    %51 = vector.broadcast %49 : vector<64x1xf32> to vector<64x16xf32>
    %52 = arith.mulf %47, %51 : vector<64x16xf32>
    %53 = vector.broadcast %50 : vector<64x1xf32> to vector<64x16xf32>
    %54 = arith.mulf %48, %53 : vector<64x16xf32>
    %55 = arith.subf %52, %54 : vector<64x16xf32>
    %c0_48 = arith.constant 0 : index
    %c0_49 = arith.constant 0 : index
    %56 = vector.load %arg8[%c0_48, %c0_49] : memref<64x1xf32, #tpu.memory_space<vmem>>, vector<64x1xf32>
    %57 = vector.broadcast %56 : vector<64x1xf32> to vector<64x16xf32>
    %58 = arith.addf %55, %57 : vector<64x16xf32>
    %cst_50 = arith.constant 0.000000e+00 : f32
    %59 = vector.broadcast %cst_50 : f32 to vector<64x16xf32>
    %60 = arith.maximumf %58, %59 : vector<64x16xf32>
    %61 = arith.truncf %60 : vector<64x16xf32> to vector<64x16xbf16>
    %62 = vector.broadcast %49 : vector<64x1xf32> to vector<64x16xf32>
    %63 = arith.mulf %48, %62 : vector<64x16xf32>
    %64 = vector.broadcast %50 : vector<64x1xf32> to vector<64x16xf32>
    %65 = arith.mulf %47, %64 : vector<64x16xf32>
    %66 = arith.addf %63, %65 : vector<64x16xf32>
    %c0_51 = arith.constant 0 : index
    %c0_52 = arith.constant 0 : index
    %67 = vector.load %arg9[%c0_51, %c0_52] : memref<64x1xf32, #tpu.memory_space<vmem>>, vector<64x1xf32>
    %68 = vector.broadcast %67 : vector<64x1xf32> to vector<64x16xf32>
    %69 = arith.addf %66, %68 : vector<64x16xf32>
    %cst_53 = arith.constant 0.000000e+00 : f32
    %70 = vector.broadcast %cst_53 : f32 to vector<64x16xf32>
    %71 = arith.maximumf %69, %70 : vector<64x16xf32>
    %72 = arith.truncf %71 : vector<64x16xf32> to vector<64x16xbf16>
    %cst_54 = arith.constant dense<0.000000e+00> : vector<64x16xf32>
    %73 = tpu.matmul %61, %45, %cst_54 {dimension_numbers = #tpu.dot_dimension_numbers<[1], [0], [0], [1], [0, 0, 1, 1], [], []>} : vector<64x16xbf16>, vector<16x16xbf16>, vector<64x16xf32> -> vector<64x16xf32>
    %cst_55 = arith.constant dense<0.000000e+00> : vector<64x16xf32>
    %74 = tpu.matmul %72, %46, %cst_55 {dimension_numbers = #tpu.dot_dimension_numbers<[1], [0], [0], [1], [0, 0, 1, 1], [], []>} : vector<64x16xbf16>, vector<16x16xbf16>, vector<64x16xf32> -> vector<64x16xf32>
    %75 = arith.addf %73, %74 : vector<64x16xf32>
    %76 = arith.truncf %75 : vector<64x16xf32> to vector<64x16xbf16>
    %c0_56 = arith.constant 0 : index
    %c0_57 = arith.constant 0 : index
    %77 = vector.load %arg10[%c0_56, %c0_57] : memref<4x16xbf16, #tpu.memory_space<vmem>>, vector<4x16xbf16>
    %78 = vector.extract_strided_slice %76 {offsets = [0, 0], sizes = [16, 16], strides = [1, 1]} : vector<64x16xbf16> to vector<16x16xbf16>
    %cst_58 = arith.constant dense<0.000000e+00> : vector<4x16xf32>
    %79 = tpu.matmul %77, %78, %cst_58 {dimension_numbers = #tpu.dot_dimension_numbers<[1], [0], [0], [1], [0, 0, 1, 1], [], []>} : vector<4x16xbf16>, vector<16x16xbf16>, vector<4x16xf32> -> vector<4x16xf32>
    %c0_59 = arith.constant 0 : index
    %c0_60 = arith.constant 0 : index
    %80 = vector.load %arg11[%c0_59, %c0_60] : memref<4x1xf32, #tpu.memory_space<vmem>>, vector<4x1xf32>
    %81 = vector.broadcast %80 : vector<4x1xf32> to vector<4x16xf32>
    %82 = arith.addf %79, %81 : vector<4x16xf32>
    %c0_61 = arith.constant 0 : index
    %c0_62 = arith.constant 0 : index
    %c0_63 = arith.constant 0 : index
    %83 = vector.load %arg12[%c0_61, %c0_62, %c0_63] : memref<4x4x16xf32, #tpu.memory_space<vmem>>, vector<1x4x16xf32>
    %84 = vector.shape_cast %83 : vector<1x4x16xf32> to vector<4x16xf32>
    %85 = vector.shape_cast %82 : vector<4x16xf32> to vector<1x4x16xf32>
    tpu.vector_store %arg12[%c0_61, %c0_62, %c0_63], %85 {strides = array<i32>} : memref<4x4x16xf32, #tpu.memory_space<vmem>>, vector<1x4x16xf32>,
    %c0_64 = arith.constant 0 : index
    %c0_65 = arith.constant 0 : index
    %86 = vector.load %arg10[%c0_64, %c0_65] : memref<4x16xbf16, #tpu.memory_space<vmem>>, vector<4x16xbf16>
    %87 = vector.extract_strided_slice %76 {offsets = [16, 0], sizes = [16, 16], strides = [1, 1]} : vector<64x16xbf16> to vector<16x16xbf16>
    %cst_66 = arith.constant dense<0.000000e+00> : vector<4x16xf32>
    %88 = tpu.matmul %86, %87, %cst_66 {dimension_numbers = #tpu.dot_dimension_numbers<[1], [0], [0], [1], [0, 0, 1, 1], [], []>} : vector<4x16xbf16>, vector<16x16xbf16>, vector<4x16xf32> -> vector<4x16xf32>
    %c0_67 = arith.constant 0 : index
    %c0_68 = arith.constant 0 : index
    %89 = vector.load %arg11[%c0_67, %c0_68] : memref<4x1xf32, #tpu.memory_space<vmem>>, vector<4x1xf32>
    %90 = vector.broadcast %89 : vector<4x1xf32> to vector<4x16xf32>
    %91 = arith.addf %88, %90 : vector<4x16xf32>
    %c1_69 = arith.constant 1 : index
    %c0_70 = arith.constant 0 : index
    %c0_71 = arith.constant 0 : index
    %92 = vector.load %arg12[%c1_69, %c0_70, %c0_71] : memref<4x4x16xf32, #tpu.memory_space<vmem>>, vector<1x4x16xf32>
    %93 = vector.shape_cast %92 : vector<1x4x16xf32> to vector<4x16xf32>
    %94 = vector.shape_cast %91 : vector<4x16xf32> to vector<1x4x16xf32>
    tpu.vector_store %arg12[%c1_69, %c0_70, %c0_71], %94 {strides = array<i32>} : memref<4x4x16xf32, #tpu.memory_space<vmem>>, vector<1x4x16xf32>,
    %c0_72 = arith.constant 0 : index
    %c0_73 = arith.constant 0 : index
    %95 = vector.load %arg10[%c0_72, %c0_73] : memref<4x16xbf16, #tpu.memory_space<vmem>>, vector<4x16xbf16>
    %96 = vector.extract_strided_slice %76 {offsets = [32, 0], sizes = [16, 16], strides = [1, 1]} : vector<64x16xbf16> to vector<16x16xbf16>
    %cst_74 = arith.constant dense<0.000000e+00> : vector<4x16xf32>
    %97 = tpu.matmul %95, %96, %cst_74 {dimension_numbers = #tpu.dot_dimension_numbers<[1], [0], [0], [1], [0, 0, 1, 1], [], []>} : vector<4x16xbf16>, vector<16x16xbf16>, vector<4x16xf32> -> vector<4x16xf32>
    %c0_75 = arith.constant 0 : index
    %c0_76 = arith.constant 0 : index
    %98 = vector.load %arg11[%c0_75, %c0_76] : memref<4x1xf32, #tpu.memory_space<vmem>>, vector<4x1xf32>
    %99 = vector.broadcast %98 : vector<4x1xf32> to vector<4x16xf32>
    %100 = arith.addf %97, %99 : vector<4x16xf32>
    %c2_77 = arith.constant 2 : index
    %c0_78 = arith.constant 0 : index
    %c0_79 = arith.constant 0 : index
    %101 = vector.load %arg12[%c2_77, %c0_78, %c0_79] : memref<4x4x16xf32, #tpu.memory_space<vmem>>, vector<1x4x16xf32>
    %102 = vector.shape_cast %101 : vector<1x4x16xf32> to vector<4x16xf32>
    %103 = vector.shape_cast %100 : vector<4x16xf32> to vector<1x4x16xf32>
    tpu.vector_store %arg12[%c2_77, %c0_78, %c0_79], %103 {strides = array<i32>} : memref<4x4x16xf32, #tpu.memory_space<vmem>>, vector<1x4x16xf32>,
    %c0_80 = arith.constant 0 : index
    %c0_81 = arith.constant 0 : index
    %104 = vector.load %arg10[%c0_80, %c0_81] : memref<4x16xbf16, #tpu.memory_space<vmem>>, vector<4x16xbf16>
    %105 = vector.extract_strided_slice %76 {offsets = [48, 0], sizes = [16, 16], strides = [1, 1]} : vector<64x16xbf16> to vector<16x16xbf16>
    %cst_82 = arith.constant dense<0.000000e+00> : vector<4x16xf32>
    %106 = tpu.matmul %104, %105, %cst_82 {dimension_numbers = #tpu.dot_dimension_numbers<[1], [0], [0], [1], [0, 0, 1, 1], [], []>} : vector<4x16xbf16>, vector<16x16xbf16>, vector<4x16xf32> -> vector<4x16xf32>
    %c0_83 = arith.constant 0 : index
    %c0_84 = arith.constant 0 : index
    %107 = vector.load %arg11[%c0_83, %c0_84] : memref<4x1xf32, #tpu.memory_space<vmem>>, vector<4x1xf32>
    %108 = vector.broadcast %107 : vector<4x1xf32> to vector<4x16xf32>
    %109 = arith.addf %106, %108 : vector<4x16xf32>
    %c3_85 = arith.constant 3 : index
    %c0_86 = arith.constant 0 : index
    %c0_87 = arith.constant 0 : index
    %110 = vector.load %arg12[%c3_85, %c0_86, %c0_87] : memref<4x4x16xf32, #tpu.memory_space<vmem>>, vector<1x4x16xf32>
    %111 = vector.shape_cast %110 : vector<1x4x16xf32> to vector<4x16xf32>
    %112 = vector.shape_cast %109 : vector<4x16xf32> to vector<1x4x16xf32>
    tpu.vector_store %arg12[%c3_85, %c0_86, %c0_87], %112 {strides = array<i32>} : memref<4x4x16xf32, #tpu.memory_space<vmem>>, vector<1x4x16xf32>,
    return
  }
  func.func @transform_0(%arg0: i32) -> (i32, i32, i32) {
    %c0_i32 = arith.constant 0 : i32
    %c0_i32_0 = arith.constant 0 : i32
    %c0_i32_1 = arith.constant 0 : i32
    return %arg0, %c0_i32, %c0_i32_0 : i32, i32, i32
  }
  func.func @transform_1(%arg0: i32) -> (i32, i32) {
    %c0_i32 = arith.constant 0 : i32
    %c0_i32_0 = arith.constant 0 : i32
    %c0_i32_1 = arith.constant 0 : i32
    return %c0_i32, %c0_i32_0 : i32, i32
  }
  func.func @transform_2(%arg0: i32) -> (i32, i32) {
    %c0_i32 = arith.constant 0 : i32
    %c0_i32_0 = arith.constant 0 : i32
    %c0_i32_1 = arith.constant 0 : i32
    return %c0_i32, %c0_i32_0 : i32, i32
  }
  func.func @transform_3(%arg0: i32) -> (i32, i32) {
    %c0_i32 = arith.constant 0 : i32
    %c0_i32_0 = arith.constant 0 : i32
    %c0_i32_1 = arith.constant 0 : i32
    return %c0_i32, %c0_i32_0 : i32, i32
  }
  func.func @transform_4(%arg0: i32) -> (i32, i32) {
    %c0_i32 = arith.constant 0 : i32
    %c0_i32_0 = arith.constant 0 : i32
    %c0_i32_1 = arith.constant 0 : i32
    return %c0_i32, %c0_i32_0 : i32, i32
  }
  func.func @transform_5(%arg0: i32) -> (i32, i32) {
    %c0_i32 = arith.constant 0 : i32
    %c0_i32_0 = arith.constant 0 : i32
    %c0_i32_1 = arith.constant 0 : i32
    return %c0_i32, %c0_i32_0 : i32, i32
  }
  func.func @transform_6(%arg0: i32) -> (i32, i32) {
    %c0_i32 = arith.constant 0 : i32
    %c0_i32_0 = arith.constant 0 : i32
    %c0_i32_1 = arith.constant 0 : i32
    return %c0_i32, %c0_i32_0 : i32, i32
  }
  func.func @transform_7(%arg0: i32) -> (i32, i32) {
    %c0_i32 = arith.constant 0 : i32
    %c0_i32_0 = arith.constant 0 : i32
    %c0_i32_1 = arith.constant 0 : i32
    return %c0_i32, %c0_i32_0 : i32, i32
  }
  func.func @transform_8(%arg0: i32) -> (i32, i32) {
    %c0_i32 = arith.constant 0 : i32
    %c0_i32_0 = arith.constant 0 : i32
    %c0_i32_1 = arith.constant 0 : i32
    return %c0_i32, %c0_i32_0 : i32, i32
  }
  func.func @transform_9(%arg0: i32) -> (i32, i32) {
    %c0_i32 = arith.constant 0 : i32
    %c0_i32_0 = arith.constant 0 : i32
    %c0_i32_1 = arith.constant 0 : i32
    return %c0_i32, %c0_i32_0 : i32, i32
  }
  func.func @transform_10(%arg0: i32) -> (i32, i32) {
    %c0_i32 = arith.constant 0 : i32
    %c0_i32_0 = arith.constant 0 : i32
    %c0_i32_1 = arith.constant 0 : i32
    return %c0_i32, %c0_i32_0 : i32, i32
  }
  func.func @transform_11(%arg0: i32) -> (i32, i32, i32) {
    %c0_i32 = arith.constant 0 : i32
    %c0_i32_0 = arith.constant 0 : i32
    %c0_i32_1 = arith.constant 0 : i32
    return %arg0, %c0_i32, %c0_i32_0 : i32, i32, i32
  }
}

</mosaic_0001>

<llo_original>
// kernel: tpu_custom_call.1
$region0: #{tpu_custom_call.1}
  #allocation0 [shape = 'u32[]', space=smem, size = 0x4, offset = 0x4, fixed_abs, tag = 'smem constant byte address 0x4 - core index']
  #allocation1 [shape = 'u32[144,128]{1,0:T(1,128)}', space=vmem, size = 0x12000, scoped, tag = 'internal scratch']
  #allocation2 [shape = 'bf16[64,16]{1,0:T(16,128)(2,1)}', space=vmem, size = 0x4000, scoped, tag = 'scratch operand']
  %s0 = inlined_call_operand.hbm [shape: bf16[4,4,16], index: 0, kind: input, shape index: {}]
  %s1 = inlined_call_operand.hbm [shape: bf16[16,4], index: 1, kind: input, shape index: {}]
  %s2 = inlined_call_operand.hbm [shape: f32[16,1], index: 2, kind: input, shape index: {}]
  %s3 = inlined_call_operand.hbm [shape: bf16[16,16], index: 3, kind: input, shape index: {}]
  %s4 = inlined_call_operand.hbm [shape: bf16[16,16], index: 4, kind: input, shape index: {}]
  %s5 = inlined_call_operand.hbm [shape: f32[64,1], index: 5, kind: input, shape index: {}]
  %s6 = inlined_call_operand.hbm [shape: f32[64,1], index: 6, kind: input, shape index: {}]
  %s7 = inlined_call_operand.hbm [shape: f32[64,1], index: 7, kind: input, shape index: {}]
  %s8 = inlined_call_operand.hbm [shape: f32[64,1], index: 8, kind: input, shape index: {}]
  %s9 = inlined_call_operand.hbm [shape: bf16[4,16], index: 9, kind: input, shape index: {}]
  %s10 = inlined_call_operand.hbm [shape: f32[4,1], index: 10, kind: input, shape index: {}]
  %s11 = inlined_call_operand.hbm [shape: f32[4,4,16], index: 11, kind: output, shape index: {}]
  %s12 = sld [smem:[#allocation0]]
  $region98: #{tpu_custom_call.1} parent=0
    _
  %s14 = ssub.s32 1, %s12
  %s15 = scalar_select 0, %s14, %s12
  $region1: #{tpu_custom_call.1} parent=0
    #allocation3 [shape = 'u8[4096]{0}', space=vmem, size = 0x1000, scoped, tag = 'input window, operand 0, single buffered']
    #allocation4 [shape = 's32[1]{0}', space=sflag, size = 0x4, scoped, tag = 'scoped memory for tpu_custom_call.1']
    #allocation5 [shape = 's32[1]{0}', space=sflag, size = 0x4, scoped, tag = 'scoped memory for tpu_custom_call.1']
    #allocation6 [shape = 'u8[4096]{0}', space=vmem, size = 0x1000, scoped, tag = 'input window, operand 1, single buffered']
    #allocation7 [shape = 's32[1]{0}', space=sflag, size = 0x4, scoped, tag = 'scoped memory for tpu_custom_call.1']
    #allocation8 [shape = 'u8[8192]{0}', space=vmem, size = 0x2000, scoped, tag = 'input window, operand 2, single buffered']
    #allocation9 [shape = 'u8[4096]{0}', space=vmem, size = 0x1000, scoped, tag = 'input window, operand 3, single buffered']
    #allocation10 [shape = 's32[1]{0}', space=sflag, size = 0x4, scoped, tag = 'scoped memory for tpu_custom_call.1']
    #allocation11 [shape = 'u8[4096]{0}', space=vmem, size = 0x1000, scoped, tag = 'input window, operand 4, single buffered']
    #allocation12 [shape = 'u8[32768]{0}', space=vmem, size = 0x8000, scoped, tag = 'input window, operand 5, single buffered']
    #allocation13 [shape = 's32[1]{0}', space=sflag, size = 0x4, scoped, tag = 'scoped memory for tpu_custom_call.1']
    #allocation14 [shape = 'u8[32768]{0}', space=vmem, size = 0x8000, scoped, tag = 'input window, operand 6, single buffered']
    #allocation15 [shape = 'u8[32768]{0}', space=vmem, size = 0x8000, scoped, tag = 'input window, operand 7, single buffered']
    #allocation16 [shape = 's32[1]{0}', space=sflag, size = 0x4, scoped, tag = 'scoped memory for tpu_custom_call.1']
    #allocation17 [shape = 'u8[32768]{0}', space=vmem, size = 0x8000, scoped, tag = 'input window, operand 8, single buffered']
    #allocation18 [shape = 'u8[1024]{0}', space=vmem, size = 0x400, scoped, tag = 'input window, operand 9, single buffered']
    #allocation19 [shape = 's32[1]{0}', space=sflag, size = 0x4, scoped, tag = 'scoped memory for tpu_custom_call.1']
    #allocation20 [shape = 'u8[2048]{0}', space=vmem, size = 0x800, scoped, tag = 'input window, operand 10, single buffered']
    #allocation21 [shape = 'u8[8192]{0}', space=vmem, size = 0x2000, scoped, tag = 'output window, operand 0, single buffered']
    %16 = vsyncpa [#allocation4], 0
    %17 = vsyncpa [#allocation7], 0
    %18 = vsyncpa [#allocation10], 0
    %19 = vsyncpa [#allocation13], 0
    %20 = vsyncpa [#allocation16], 0
    %21 = vsyncpa [#allocation19], 0
    %22 = vsyncpa [#allocation5], 0
    // Predicated region
    $region2: #{tpu_custom_call.1} parent=1 // pred_check
      _
    $region3: #{tpu_custom_call.1} parent=1 // pred_check_branch
      %24 = sbr.rel (0) target = $region5
    $region4: #{tpu_custom_call.1} parent=1 // pred_region
      %s26 = ssub.s32 128, 128
      %27 = vsyncadd [#allocation4], %s26
      %s28 = sshll.u32 [#allocation3], 4
      %s29 = int_to_ptr.vmem [resolvable:$true] %s28
      %34 = dma.hbm_to_vmem [thread:$0]  %s0, 128, %s29, [#allocation4], 32, 32, 2
    $region5: #{tpu_custom_call.1} parent=1 // pred_fallthru
      _
    // Predicated region
    $region6: #{tpu_custom_call.1} parent=1 // pred_check
      _
    $region7: #{tpu_custom_call.1} parent=1 // pred_check_branch
      %36 = sbr.rel (0) target = $region9
    $region8: #{tpu_custom_call.1} parent=1 // pred_region
      %s38 = ssub.s32 128, 128
      %39 = vsyncadd [#allocation7], %s38
      %s40 = sshll.u32 [#allocation6], 4
      %s41 = int_to_ptr.vmem [resolvable:$true] %s40
      %46 = dma.hbm_to_vmem [thread:$0]  %s1, 128, %s41, [#allocation7], 64, 64, 4
    $region9: #{tpu_custom_call.1} parent=1 // pred_fallthru
      _
    // Predicated region
    $region10: #{tpu_custom_call.1} parent=1 // pred_check
      _
    $region11: #{tpu_custom_call.1} parent=1 // pred_check_branch
      %48 = sbr.rel (0) target = $region13
    $region12: #{tpu_custom_call.1} parent=1 // pred_region
      %s50 = ssub.s32 256, 256
      %51 = vsyncadd [#allocation7], %s50
      %s52 = sshll.u32 [#allocation8], 4
      %s53 = int_to_ptr.vmem [resolvable:$true] %s52
      %58 = dma.hbm_to_vmem [thread:$0]  %s2, 256, %s53, [#allocation7], 128, 128, 8
    $region13: #{tpu_custom_call.1} parent=1 // pred_fallthru
      _
    // Predicated region
    $region14: #{tpu_custom_call.1} parent=1 // pred_check
      _
    $region15: #{tpu_custom_call.1} parent=1 // pred_check_branch
      %60 = sbr.rel (0) target = $region17
    $region16: #{tpu_custom_call.1} parent=1 // pred_region
      %s62 = ssub.s32 128, 128
      %63 = vsyncadd [#allocation10], %s62
      %s64 = sshll.u32 [#allocation9], 4
      %s65 = int_to_ptr.vmem [resolvable:$true] %s64
      %70 = dma.hbm_to_vmem [thread:$0]  %s3, 128, %s65, [#allocation10], 64, 64, 4
    $region17: #{tpu_custom_call.1} parent=1 // pred_fallthru
      _
    // Predicated region
    $region18: #{tpu_custom_call.1} parent=1 // pred_check
      _
    $region19: #{tpu_custom_call.1} parent=1 // pred_check_branch
      %72 = sbr.rel (0) target = $region21
    $region20: #{tpu_custom_call.1} parent=1 // pred_region
      %s74 = ssub.s32 128, 128
      %75 = vsyncadd [#allocation10], %s74
      %s76 = sshll.u32 [#allocation11], 4
      %s77 = int_to_ptr.vmem [resolvable:$true] %s76
      %82 = dma.hbm_to_vmem [thread:$0]  %s4, 128, %s77, [#allocation10], 64, 64, 4
    $region21: #{tpu_custom_call.1} parent=1 // pred_fallthru
      _
    // Predicated region
    $region22: #{tpu_custom_call.1} parent=1 // pred_check
      _
    $region23: #{tpu_custom_call.1} parent=1 // pred_check_branch
      %84 = sbr.rel (0) target = $region25
    $region24: #{tpu_custom_call.1} parent=1 // pred_region
      %s86 = ssub.s32 1024, 1024
      %87 = vsyncadd [#allocation13], %s86
      %s88 = sshll.u32 [#allocation12], 4
      %s89 = int_to_ptr.vmem [resolvable:$true] %s88
      %94 = dma.hbm_to_vmem [thread:$0]  %s5, 1024, %s89, [#allocation13], 128, 128, 8
    $region25: #{tpu_custom_call.1} parent=1 // pred_fallthru
      _
    // Predicated region
    $region26: #{tpu_custom_call.1} parent=1 // pred_check
      _
    $region27: #{tpu_custom_call.1} parent=1 // pred_check_branch
      %96 = sbr.rel (0) target = $region29
    $region28: #{tpu_custom_call.1} parent=1 // pred_region
      %s98 = ssub.s32 1024, 1024
      %99 = vsyncadd [#allocation13], %s98
      %s100 = sshll.u32 [#allocation14], 4
      %s101 = int_to_ptr.vmem [resolvable:$true] %s100
      %106 = dma.hbm_to_vmem [thread:$0]  %s6, 1024, %s101, [#allocation13], 128, 128, 8
    $region29: #{tpu_custom_call.1} parent=1 // pred_fallthru
      _
    // Predicated region
    $region30: #{tpu_custom_call.1} parent=1 // pred_check
      _
    $region31: #{tpu_custom_call.1} parent=1 // pred_check_branch
      %108 = sbr.rel (0) target = $region33
    $region32: #{tpu_custom_call.1} parent=1 // pred_region
      %s110 = ssub.s32 1024, 1024
      %111 = vsyncadd [#allocation16], %s110
      %s112 = sshll.u32 [#allocation15], 4
      %s113 = int_to_ptr.vmem [resolvable:$true] %s112
      %118 = dma.hbm_to_vmem [thread:$0]  %s7, 1024, %s113, [#allocation16], 128, 128, 8
    $region33: #{tpu_custom_call.1} parent=1 // pred_fallthru
      _
    // Predicated region
    $region34: #{tpu_custom_call.1} parent=1 // pred_check
      _
    $region35: #{tpu_custom_call.1} parent=1 // pred_check_branch
      %120 = sbr.rel (0) target = $region37
    $region36: #{tpu_custom_call.1} parent=1 // pred_region
      %s122 = ssub.s32 1024, 1024
      %123 = vsyncadd [#allocation16], %s122
      %s124 = sshll.u32 [#allocation17], 4
      %s125 = int_to_ptr.vmem [resolvable:$true] %s124
      %130 = dma.hbm_to_vmem [thread:$0]  %s8, 1024, %s125, [#allocation16], 128, 128, 8
    $region37: #{tpu_custom_call.1} parent=1 // pred_fallthru
      _
    // Predicated region
    $region38: #{tpu_custom_call.1} parent=1 // pred_check
      _
    $region39: #{tpu_custom_call.1} parent=1 // pred_check_branch
      %132 = sbr.rel (0) target = $region41
    $region40: #{tpu_custom_call.1} parent=1 // pred_region
      %s134 = ssub.s32 32, 32
      %135 = vsyncadd [#allocation19], %s134
      %s137 = sshll.u32 [#allocation18], 4
      %s138 = int_to_ptr.vmem [resolvable:$true] %s137
      %140 = dma.hbm_to_vmem [thread:$0]  %s9, 32, %s138, [#allocation19]
    $region41: #{tpu_custom_call.1} parent=1 // pred_fallthru
      _
    // Predicated region
    $region42: #{tpu_custom_call.1} parent=1 // pred_check
      _
    $region43: #{tpu_custom_call.1} parent=1 // pred_check_branch
      %142 = sbr.rel (0) target = $region45
    $region44: #{tpu_custom_call.1} parent=1 // pred_region
      %s144 = ssub.s32 64, 64
      %145 = vsyncadd [#allocation19], %s144
      %s147 = sshll.u32 [#allocation20], 4
      %s148 = int_to_ptr.vmem [resolvable:$true] %s147
      %150 = dma.hbm_to_vmem [thread:$0]  %s10, 64, %s148, [#allocation19]
    $region45: #{tpu_custom_call.1} parent=1 // pred_fallthru
      _
    // Predicated region
    $region46: #{tpu_custom_call.1} parent=1 // pred_check
      _
    $region47: #{tpu_custom_call.1} parent=1 // pred_check_branch
      %152 = sbr.rel (0) target = $region49
    $region48: #{tpu_custom_call.1} parent=1 // pred_region
      %153 = dma.done [#allocation4], 128
    $region49: #{tpu_custom_call.1} parent=1 // pred_fallthru
      _
    // Predicated region
    $region50: #{tpu_custom_call.1} parent=1 // pred_check
      _
    $region51: #{tpu_custom_call.1} parent=1 // pred_check_branch
      %155 = sbr.rel (0) target = $region53
    $region52: #{tpu_custom_call.1} parent=1 // pred_region
      %156 = dma.done [#allocation7], 128
    $region53: #{tpu_custom_call.1} parent=1 // pred_fallthru
      _
    // Predicated region
    $region54: #{tpu_custom_call.1} parent=1 // pred_check
      _
    $region55: #{tpu_custom_call.1} parent=1 // pred_check_branch
      %158 = sbr.rel (0) target = $region57
    $region56: #{tpu_custom_call.1} parent=1 // pred_region
      %159 = dma.done [#allocation7], 256
    $region57: #{tpu_custom_call.1} parent=1 // pred_fallthru
      _
    // Predicated region
    $region58: #{tpu_custom_call.1} parent=1 // pred_check
      _
    $region59: #{tpu_custom_call.1} parent=1 // pred_check_branch
      %161 = sbr.rel (0) target = $region61
    $region60: #{tpu_custom_call.1} parent=1 // pred_region
      %162 = dma.done [#allocation10], 128
    $region61: #{tpu_custom_call.1} parent=1 // pred_fallthru
      _
    // Predicated region
    $region62: #{tpu_custom_call.1} parent=1 // pred_check
      _
    $region63: #{tpu_custom_call.1} parent=1 // pred_check_branch
      %164 = sbr.rel (0) target = $region65
    $region64: #{tpu_custom_call.1} parent=1 // pred_region
      %165 = dma.done [#allocation10], 128
    $region65: #{tpu_custom_call.1} parent=1 // pred_fallthru
      _
    // Predicated region
    $region66: #{tpu_custom_call.1} parent=1 // pred_check
      _
    $region67: #{tpu_custom_call.1} parent=1 // pred_check_branch
      %167 = sbr.rel (0) target = $region69
    $region68: #{tpu_custom_call.1} parent=1 // pred_region
      %168 = dma.done [#allocation13], 1024
    $region69: #{tpu_custom_call.1} parent=1 // pred_fallthru
      _
    // Predicated region
    $region70: #{tpu_custom_call.1} parent=1 // pred_check
      _
    $region71: #{tpu_custom_call.1} parent=1 // pred_check_branch
      %170 = sbr.rel (0) target = $region73
    $region72: #{tpu_custom_call.1} parent=1 // pred_region
      %171 = dma.done [#allocation13], 1024
    $region73: #{tpu_custom_call.1} parent=1 // pred_fallthru
      _
    // Predicated region
    $region74: #{tpu_custom_call.1} parent=1 // pred_check
      _
    $region75: #{tpu_custom_call.1} parent=1 // pred_check_branch
      %173 = sbr.rel (0) target = $region77
    $region76: #{tpu_custom_call.1} parent=1 // pred_region
      %174 = dma.done [#allocation16], 1024
    $region77: #{tpu_custom_call.1} parent=1 // pred_fallthru
      _
    // Predicated region
    $region78: #{tpu_custom_call.1} parent=1 // pred_check
      _
    $region79: #{tpu_custom_call.1} parent=1 // pred_check_branch
      %176 = sbr.rel (0) target = $region81
    $region80: #{tpu_custom_call.1} parent=1 // pred_region
      %177 = dma.done [#allocation16], 1024
    $region81: #{tpu_custom_call.1} parent=1 // pred_fallthru
      _
    // Predicated region
    $region82: #{tpu_custom_call.1} parent=1 // pred_check
      _
    $region83: #{tpu_custom_call.1} parent=1 // pred_check_branch
      %179 = sbr.rel (0) target = $region85
    $region84: #{tpu_custom_call.1} parent=1 // pred_region
      %180 = dma.done [#allocation19], 32
    $region85: #{tpu_custom_call.1} parent=1 // pred_fallthru
      _
    // Predicated region
    $region86: #{tpu_custom_call.1} parent=1 // pred_check
      _
    $region87: #{tpu_custom_call.1} parent=1 // pred_check_branch
      %182 = sbr.rel (0) target = $region89
    $region88: #{tpu_custom_call.1} parent=1 // pred_region
      %183 = dma.done [#allocation19], 64
    $region89: #{tpu_custom_call.1} parent=1 // pred_fallthru
      _
    %v185 = vld [vmem:[#allocation6] sm:$0xf]
    %v186 = vld [vmem:[#allocation6 + $0x4] sm:$0xf]
    %v187 = vld [vmem:[#allocation3] sm:$0x3]
    %v188 = vld [vmem:[#allocation8] sm:$0xff]
    %v189 = vld [vmem:[#allocation8 + $0x8] sm:$0xff]
    %191 = vset.pattern.permute.xlu0 0
    %192 = vperm.xlu0 %191, %v188
    %v193 = vpop.permute.xlu0 %192
    %196 = vset.pattern.permute.xlu0 0
    %197 = vperm.xlu0 %196, %v189
    %v198 = vpop.permute.xlu0 %197
    %v202 = vunpack.c.l.b16 %v185
    %v203 = vunpack.c.l.b16 %v186
    %v204 = vpack.c.b16 %v203, %v202
    %vm205 = vcmask 31744
    %v207 = vsel %vm205, %v204, 0
    %vm209 = vcmask 1041408
    %v211 = vsel %vm209, %v187, 0
    %213 = vmatprep.subr.bf16.mxu0 0
    %214 = vmatpush1.bf16.msra.mxu0 %v211
    %215 = vmatprep.subr.bf16.mxu0 0
    %216 = vmatpush1.bf16.msra.mxu0 0
    %217 = vmatprep.subr.bf16.mxu0 0
    %218 = vmatpush1.bf16.msra.mxu0 0
    %219 = vmatprep.subr.bf16.mxu0 0
    %220 = vmatpush1.bf16.msra.mxu0 0
    %221 = vmatprep.subr.bf16.mxu0 0
    %222 = vmatpush1.bf16.msra.mxu0 0
    %223 = vmatprep.subr.bf16.mxu0 0
    %224 = vmatpush1.bf16.msra.mxu0 0
    %225 = vmatprep.subr.bf16.mxu0 0
    %226 = vmatpush1.bf16.msra.mxu0 0
    %227 = vmatprep.subr.bf16.mxu0 0
    %228 = vmatpush1.bf16.msra.mxu0 0
    %229 = vmatprep.subr.bf16.mxu0 0
    %230 = vmatpush1.bf16.msra.mxu0 0
    %231 = vmatprep.subr.bf16.mxu0 0
    %232 = vmatpush1.bf16.msra.mxu0 0
    %233 = vmatprep.subr.bf16.mxu0 0
    %234 = vmatpush1.bf16.msra.mxu0 0
    %235 = vmatprep.subr.bf16.mxu0 0
    %236 = vmatpush1.bf16.msra.mxu0 0
    %237 = vmatprep.subr.bf16.mxu0 0
    %238 = vmatpush1.bf16.msra.mxu0 0
    %239 = vmatprep.subr.bf16.mxu0 0
    %240 = vmatpush1.bf16.msra.mxu0 0
    %241 = vmatprep.subr.bf16.mxu0 0
    %242 = vmatpush1.bf16.msra.mxu0 0
    %243 = vmatprep.subr.bf16.mxu0 0
    %244 = vmatpush1.bf16.msra.mxu0 0
    %245 = vmatprep.mubr.bf16.mxu0 0
    %246 = vmatmul.mubr.bf16.gmra.mrb[0].mxu0 %v207
    %v247 = vpop.f32.mrb[0].mxu0
    %v248 = vadd.f32 %v193, %v247
    %v249 = vpop.f32.mrb[0].mxu0
    %v250 = vpop.f32.mrb[0].mxu0
    %v251 = vadd.f32 %v198, %v250
    %v252 = vpop.f32.mrb[0].mxu0
    %253 = vdwg.mxu0
    %v254 = vmax.f32 %v248, 0.0
    %v255 = vmax.f32 %v251, 0.0
    %v256 = vpack.c.bf16 %v255, %v254
    %vm257 = vcmask 130048
    %258 = vst.msk [vmem:[#allocation2] sm:$0xff] %vm257, %v256
    %v259 = vld [vmem:[#allocation6] sm:$0xf]
    %v260 = vld [vmem:[#allocation6 + $0x4] sm:$0xf]
    %s261 = scalar_lea.vmem [#allocation3], 2
    %v262 = vld [vmem:[%s261] sm:$0x3]
    %v263 = vld [vmem:[#allocation8] sm:$0xff]
    %v264 = vld [vmem:[#allocation8 + $0x8] sm:$0xff]
    %266 = vset.pattern.permute.xlu0 0
    %267 = vperm.xlu0 %266, %v263
    %v268 = vpop.permute.xlu0 %267
    %271 = vset.pattern.permute.xlu0 0
    %272 = vperm.xlu0 %271, %v264
    %v273 = vpop.permute.xlu0 %272
    %v277 = vunpack.c.l.b16 %v259
    %v278 = vunpack.c.l.b16 %v260
    %v279 = vpack.c.b16 %v278, %v277
    %v281 = vsel %vm205, %v279, 0
    %v284 = vsel %vm209, %v262, 0
    %286 = vmatprep.subr.bf16.mxu0 0
    %287 = vmatpush1.bf16.msra.mxu0 %v284
    %288 = vmatprep.subr.bf16.mxu0 0
    %289 = vmatpush1.bf16.msra.mxu0 0
    %290 = vmatprep.subr.bf16.mxu0 0
    %291 = vmatpush1.bf16.msra.mxu0 0
    %292 = vmatprep.subr.bf16.mxu0 0
    %293 = vmatpush1.bf16.msra.mxu0 0
    %294 = vmatprep.subr.bf16.mxu0 0
    %295 = vmatpush1.bf16.msra.mxu0 0
    %296 = vmatprep.subr.bf16.mxu0 0
    %297 = vmatpush1.bf16.msra.mxu0 0
    %298 = vmatprep.subr.bf16.mxu0 0
    %299 = vmatpush1.bf16.msra.mxu0 0
    %300 = vmatprep.subr.bf16.mxu0 0
    %301 = vmatpush1.bf16.msra.mxu0 0
    %302 = vmatprep.subr.bf16.mxu0 0
    %303 = vmatpush1.bf16.msra.mxu0 0
    %304 = vmatprep.subr.bf16.mxu0 0
    %305 = vmatpush1.bf16.msra.mxu0 0
    %306 = vmatprep.subr.bf16.mxu0 0
    %307 = vmatpush1.bf16.msra.mxu0 0
    %308 = vmatprep.subr.bf16.mxu0 0
    %309 = vmatpush1.bf16.msra.mxu0 0
    %310 = vmatprep.subr.bf16.mxu0 0
    %311 = vmatpush1.bf16.msra.mxu0 0
    %312 = vmatprep.subr.bf16.mxu0 0
    %313 = vmatpush1.bf16.msra.mxu0 0
    %314 = vmatprep.subr.bf16.mxu0 0
    %315 = vmatpush1.bf16.msra.mxu0 0
    %316 = vmatprep.subr.bf16.mxu0 0
    %317 = vmatpush1.bf16.msra.mxu0 0
    %318 = vmatprep.mubr.bf16.mxu0 0
    %319 = vmatmul.mubr.bf16.gmra.mrb[0].mxu0 %v281
    %v320 = vpop.f32.mrb[0].mxu0
    %v321 = vadd.f32 %v268, %v320
    %v322 = vpop.f32.mrb[0].mxu0
    %v323 = vpop.f32.mrb[0].mxu0
    %v324 = vadd.f32 %v273, %v323
    %v325 = vpop.f32.mrb[0].mxu0
    %326 = vdwg.mxu0
    %v327 = vmax.f32 %v321, 0.0
    %v328 = vmax.f32 %v324, 0.0
    %v329 = vpack.c.bf16 %v328, %v327
    %330 = vst.msk [vmem:[#allocation2 + $0x8] sm:$0xff] %vm257, %v329
    %v331 = vld [vmem:[#allocation6] sm:$0xf]
    %v332 = vld [vmem:[#allocation6 + $0x4] sm:$0xf]
    %s333 = scalar_lea.vmem [#allocation3], 4
    %v334 = vld [vmem:[%s333] sm:$0x3]
    %v335 = vld [vmem:[#allocation8] sm:$0xff]
    %v336 = vld [vmem:[#allocation8 + $0x8] sm:$0xff]
    %338 = vset.pattern.permute.xlu0 0
    %339 = vperm.xlu0 %338, %v335
    %v340 = vpop.permute.xlu0 %339
    %343 = vset.pattern.permute.xlu0 0
    %344 = vperm.xlu0 %343, %v336
    %v345 = vpop.permute.xlu0 %344
    %v349 = vunpack.c.l.b16 %v331
    %v350 = vunpack.c.l.b16 %v332
    %v351 = vpack.c.b16 %v350, %v349
    %v353 = vsel %vm205, %v351, 0
    %v356 = vsel %vm209, %v334, 0
    %358 = vmatprep.subr.bf16.mxu0 0
    %359 = vmatpush1.bf16.msra.mxu0 %v356
    %360 = vmatprep.subr.bf16.mxu0 0
    %361 = vmatpush1.bf16.msra.mxu0 0
    %362 = vmatprep.subr.bf16.mxu0 0
    %363 = vmatpush1.bf16.msra.mxu0 0
    %364 = vmatprep.subr.bf16.mxu0 0
    %365 = vmatpush1.bf16.msra.mxu0 0
    %366 = vmatprep.subr.bf16.mxu0 0
    %367 = vmatpush1.bf16.msra.mxu0 0
    %368 = vmatprep.subr.bf16.mxu0 0
    %369 = vmatpush1.bf16.msra.mxu0 0
    %370 = vmatprep.subr.bf16.mxu0 0
    %371 = vmatpush1.bf16.msra.mxu0 0
    %372 = vmatprep.subr.bf16.mxu0 0
    %373 = vmatpush1.bf16.msra.mxu0 0
    %374 = vmatprep.subr.bf16.mxu0 0
    %375 = vmatpush1.bf16.msra.mxu0 0
    %376 = vmatprep.subr.bf16.mxu0 0
    %377 = vmatpush1.bf16.msra.mxu0 0
    %378 = vmatprep.subr.bf16.mxu0 0
    %379 = vmatpush1.bf16.msra.mxu0 0
    %380 = vmatprep.subr.bf16.mxu0 0
    %381 = vmatpush1.bf16.msra.mxu0 0
    %382 = vmatprep.subr.bf16.mxu0 0
    %383 = vmatpush1.bf16.msra.mxu0 0
    %384 = vmatprep.subr.bf16.mxu0 0
    %385 = vmatpush1.bf16.msra.mxu0 0
    %386 = vmatprep.subr.bf16.mxu0 0
    %387 = vmatpush1.bf16.msra.mxu0 0
    %388 = vmatprep.subr.bf16.mxu0 0
    %389 = vmatpush1.bf16.msra.mxu0 0
    %390 = vmatprep.mubr.bf16.mxu0 0
    %391 = vmatmul.mubr.bf16.gmra.mrb[0].mxu0 %v353
    %v392 = vpop.f32.mrb[0].mxu0
    %v393 = vadd.f32 %v340, %v392
    %v394 = vpop.f32.mrb[0].mxu0
    %v395 = vpop.f32.mrb[0].mxu0
    %v396 = vadd.f32 %v345, %v395
    %v397 = vpop.f32.mrb[0].mxu0
    %398 = vdwg.mxu0
    %v399 = vmax.f32 %v393, 0.0
    %v400 = vmax.f32 %v396, 0.0
    %v401 = vpack.c.bf16 %v400, %v399
    %402 = vst.msk [vmem:[#allocation2 + $0x10] sm:$0xff] %vm257, %v401
    %v403 = vld [vmem:[#allocation6] sm:$0xf]
    %v404 = vld [vmem:[#allocation6 + $0x4] sm:$0xf]
    %s405 = scalar_lea.vmem [#allocation3], 6
    %v406 = vld [vmem:[%s405] sm:$0x3]
    %v407 = vld [vmem:[#allocation8] sm:$0xff]
    %v408 = vld [vmem:[#allocation8 + $0x8] sm:$0xff]
    %410 = vset.pattern.permute.xlu0 0
    %411 = vperm.xlu0 %410, %v407
    %v412 = vpop.permute.xlu0 %411
    %415 = vset.pattern.permute.xlu0 0
    %416 = vperm.xlu0 %415, %v408
    %v417 = vpop.permute.xlu0 %416
    %v421 = vunpack.c.l.b16 %v403
    %v422 = vunpack.c.l.b16 %v404
    %v423 = vpack.c.b16 %v422, %v421
    %v425 = vsel %vm205, %v423, 0
    %v428 = vsel %vm209, %v406, 0
    %430 = vmatprep.subr.bf16.mxu0 0
    %431 = vmatpush1.bf16.msra.mxu0 %v428
    %432 = vmatprep.subr.bf16.mxu0 0
    %433 = vmatpush1.bf16.msra.mxu0 0
    %434 = vmatprep.subr.bf16.mxu0 0
    %435 = vmatpush1.bf16.msra.mxu0 0
    %436 = vmatprep.subr.bf16.mxu0 0
    %437 = vmatpush1.bf16.msra.mxu0 0
    %438 = vmatprep.subr.bf16.mxu0 0
    %439 = vmatpush1.bf16.msra.mxu0 0
    %440 = vmatprep.subr.bf16.mxu0 0
    %441 = vmatpush1.bf16.msra.mxu0 0
    %442 = vmatprep.subr.bf16.mxu0 0
    %443 = vmatpush1.bf16.msra.mxu0 0
    %444 = vmatprep.subr.bf16.mxu0 0
    %445 = vmatpush1.bf16.msra.mxu0 0
    %446 = vmatprep.subr.bf16.mxu0 0
    %447 = vmatpush1.bf16.msra.mxu0 0
    %448 = vmatprep.subr.bf16.mxu0 0
    %449 = vmatpush1.bf16.msra.mxu0 0
    %450 = vmatprep.subr.bf16.mxu0 0
    %451 = vmatpush1.bf16.msra.mxu0 0
    %452 = vmatprep.subr.bf16.mxu0 0
    %453 = vmatpush1.bf16.msra.mxu0 0
    %454 = vmatprep.subr.bf16.mxu0 0
    %455 = vmatpush1.bf16.msra.mxu0 0
    %456 = vmatprep.subr.bf16.mxu0 0
    %457 = vmatpush1.bf16.msra.mxu0 0
    %458 = vmatprep.subr.bf16.mxu0 0
    %459 = vmatpush1.bf16.msra.mxu0 0
    %460 = vmatprep.subr.bf16.mxu0 0
    %461 = vmatpush1.bf16.msra.mxu0 0
    %462 = vmatprep.mubr.bf16.mxu0 0
    %463 = vmatmul.mubr.bf16.gmra.mrb[0].mxu0 %v425
    %v464 = vpop.f32.mrb[0].mxu0
    %v465 = vadd.f32 %v412, %v464
    %v466 = vpop.f32.mrb[0].mxu0
    %v467 = vpop.f32.mrb[0].mxu0
    %v468 = vadd.f32 %v417, %v467
    %v469 = vpop.f32.mrb[0].mxu0
    %470 = vdwg.mxu0
    %v471 = vmax.f32 %v465, 0.0
    %v472 = vmax.f32 %v468, 0.0
    %v473 = vpack.c.bf16 %v472, %v471
    %474 = vst.msk [vmem:[#allocation2 + $0x18] sm:$0xff] %vm257, %v473
    %v475 = vld [vmem:[#allocation2] sm:$0xff]
    %v476 = vld [vmem:[#allocation2 + $0x8] sm:$0xff]
    %v477 = vld [vmem:[#allocation2 + $0x10] sm:$0xff]
    %v478 = vld [vmem:[#allocation2 + $0x18] sm:$0xff]
    %v479 = vld [vmem:[#allocation9] sm:$0xf]
    %v480 = vld [vmem:[#allocation9 + $0x4] sm:$0xf]
    %v481 = vld [vmem:[#allocation11] sm:$0xf]
    %v482 = vld [vmem:[#allocation11 + $0x4] sm:$0xf]
    %v485 = vunpack.c.l.b16 %v479
    %v486 = vunpack.c.l.b16 %v480
    %v487 = vpack.c.b16 %v486, %v485
    %v490 = vsel %vm257, %v475, 0
    %v493 = vsel %vm257, %v476, 0
    %v496 = vsel %vm257, %v477, 0
    %v499 = vsel %vm257, %v478, 0
    %501 = vmatprep.subr.bf16.mxu0 0
    %502 = vmatpush1.bf16.msra.mxu0 %v487
    %503 = vmatprep.subr.bf16.mxu0 0
    %504 = vmatpush1.bf16.msra.mxu0 0
    %505 = vmatprep.subr.bf16.mxu0 0
    %506 = vmatpush1.bf16.msra.mxu0 0
    %507 = vmatprep.subr.bf16.mxu0 0
    %508 = vmatpush1.bf16.msra.mxu0 0
    %509 = vmatprep.subr.bf16.mxu0 0
    %510 = vmatpush1.bf16.msra.mxu0 0
    %511 = vmatprep.subr.bf16.mxu0 0
    %512 = vmatpush1.bf16.msra.mxu0 0
    %513 = vmatprep.subr.bf16.mxu0 0
    %514 = vmatpush1.bf16.msra.mxu0 0
    %515 = vmatprep.subr.bf16.mxu0 0
    %516 = vmatpush1.bf16.msra.mxu0 0
    %517 = vmatprep.subr.bf16.mxu0 0
    %518 = vmatpush1.bf16.msra.mxu0 0
    %519 = vmatprep.subr.bf16.mxu0 0
    %520 = vmatpush1.bf16.msra.mxu0 0
    %521 = vmatprep.subr.bf16.mxu0 0
    %522 = vmatpush1.bf16.msra.mxu0 0
    %523 = vmatprep.subr.bf16.mxu0 0
    %524 = vmatpush1.bf16.msra.mxu0 0
    %525 = vmatprep.subr.bf16.mxu0 0
    %526 = vmatpush1.bf16.msra.mxu0 0
    %527 = vmatprep.subr.bf16.mxu0 0
    %528 = vmatpush1.bf16.msra.mxu0 0
    %529 = vmatprep.subr.bf16.mxu0 0
    %530 = vmatpush1.bf16.msra.mxu0 0
    %531 = vmatprep.subr.bf16.mxu0 0
    %532 = vmatpush1.bf16.msra.mxu0 0
    %533 = vmatprep.mubr.bf16.mxu0 0
    %534 = vmatmul.mubr.bf16.gmra.mrb[0].mxu0 %v490
    %v535 = vpop.f32.mrb[0].mxu0
    %v536 = vadd.f32 0.0, %v535
    %v537 = vpop.f32.mrb[0].mxu0
    %v538 = vpop.f32.mrb[0].mxu0
    %v539 = vadd.f32 0.0, %v538
    %v540 = vpop.f32.mrb[0].mxu0
    %541 = vmatprep.mubr.bf16.mxu0 0
    %542 = vmatmul.mubr.bf16.gmra.mrb[0].mxu0 %v493
    %v543 = vpop.f32.mrb[0].mxu0
    %v544 = vadd.f32 0.0, %v543
    %v545 = vpop.f32.mrb[0].mxu0
    %v546 = vpop.f32.mrb[0].mxu0
    %v547 = vadd.f32 0.0, %v546
    %v548 = vpop.f32.mrb[0].mxu0
    %549 = vmatprep.mubr.bf16.mxu0 0
    %550 = vmatmul.mubr.bf16.gmra.mrb[0].mxu0 %v496
    %v551 = vpop.f32.mrb[0].mxu0
    %v552 = vadd.f32 0.0, %v551
    %v553 = vpop.f32.mrb[0].mxu0
    %v554 = vpop.f32.mrb[0].mxu0
    %v555 = vadd.f32 0.0, %v554
    %v556 = vpop.f32.mrb[0].mxu0
    %557 = vmatprep.mubr.bf16.mxu0 0
    %558 = vmatmul.mubr.bf16.gmra.mrb[0].mxu0 %v499
    %v559 = vpop.f32.mrb[0].mxu0
    %v560 = vadd.f32 0.0, %v559
    %v561 = vpop.f32.mrb[0].mxu0
    %v562 = vpop.f32.mrb[0].mxu0
    %v563 = vadd.f32 0.0, %v562
    %v564 = vpop.f32.mrb[0].mxu0
    %565 = vdwg.mxu0
    %v568 = vunpack.c.l.b16 %v481
    %v569 = vunpack.c.l.b16 %v482
    %v570 = vpack.c.b16 %v569, %v568
    %572 = vmatprep.subr.bf16.mxu0 0
    %573 = vmatpush1.bf16.msra.mxu0 %v570
    %574 = vmatprep.subr.bf16.mxu0 0
    %575 = vmatpush1.bf16.msra.mxu0 0
    %576 = vmatprep.subr.bf16.mxu0 0
    %577 = vmatpush1.bf16.msra.mxu0 0
    %578 = vmatprep.subr.bf16.mxu0 0
    %579 = vmatpush1.bf16.msra.mxu0 0
    %580 = vmatprep.subr.bf16.mxu0 0
    %581 = vmatpush1.bf16.msra.mxu0 0
    %582 = vmatprep.subr.bf16.mxu0 0
    %583 = vmatpush1.bf16.msra.mxu0 0
    %584 = vmatprep.subr.bf16.mxu0 0
    %585 = vmatpush1.bf16.msra.mxu0 0
    %586 = vmatprep.subr.bf16.mxu0 0
    %587 = vmatpush1.bf16.msra.mxu0 0
    %588 = vmatprep.subr.bf16.mxu0 0
    %589 = vmatpush1.bf16.msra.mxu0 0
    %590 = vmatprep.subr.bf16.mxu0 0
    %591 = vmatpush1.bf16.msra.mxu0 0
    %592 = vmatprep.subr.bf16.mxu0 0
    %593 = vmatpush1.bf16.msra.mxu0 0
    %594 = vmatprep.subr.bf16.mxu0 0
    %595 = vmatpush1.bf16.msra.mxu0 0
    %596 = vmatprep.subr.bf16.mxu0 0
    %597 = vmatpush1.bf16.msra.mxu0 0
    %598 = vmatprep.subr.bf16.mxu0 0
    %599 = vmatpush1.bf16.msra.mxu0 0
    %600 = vmatprep.subr.bf16.mxu0 0
    %601 = vmatpush1.bf16.msra.mxu0 0
    %602 = vmatprep.subr.bf16.mxu0 0
    %603 = vmatpush1.bf16.msra.mxu0 0
    %604 = vmatprep.mubr.bf16.mxu0 0
    %605 = vmatmul.mubr.bf16.gmra.mrb[0].mxu0 %v490
    %v606 = vpop.f32.mrb[0].mxu0
    %v607 = vadd.f32 0.0, %v606
    %v608 = vpop.f32.mrb[0].mxu0
    %v609 = vpop.f32.mrb[0].mxu0
    %v610 = vadd.f32 0.0, %v609
    %v611 = vpop.f32.mrb[0].mxu0
    %612 = vmatprep.mubr.bf16.mxu0 0
    %613 = vmatmul.mubr.bf16.gmra.mrb[0].mxu0 %v493
    %v614 = vpop.f32.mrb[0].mxu0
    %v615 = vadd.f32 0.0, %v614
    %v616 = vpop.f32.mrb[0].mxu0
    %v617 = vpop.f32.mrb[0].mxu0
    %v618 = vadd.f32 0.0, %v617
    %v619 = vpop.f32.mrb[0].mxu0
    %620 = vmatprep.mubr.bf16.mxu0 0
    %621 = vmatmul.mubr.bf16.gmra.mrb[0].mxu0 %v496
    %v622 = vpop.f32.mrb[0].mxu0
    %v623 = vadd.f32 0.0, %v622
    %v624 = vpop.f32.mrb[0].mxu0
    %v625 = vpop.f32.mrb[0].mxu0
    %v626 = vadd.f32 0.0, %v625
    %v627 = vpop.f32.mrb[0].mxu0
    %628 = vmatprep.mubr.bf16.mxu0 0
    %629 = vmatmul.mubr.bf16.gmra.mrb[0].mxu0 %v499
    %v630 = vpop.f32.mrb[0].mxu0
    %v631 = vadd.f32 0.0, %v630
    %v632 = vpop.f32.mrb[0].mxu0
    %v633 = vpop.f32.mrb[0].mxu0
    %v634 = vadd.f32 0.0, %v633
    %v635 = vpop.f32.mrb[0].mxu0
    %636 = vdwg.mxu0
    %v637 = vld [vmem:[#allocation12] sm:$0xff]
    %v638 = vld [vmem:[#allocation12 + $0x8] sm:$0xff]
    %v639 = vld [vmem:[#allocation12 + $0x10] sm:$0xff]
    %v640 = vld [vmem:[#allocation12 + $0x18] sm:$0xff]
    %v641 = vld [vmem:[#allocation12 + $0x20] sm:$0xff]
    %v642 = vld [vmem:[#allocation12 + $0x28] sm:$0xff]
    %v643 = vld [vmem:[#allocation12 + $0x30] sm:$0xff]
    %v644 = vld [vmem:[#allocation12 + $0x38] sm:$0xff]
    %v645 = vld [vmem:[#allocation14] sm:$0xff]
    %v646 = vld [vmem:[#allocation14 + $0x8] sm:$0xff]
    %v647 = vld [vmem:[#allocation14 + $0x10] sm:$0xff]
    %v648 = vld [vmem:[#allocation14 + $0x18] sm:$0xff]
    %v649 = vld [vmem:[#allocation14 + $0x20] sm:$0xff]
    %v650 = vld [vmem:[#allocation14 + $0x28] sm:$0xff]
    %v651 = vld [vmem:[#allocation14 + $0x30] sm:$0xff]
    %v652 = vld [vmem:[#allocation14 + $0x38] sm:$0xff]
    %654 = vset.pattern.permute.xlu0 0
    %655 = vperm.xlu0 %654, %v637
    %v656 = vpop.permute.xlu0 %655
    %659 = vset.pattern.permute.xlu0 0
    %660 = vperm.xlu0 %659, %v638
    %v661 = vpop.permute.xlu0 %660
    %664 = vset.pattern.permute.xlu0 0
    %665 = vperm.xlu0 %664, %v639
    %v666 = vpop.permute.xlu0 %665
    %669 = vset.pattern.permute.xlu0 0
    %670 = vperm.xlu0 %669, %v640
    %v671 = vpop.permute.xlu0 %670
    %674 = vset.pattern.permute.xlu0 0
    %675 = vperm.xlu0 %674, %v641
    %v676 = vpop.permute.xlu0 %675
    %679 = vset.pattern.permute.xlu0 0
    %680 = vperm.xlu0 %679, %v642
    %v681 = vpop.permute.xlu0 %680
    %684 = vset.pattern.permute.xlu0 0
    %685 = vperm.xlu0 %684, %v643
    %v686 = vpop.permute.xlu0 %685
    %689 = vset.pattern.permute.xlu0 0
    %690 = vperm.xlu0 %689, %v644
    %v691 = vpop.permute.xlu0 %690
    %v693 = vmul.f32 %v536, %v656
    %v694 = vmul.f32 %v539, %v661
    %v695 = vmul.f32 %v544, %v666
    %v696 = vmul.f32 %v547, %v671
    %v697 = vmul.f32 %v552, %v676
    %v698 = vmul.f32 %v555, %v681
    %v699 = vmul.f32 %v560, %v686
    %v700 = vmul.f32 %v563, %v691
    %702 = vset.pattern.permute.xlu0 0
    %703 = vperm.xlu0 %702, %v645
    %v704 = vpop.permute.xlu0 %703
    %707 = vset.pattern.permute.xlu0 0
    %708 = vperm.xlu0 %707, %v646
    %v709 = vpop.permute.xlu0 %708
    %712 = vset.pattern.permute.xlu0 0
    %713 = vperm.xlu0 %712, %v647
    %v714 = vpop.permute.xlu0 %713
    %717 = vset.pattern.permute.xlu0 0
    %718 = vperm.xlu0 %717, %v648
    %v719 = vpop.permute.xlu0 %718
    %722 = vset.pattern.permute.xlu0 0
    %723 = vperm.xlu0 %722, %v649
    %v724 = vpop.permute.xlu0 %723
    %727 = vset.pattern.permute.xlu0 0
    %728 = vperm.xlu0 %727, %v650
    %v729 = vpop.permute.xlu0 %728
    %732 = vset.pattern.permute.xlu0 0
    %733 = vperm.xlu0 %732, %v651
    %v734 = vpop.permute.xlu0 %733
    %737 = vset.pattern.permute.xlu0 0
    %738 = vperm.xlu0 %737, %v652
    %v739 = vpop.permute.xlu0 %738
    %v741 = vmul.f32 %v607, %v704
    %v742 = vmul.f32 %v610, %v709
    %v743 = vmul.f32 %v615, %v714
    %v744 = vmul.f32 %v618, %v719
    %v745 = vmul.f32 %v623, %v724
    %v746 = vmul.f32 %v626, %v729
    %v747 = vmul.f32 %v631, %v734
    %v748 = vmul.f32 %v634, %v739
    %v749 = vsub.f32 %v693, %v741
    %v750 = vsub.f32 %v694, %v742
    %v751 = vsub.f32 %v695, %v743
    %v752 = vsub.f32 %v696, %v744
    %v753 = vsub.f32 %v697, %v745
    %v754 = vsub.f32 %v698, %v746
    %v755 = vsub.f32 %v699, %v747
    %v756 = vsub.f32 %v700, %v748
    %v757 = vld [vmem:[#allocation15] sm:$0xff]
    %v758 = vld [vmem:[#allocation15 + $0x8] sm:$0xff]
    %v759 = vld [vmem:[#allocation15 + $0x10] sm:$0xff]
    %v760 = vld [vmem:[#allocation15 + $0x18] sm:$0xff]
    %v761 = vld [vmem:[#allocation15 + $0x20] sm:$0xff]
    %v762 = vld [vmem:[#allocation15 + $0x28] sm:$0xff]
    %v763 = vld [vmem:[#allocation15 + $0x30] sm:$0xff]
    %v764 = vld [vmem:[#allocation15 + $0x38] sm:$0xff]
    %766 = vset.pattern.permute.xlu0 0
    %767 = vperm.xlu0 %766, %v757
    %v768 = vpop.permute.xlu0 %767
    %771 = vset.pattern.permute.xlu0 0
    %772 = vperm.xlu0 %771, %v758
    %v773 = vpop.permute.xlu0 %772
    %776 = vset.pattern.permute.xlu0 0
    %777 = vperm.xlu0 %776, %v759
    %v778 = vpop.permute.xlu0 %777
    %781 = vset.pattern.permute.xlu0 0
    %782 = vperm.xlu0 %781, %v760
    %v783 = vpop.permute.xlu0 %782
    %786 = vset.pattern.permute.xlu0 0
    %787 = vperm.xlu0 %786, %v761
    %v788 = vpop.permute.xlu0 %787
    %791 = vset.pattern.permute.xlu0 0
    %792 = vperm.xlu0 %791, %v762
    %v793 = vpop.permute.xlu0 %792
    %796 = vset.pattern.permute.xlu0 0
    %797 = vperm.xlu0 %796, %v763
    %v798 = vpop.permute.xlu0 %797
    %801 = vset.pattern.permute.xlu0 0
    %802 = vperm.xlu0 %801, %v764
    %v803 = vpop.permute.xlu0 %802
    %v805 = vadd.f32 %v749, %v768
    %v806 = vadd.f32 %v750, %v773
    %v807 = vadd.f32 %v751, %v778
    %v808 = vadd.f32 %v752, %v783
    %v809 = vadd.f32 %v753, %v788
    %v810 = vadd.f32 %v754, %v793
    %v811 = vadd.f32 %v755, %v798
    %v812 = vadd.f32 %v756, %v803
    %v813 = vmax.f32 %v805, 0.0
    %v814 = vmax.f32 %v806, 0.0
    %v815 = vmax.f32 %v807, 0.0
    %v816 = vmax.f32 %v808, 0.0
    %v817 = vmax.f32 %v809, 0.0
    %v818 = vmax.f32 %v810, 0.0
    %v819 = vmax.f32 %v811, 0.0
    %v820 = vmax.f32 %v812, 0.0
    %v821 = vpack.c.bf16 %v814, %v813
    %v822 = vpack.c.bf16 %v816, %v815
    %v823 = vpack.c.bf16 %v818, %v817
    %v824 = vpack.c.bf16 %v820, %v819
    %v825 = vmul.f32 %v607, %v656
    %v826 = vmul.f32 %v610, %v661
    %v827 = vmul.f32 %v615, %v666
    %v828 = vmul.f32 %v618, %v671
    %v829 = vmul.f32 %v623, %v676
    %v830 = vmul.f32 %v626, %v681
    %v831 = vmul.f32 %v631, %v686
    %v832 = vmul.f32 %v634, %v691
    %v833 = vmul.f32 %v536, %v704
    %v834 = vmul.f32 %v539, %v709
    %v835 = vmul.f32 %v544, %v714
    %v836 = vmul.f32 %v547, %v719
    %v837 = vmul.f32 %v552, %v724
    %v838 = vmul.f32 %v555, %v729
    %v839 = vmul.f32 %v560, %v734
    %v840 = vmul.f32 %v563, %v739
    %v841 = vadd.f32 %v825, %v833
    %v842 = vadd.f32 %v826, %v834
    %v843 = vadd.f32 %v827, %v835
    %v844 = vadd.f32 %v828, %v836
    %v845 = vadd.f32 %v829, %v837
    %v846 = vadd.f32 %v830, %v838
    %v847 = vadd.f32 %v831, %v839
    %v848 = vadd.f32 %v832, %v840
    %v849 = vld [vmem:[#allocation17] sm:$0xff]
    %v850 = vld [vmem:[#allocation17 + $0x8] sm:$0xff]
    %v851 = vld [vmem:[#allocation17 + $0x10] sm:$0xff]
    %v852 = vld [vmem:[#allocation17 + $0x18] sm:$0xff]
    %v853 = vld [vmem:[#allocation17 + $0x20] sm:$0xff]
    %v854 = vld [vmem:[#allocation17 + $0x28] sm:$0xff]
    %v855 = vld [vmem:[#allocation17 + $0x30] sm:$0xff]
    %v856 = vld [vmem:[#allocation17 + $0x38] sm:$0xff]
    %858 = vset.pattern.permute.xlu0 0
    %859 = vperm.xlu0 %858, %v849
    %v860 = vpop.permute.xlu0 %859
    %863 = vset.pattern.permute.xlu0 0
    %864 = vperm.xlu0 %863, %v850
    %v865 = vpop.permute.xlu0 %864
    %868 = vset.pattern.permute.xlu0 0
    %869 = vperm.xlu0 %868, %v851
    %v870 = vpop.permute.xlu0 %869
    %873 = vset.pattern.permute.xlu0 0
    %874 = vperm.xlu0 %873, %v852
    %v875 = vpop.permute.xlu0 %874
    %878 = vset.pattern.permute.xlu0 0
    %879 = vperm.xlu0 %878, %v853
    %v880 = vpop.permute.xlu0 %879
    %883 = vset.pattern.permute.xlu0 0
    %884 = vperm.xlu0 %883, %v854
    %v885 = vpop.permute.xlu0 %884
    %888 = vset.pattern.permute.xlu0 0
    %889 = vperm.xlu0 %888, %v855
    %v890 = vpop.permute.xlu0 %889
    %893 = vset.pattern.permute.xlu0 0
    %894 = vperm.xlu0 %893, %v856
    %v895 = vpop.permute.xlu0 %894
    %v897 = vadd.f32 %v841, %v860
    %v898 = vadd.f32 %v842, %v865
    %v899 = vadd.f32 %v843, %v870
    %v900 = vadd.f32 %v844, %v875
    %v901 = vadd.f32 %v845, %v880
    %v902 = vadd.f32 %v846, %v885
    %v903 = vadd.f32 %v847, %v890
    %v904 = vadd.f32 %v848, %v895
    %v905 = vmax.f32 %v897, 0.0
    %v906 = vmax.f32 %v898, 0.0
    %v907 = vmax.f32 %v899, 0.0
    %v908 = vmax.f32 %v900, 0.0
    %v909 = vmax.f32 %v901, 0.0
    %v910 = vmax.f32 %v902, 0.0
    %v911 = vmax.f32 %v903, 0.0
    %v912 = vmax.f32 %v904, 0.0
    %v913 = vpack.c.bf16 %v906, %v905
    %v914 = vpack.c.bf16 %v908, %v907
    %v915 = vpack.c.bf16 %v910, %v909
    %v916 = vpack.c.bf16 %v912, %v911
    %v918 = vsel %vm257, %v913, 0
    %v921 = vsel %vm257, %v914, 0
    %v924 = vsel %vm257, %v915, 0
    %v927 = vsel %vm257, %v916, 0
    %929 = vmatprep.subr.bf16.mxu0 0
    %930 = vmatpush1.bf16.msra.mxu0 %v570
    %931 = vmatprep.subr.bf16.mxu0 0
    %932 = vmatpush1.bf16.msra.mxu0 0
    %933 = vmatprep.subr.bf16.mxu0 0
    %934 = vmatpush1.bf16.msra.mxu0 0
    %935 = vmatprep.subr.bf16.mxu0 0
    %936 = vmatpush1.bf16.msra.mxu0 0
    %937 = vmatprep.subr.bf16.mxu0 0
    %938 = vmatpush1.bf16.msra.mxu0 0
    %939 = vmatprep.subr.bf16.mxu0 0
    %940 = vmatpush1.bf16.msra.mxu0 0
    %941 = vmatprep.subr.bf16.mxu0 0
    %942 = vmatpush1.bf16.msra.mxu0 0
    %943 = vmatprep.subr.bf16.mxu0 0
    %944 = vmatpush1.bf16.msra.mxu0 0
    %945 = vmatprep.subr.bf16.mxu0 0
    %946 = vmatpush1.bf16.msra.mxu0 0
    %947 = vmatprep.subr.bf16.mxu0 0
    %948 = vmatpush1.bf16.msra.mxu0 0
    %949 = vmatprep.subr.bf16.mxu0 0
    %950 = vmatpush1.bf16.msra.mxu0 0
    %951 = vmatprep.subr.bf16.mxu0 0
    %952 = vmatpush1.bf16.msra.mxu0 0
    %953 = vmatprep.subr.bf16.mxu0 0
    %954 = vmatpush1.bf16.msra.mxu0 0
    %955 = vmatprep.subr.bf16.mxu0 0
    %956 = vmatpush1.bf16.msra.mxu0 0
    %957 = vmatprep.subr.bf16.mxu0 0
    %958 = vmatpush1.bf16.msra.mxu0 0
    %959 = vmatprep.subr.bf16.mxu0 0
    %960 = vmatpush1.bf16.msra.mxu0 0
    %961 = vmatprep.mubr.bf16.mxu0 0
    %962 = vmatmul.mubr.bf16.gmra.mrb[0].mxu0 %v918
    %v963 = vpop.f32.mrb[0].mxu0
    %v964 = vadd.f32 0.0, %v963
    %v965 = vpop.f32.mrb[0].mxu0
    %v966 = vpop.f32.mrb[0].mxu0
    %v967 = vadd.f32 0.0, %v966
    %v968 = vpop.f32.mrb[0].mxu0
    %969 = vmatprep.mubr.bf16.mxu0 0
    %970 = vmatmul.mubr.bf16.gmra.mrb[0].mxu0 %v921
    %v971 = vpop.f32.mrb[0].mxu0
    %v972 = vadd.f32 0.0, %v971
    %v973 = vpop.f32.mrb[0].mxu0
    %v974 = vpop.f32.mrb[0].mxu0
    %v975 = vadd.f32 0.0, %v974
    %v976 = vpop.f32.mrb[0].mxu0
    %977 = vmatprep.mubr.bf16.mxu0 0
    %978 = vmatmul.mubr.bf16.gmra.mrb[0].mxu0 %v924
    %v979 = vpop.f32.mrb[0].mxu0
    %v980 = vadd.f32 0.0, %v979
    %v981 = vpop.f32.mrb[0].mxu0
    %v982 = vpop.f32.mrb[0].mxu0
    %v983 = vadd.f32 0.0, %v982
    %v984 = vpop.f32.mrb[0].mxu0
    %985 = vmatprep.mubr.bf16.mxu0 0
    %986 = vmatmul.mubr.bf16.gmra.mrb[0].mxu0 %v927
    %v987 = vpop.f32.mrb[0].mxu0
    %v988 = vadd.f32 0.0, %v987
    %v989 = vpop.f32.mrb[0].mxu0
    %v990 = vpop.f32.mrb[0].mxu0
    %v991 = vadd.f32 0.0, %v990
    %v992 = vpop.f32.mrb[0].mxu0
    %993 = vdwg.mxu0
    %v995 = vsel %vm257, %v821, 0
    %v998 = vsel %vm257, %v822, 0
    %v1001 = vsel %vm257, %v823, 0
    %v1004 = vsel %vm257, %v824, 0
    %1006 = vmatprep.subr.bf16.mxu0 0
    %1007 = vmatpush1.bf16.msra.mxu0 %v487
    %1008 = vmatprep.subr.bf16.mxu0 0
    %1009 = vmatpush1.bf16.msra.mxu0 0
    %1010 = vmatprep.subr.bf16.mxu0 0
    %1011 = vmatpush1.bf16.msra.mxu0 0
    %1012 = vmatprep.subr.bf16.mxu0 0
    %1013 = vmatpush1.bf16.msra.mxu0 0
    %1014 = vmatprep.subr.bf16.mxu0 0
    %1015 = vmatpush1.bf16.msra.mxu0 0
    %1016 = vmatprep.subr.bf16.mxu0 0
    %1017 = vmatpush1.bf16.msra.mxu0 0
    %1018 = vmatprep.subr.bf16.mxu0 0
    %1019 = vmatpush1.bf16.msra.mxu0 0
    %1020 = vmatprep.subr.bf16.mxu0 0
    %1021 = vmatpush1.bf16.msra.mxu0 0
    %1022 = vmatprep.subr.bf16.mxu0 0
    %1023 = vmatpush1.bf16.msra.mxu0 0
    %1024 = vmatprep.subr.bf16.mxu0 0
    %1025 = vmatpush1.bf16.msra.mxu0 0
    %1026 = vmatprep.subr.bf16.mxu0 0
    %1027 = vmatpush1.bf16.msra.mxu0 0
    %1028 = vmatprep.subr.bf16.mxu0 0
    %1029 = vmatpush1.bf16.msra.mxu0 0
    %1030 = vmatprep.subr.bf16.mxu0 0
    %1031 = vmatpush1.bf16.msra.mxu0 0
    %1032 = vmatprep.subr.bf16.mxu0 0
    %1033 = vmatpush1.bf16.msra.mxu0 0
    %1034 = vmatprep.subr.bf16.mxu0 0
    %1035 = vmatpush1.bf16.msra.mxu0 0
    %1036 = vmatprep.subr.bf16.mxu0 0
    %1037 = vmatpush1.bf16.msra.mxu0 0
    %1038 = vmatprep.mubr.bf16.mxu0 0
    %1039 = vmatmul.mubr.bf16.gmra.mrb[0].mxu0 %v995
    %v1040 = vpop.f32.mrb[0].mxu0
    %v1041 = vadd.f32 %v964, %v1040
    %v1042 = vpop.f32.mrb[0].mxu0
    %v1043 = vpop.f32.mrb[0].mxu0
    %v1044 = vadd.f32 %v967, %v1043
    %v1045 = vpop.f32.mrb[0].mxu0
    %1046 = vmatprep.mubr.bf16.mxu0 0
    %1047 = vmatmul.mubr.bf16.gmra.mrb[0].mxu0 %v998
    %v1048 = vpop.f32.mrb[0].mxu0
    %v1049 = vadd.f32 %v972, %v1048
    %v1050 = vpop.f32.mrb[0].mxu0
    %v1051 = vpop.f32.mrb[0].mxu0
    %v1052 = vadd.f32 %v975, %v1051
    %v1053 = vpop.f32.mrb[0].mxu0
    %1054 = vmatprep.mubr.bf16.mxu0 0
    %1055 = vmatmul.mubr.bf16.gmra.mrb[0].mxu0 %v1001
    %v1056 = vpop.f32.mrb[0].mxu0
    %v1057 = vadd.f32 %v980, %v1056
    %v1058 = vpop.f32.mrb[0].mxu0
    %v1059 = vpop.f32.mrb[0].mxu0
    %v1060 = vadd.f32 %v983, %v1059
    %v1061 = vpop.f32.mrb[0].mxu0
    %1062 = vmatprep.mubr.bf16.mxu0 0
    %1063 = vmatmul.mubr.bf16.gmra.mrb[0].mxu0 %v1004
    %v1064 = vpop.f32.mrb[0].mxu0
    %v1065 = vadd.f32 %v988, %v1064
    %v1066 = vpop.f32.mrb[0].mxu0
    %v1067 = vpop.f32.mrb[0].mxu0
    %v1068 = vadd.f32 %v991, %v1067
    %v1069 = vpop.f32.mrb[0].mxu0
    %1070 = vdwg.mxu0
    %v1071 = vpack.c.bf16 %v1044, %v1041
    %v1072 = vpack.c.bf16 %v1052, %v1049
    %v1073 = vpack.c.bf16 %v1060, %v1057
    %v1074 = vpack.c.bf16 %v1068, %v1065
    %v1075 = vld [vmem:[#allocation18] sm:$0x3]
    %v1076 = vld [vmem:[#allocation20] sm:$0xf]
    %1078 = vset.pattern.permute.xlu0 0
    %1079 = vperm.xlu0 %1078, %v1076
    %v1080 = vpop.permute.xlu0 %1079
    %v1083 = vsel %vm257, %v1075, 0
    %1085 = vmatprep.subr.bf16.mxu0 0
    %1086 = vmatpush1.bf16.msra.mxu0 %v1071
    %1087 = vmatprep.subr.bf16.mxu0 0
    %1088 = vmatpush1.bf16.msra.mxu0 0
    %1089 = vmatprep.subr.bf16.mxu0 0
    %1090 = vmatpush1.bf16.msra.mxu0 0
    %1091 = vmatprep.subr.bf16.mxu0 0
    %1092 = vmatpush1.bf16.msra.mxu0 0
    %1093 = vmatprep.subr.bf16.mxu0 0
    %1094 = vmatpush1.bf16.msra.mxu0 0
    %1095 = vmatprep.subr.bf16.mxu0 0
    %1096 = vmatpush1.bf16.msra.mxu0 0
    %1097 = vmatprep.subr.bf16.mxu0 0
    %1098 = vmatpush1.bf16.msra.mxu0 0
    %1099 = vmatprep.subr.bf16.mxu0 0
    %1100 = vmatpush1.bf16.msra.mxu0 0
    %1101 = vmatprep.subr.bf16.mxu0 0
    %1102 = vmatpush1.bf16.msra.mxu0 0
    %1103 = vmatprep.subr.bf16.mxu0 0
    %1104 = vmatpush1.bf16.msra.mxu0 0
    %1105 = vmatprep.subr.bf16.mxu0 0
    %1106 = vmatpush1.bf16.msra.mxu0 0
    %1107 = vmatprep.subr.bf16.mxu0 0
    %1108 = vmatpush1.bf16.msra.mxu0 0
    %1109 = vmatprep.subr.bf16.mxu0 0
    %1110 = vmatpush1.bf16.msra.mxu0 0
    %1111 = vmatprep.subr.bf16.mxu0 0
    %1112 = vmatpush1.bf16.msra.mxu0 0
    %1113 = vmatprep.subr.bf16.mxu0 0
    %1114 = vmatpush1.bf16.msra.mxu0 0
    %1115 = vmatprep.subr.bf16.mxu0 0
    %1116 = vmatpush1.bf16.msra.mxu0 0
    %1117 = vmatprep.mubr.bf16.mxu0 0
    %1118 = vmatmul.mubr.bf16.gmra.mrb[0].mxu0 %v1083
    %v1119 = vpop.f32.mrb[0].mxu0
    %v1120 = vadd.f32 %v1080, %v1119
    %v1121 = vpop.f32.mrb[0].mxu0
    %v1122 = vpop.f32.mrb[0].mxu0
    %v1123 = vpop.f32.mrb[0].mxu0
    %1124 = vdwg.mxu0
    %vm1125 = vcmask 125952
    %1126 = vst.msk [vmem:[#allocation21] sm:$0xf] %vm1125, %v1120
    %v1127 = vld [vmem:[#allocation18] sm:$0x3]
    %v1128 = vld [vmem:[#allocation20] sm:$0xf]
    %1130 = vset.pattern.permute.xlu0 0
    %1131 = vperm.xlu0 %1130, %v1128
    %v1132 = vpop.permute.xlu0 %1131
    %v1135 = vsel %vm257, %v1127, 0
    %1137 = vmatprep.subr.bf16.mxu0 0
    %1138 = vmatpush1.bf16.msra.mxu0 %v1072
    %1139 = vmatprep.subr.bf16.mxu0 0
    %1140 = vmatpush1.bf16.msra.mxu0 0
    %1141 = vmatprep.subr.bf16.mxu0 0
    %1142 = vmatpush1.bf16.msra.mxu0 0
    %1143 = vmatprep.subr.bf16.mxu0 0
    %1144 = vmatpush1.bf16.msra.mxu0 0
    %1145 = vmatprep.subr.bf16.mxu0 0
    %1146 = vmatpush1.bf16.msra.mxu0 0
    %1147 = vmatprep.subr.bf16.mxu0 0
    %1148 = vmatpush1.bf16.msra.mxu0 0
    %1149 = vmatprep.subr.bf16.mxu0 0
    %1150 = vmatpush1.bf16.msra.mxu0 0
    %1151 = vmatprep.subr.bf16.mxu0 0
    %1152 = vmatpush1.bf16.msra.mxu0 0
    %1153 = vmatprep.subr.bf16.mxu0 0
    %1154 = vmatpush1.bf16.msra.mxu0 0
    %1155 = vmatprep.subr.bf16.mxu0 0
    %1156 = vmatpush1.bf16.msra.mxu0 0
    %1157 = vmatprep.subr.bf16.mxu0 0
    %1158 = vmatpush1.bf16.msra.mxu0 0
    %1159 = vmatprep.subr.bf16.mxu0 0
    %1160 = vmatpush1.bf16.msra.mxu0 0
    %1161 = vmatprep.subr.bf16.mxu0 0
    %1162 = vmatpush1.bf16.msra.mxu0 0
    %1163 = vmatprep.subr.bf16.mxu0 0
    %1164 = vmatpush1.bf16.msra.mxu0 0
    %1165 = vmatprep.subr.bf16.mxu0 0
    %1166 = vmatpush1.bf16.msra.mxu0 0
    %1167 = vmatprep.subr.bf16.mxu0 0
    %1168 = vmatpush1.bf16.msra.mxu0 0
    %1169 = vmatprep.mubr.bf16.mxu0 0
    %1170 = vmatmul.mubr.bf16.gmra.mrb[0].mxu0 %v1135
    %v1171 = vpop.f32.mrb[0].mxu0
    %v1172 = vadd.f32 %v1132, %v1171
    %v1173 = vpop.f32.mrb[0].mxu0
    %v1174 = vpop.f32.mrb[0].mxu0
    %v1175 = vpop.f32.mrb[0].mxu0
    %1176 = vdwg.mxu0
    %s1177 = scalar_lea.vmem [#allocation21], 4
    %1178 = vst.msk [vmem:[%s1177] sm:$0xf] %vm1125, %v1172
    %v1179 = vld [vmem:[#allocation18] sm:$0x3]
    %v1180 = vld [vmem:[#allocation20] sm:$0xf]
    %1182 = vset.pattern.permute.xlu0 0
    %1183 = vperm.xlu0 %1182, %v1180
    %v1184 = vpop.permute.xlu0 %1183
    %v1187 = vsel %vm257, %v1179, 0
    %1189 = vmatprep.subr.bf16.mxu0 0
    %1190 = vmatpush1.bf16.msra.mxu0 %v1073
    %1191 = vmatprep.subr.bf16.mxu0 0
    %1192 = vmatpush1.bf16.msra.mxu0 0
    %1193 = vmatprep.subr.bf16.mxu0 0
    %1194 = vmatpush1.bf16.msra.mxu0 0
    %1195 = vmatprep.subr.bf16.mxu0 0
    %1196 = vmatpush1.bf16.msra.mxu0 0
    %1197 = vmatprep.subr.bf16.mxu0 0
    %1198 = vmatpush1.bf16.msra.mxu0 0
    %1199 = vmatprep.subr.bf16.mxu0 0
    %1200 = vmatpush1.bf16.msra.mxu0 0
    %1201 = vmatprep.subr.bf16.mxu0 0
    %1202 = vmatpush1.bf16.msra.mxu0 0
    %1203 = vmatprep.subr.bf16.mxu0 0
    %1204 = vmatpush1.bf16.msra.mxu0 0
    %1205 = vmatprep.subr.bf16.mxu0 0
    %1206 = vmatpush1.bf16.msra.mxu0 0
    %1207 = vmatprep.subr.bf16.mxu0 0
    %1208 = vmatpush1.bf16.msra.mxu0 0
    %1209 = vmatprep.subr.bf16.mxu0 0
    %1210 = vmatpush1.bf16.msra.mxu0 0
    %1211 = vmatprep.subr.bf16.mxu0 0
    %1212 = vmatpush1.bf16.msra.mxu0 0
    %1213 = vmatprep.subr.bf16.mxu0 0
    %1214 = vmatpush1.bf16.msra.mxu0 0
    %1215 = vmatprep.subr.bf16.mxu0 0
    %1216 = vmatpush1.bf16.msra.mxu0 0
    %1217 = vmatprep.subr.bf16.mxu0 0
    %1218 = vmatpush1.bf16.msra.mxu0 0
    %1219 = vmatprep.subr.bf16.mxu0 0
    %1220 = vmatpush1.bf16.msra.mxu0 0
    %1221 = vmatprep.mubr.bf16.mxu0 0
    %1222 = vmatmul.mubr.bf16.gmra.mrb[0].mxu0 %v1187
    %v1223 = vpop.f32.mrb[0].mxu0
    %v1224 = vadd.f32 %v1184, %v1223
    %v1225 = vpop.f32.mrb[0].mxu0
    %v1226 = vpop.f32.mrb[0].mxu0
    %v1227 = vpop.f32.mrb[0].mxu0
    %1228 = vdwg.mxu0
    %s1229 = scalar_lea.vmem [#allocation21], 8
    %1230 = vst.msk [vmem:[%s1229] sm:$0xf] %vm1125, %v1224
    %v1231 = vld [vmem:[#allocation18] sm:$0x3]
    %v1232 = vld [vmem:[#allocation20] sm:$0xf]
    %1234 = vset.pattern.permute.xlu0 0
    %1235 = vperm.xlu0 %1234, %v1232
    %v1236 = vpop.permute.xlu0 %1235
    %v1239 = vsel %vm257, %v1231, 0
    %1241 = vmatprep.subr.bf16.mxu0 0
    %1242 = vmatpush1.bf16.msra.mxu0 %v1074
    %1243 = vmatprep.subr.bf16.mxu0 0
    %1244 = vmatpush1.bf16.msra.mxu0 0
    %1245 = vmatprep.subr.bf16.mxu0 0
    %1246 = vmatpush1.bf16.msra.mxu0 0
    %1247 = vmatprep.subr.bf16.mxu0 0
    %1248 = vmatpush1.bf16.msra.mxu0 0
    %1249 = vmatprep.subr.bf16.mxu0 0
    %1250 = vmatpush1.bf16.msra.mxu0 0
    %1251 = vmatprep.subr.bf16.mxu0 0
    %1252 = vmatpush1.bf16.msra.mxu0 0
    %1253 = vmatprep.subr.bf16.mxu0 0
    %1254 = vmatpush1.bf16.msra.mxu0 0
    %1255 = vmatprep.subr.bf16.mxu0 0
    %1256 = vmatpush1.bf16.msra.mxu0 0
    %1257 = vmatprep.subr.bf16.mxu0 0
    %1258 = vmatpush1.bf16.msra.mxu0 0
    %1259 = vmatprep.subr.bf16.mxu0 0
    %1260 = vmatpush1.bf16.msra.mxu0 0
    %1261 = vmatprep.subr.bf16.mxu0 0
    %1262 = vmatpush1.bf16.msra.mxu0 0
    %1263 = vmatprep.subr.bf16.mxu0 0
    %1264 = vmatpush1.bf16.msra.mxu0 0
    %1265 = vmatprep.subr.bf16.mxu0 0
    %1266 = vmatpush1.bf16.msra.mxu0 0
    %1267 = vmatprep.subr.bf16.mxu0 0
    %1268 = vmatpush1.bf16.msra.mxu0 0
    %1269 = vmatprep.subr.bf16.mxu0 0
    %1270 = vmatpush1.bf16.msra.mxu0 0
    %1271 = vmatprep.subr.bf16.mxu0 0
    %1272 = vmatpush1.bf16.msra.mxu0 0
    %1273 = vmatprep.mubr.bf16.mxu0 0
    %1274 = vmatmul.mubr.bf16.gmra.mrb[0].mxu0 %v1239
    %v1275 = vpop.f32.mrb[0].mxu0
    %v1276 = vadd.f32 %v1236, %v1275
    %v1277 = vpop.f32.mrb[0].mxu0
    %v1278 = vpop.f32.mrb[0].mxu0
    %v1279 = vpop.f32.mrb[0].mxu0
    %1280 = vdwg.mxu0
    %s1281 = scalar_lea.vmem [#allocation21], 12
    %1282 = vst.msk [vmem:[%s1281] sm:$0xf] %vm1125, %v1276
    // Predicated region
    $region90: #{tpu_custom_call.1} parent=1 // pred_check
      _
    $region91: #{tpu_custom_call.1} parent=1 // pred_check_branch
      %1284 = sbr.rel (0) target = $region93
    $region92: #{tpu_custom_call.1} parent=1 // pred_region
      %s1286 = ssub.s32 256, 256
      %1287 = vsyncadd [#allocation5], %s1286
      %s1288 = sshll.u32 [#allocation21], 4
      %s1289 = int_to_ptr.vmem [resolvable:$true] %s1288
      %1294 = dma.vmem_to_hbm [thread:$0]  %s1289, 256, %s11, [#allocation5], 64, 64, 4
    $region93: #{tpu_custom_call.1} parent=1 // pred_fallthru
      _
    // Predicated region
    $region94: #{tpu_custom_call.1} parent=1 // pred_check
      _
    $region95: #{tpu_custom_call.1} parent=1 // pred_check_branch
      %1296 = sbr.rel (0) target = $region97
    $region96: #{tpu_custom_call.1} parent=1 // pred_region
      %1297 = dma.done [#allocation5], 256
    $region97: #{tpu_custom_call.1} parent=1 // pred_fallthru
      _
    %1298 = vsyncpa [#allocation4], 1
    %1299 = vsyncpa [#allocation7], 1
    %1300 = vsyncpa [#allocation10], 1
    %1301 = vsyncpa [#allocation13], 1
    %1302 = vsyncpa [#allocation16], 1
    %1303 = vsyncpa [#allocation19], 1
    %1304 = vsyncpa [#allocation5], 1

// kernel: tpu_custom_call.1
$region0: #{tpu_custom_call.1}
  #allocation0 [shape = 'u32[]', space=smem, size = 0x4, offset = 0x4, fixed_abs, tag = 'smem constant byte address 0x4 - core index']
  #allocation1 [shape = 'u32[144,128]{1,0:T(1,128)}', space=vmem, size = 0x12000, scoped, tag = 'internal scratch']
  #allocation2 [shape = 'bf16[64,16]{1,0:T(16,128)(2,1)}', space=vmem, size = 0x4000, scoped, tag = 'scratch operand']
  %s0 = inlined_call_operand.hbm [shape: bf16[4,4,16], index: 0, kind: input, shape index: {}]
  %s1 = inlined_call_operand.hbm [shape: bf16[16,4], index: 1, kind: input, shape index: {}]
  %s2 = inlined_call_operand.hbm [shape: f32[16,1], index: 2, kind: input, shape index: {}]
  %s3 = inlined_call_operand.hbm [shape: bf16[16,16], index: 3, kind: input, shape index: {}]
  %s4 = inlined_call_operand.hbm [shape: bf16[16,16], index: 4, kind: input, shape index: {}]
  %s5 = inlined_call_operand.hbm [shape: f32[64,1], index: 5, kind: input, shape index: {}]
  %s6 = inlined_call_operand.hbm [shape: f32[64,1], index: 6, kind: input, shape index: {}]
  %s7 = inlined_call_operand.hbm [shape: f32[64,1], index: 7, kind: input, shape index: {}]
  %s8 = inlined_call_operand.hbm [shape: f32[64,1], index: 8, kind: input, shape index: {}]
  %s9 = inlined_call_operand.hbm [shape: bf16[4,16], index: 9, kind: input, shape index: {}]
  %s10 = inlined_call_operand.hbm [shape: f32[4,1], index: 10, kind: input, shape index: {}]
  %s11 = inlined_call_operand.hbm [shape: f32[4,4,16], index: 11, kind: output, shape index: {}]
  %s12 = sld [smem:[#allocation0]]
  $region98: #{tpu_custom_call.1} parent=0
    _
  %s14 = ssub.s32 1, %s12
  %s15 = scalar_select 0, %s14, %s12
  $region1: #{tpu_custom_call.1} parent=0
    #allocation3 [shape = 'u8[4096]{0}', space=vmem, size = 0x1000, scoped, tag = 'input window, operand 0, single buffered']
    #allocation4 [shape = 's32[1]{0}', space=sflag, size = 0x4, scoped, tag = 'scoped memory for tpu_custom_call.1']
    #allocation5 [shape = 's32[1]{0}', space=sflag, size = 0x4, scoped, tag = 'scoped memory for tpu_custom_call.1']
    #allocation6 [shape = 'u8[4096]{0}', space=vmem, size = 0x1000, scoped, tag = 'input window, operand 1, single buffered']
    #allocation7 [shape = 's32[1]{0}', space=sflag, size = 0x4, scoped, tag = 'scoped memory for tpu_custom_call.1']
    #allocation8 [shape = 'u8[8192]{0}', space=vmem, size = 0x2000, scoped, tag = 'input window, operand 2, single buffered']
    #allocation9 [shape = 'u8[4096]{0}', space=vmem, size = 0x1000, scoped, tag = 'input window, operand 3, single buffered']
    #allocation10 [shape = 's32[1]{0}', space=sflag, size = 0x4, scoped, tag = 'scoped memory for tpu_custom_call.1']
    #allocation11 [shape = 'u8[4096]{0}', space=vmem, size = 0x1000, scoped, tag = 'input window, operand 4, single buffered']
    #allocation12 [shape = 'u8[32768]{0}', space=vmem, size = 0x8000, scoped, tag = 'input window, operand 5, single buffered']
    #allocation13 [shape = 's32[1]{0}', space=sflag, size = 0x4, scoped, tag = 'scoped memory for tpu_custom_call.1']
    #allocation14 [shape = 'u8[32768]{0}', space=vmem, size = 0x8000, scoped, tag = 'input window, operand 6, single buffered']
    #allocation15 [shape = 'u8[32768]{0}', space=vmem, size = 0x8000, scoped, tag = 'input window, operand 7, single buffered']
    #allocation16 [shape = 's32[1]{0}', space=sflag, size = 0x4, scoped, tag = 'scoped memory for tpu_custom_call.1']
    #allocation17 [shape = 'u8[32768]{0}', space=vmem, size = 0x8000, scoped, tag = 'input window, operand 8, single buffered']
    #allocation18 [shape = 'u8[1024]{0}', space=vmem, size = 0x400, scoped, tag = 'input window, operand 9, single buffered']
    #allocation19 [shape = 's32[1]{0}', space=sflag, size = 0x4, scoped, tag = 'scoped memory for tpu_custom_call.1']
    #allocation20 [shape = 'u8[2048]{0}', space=vmem, size = 0x800, scoped, tag = 'input window, operand 10, single buffered']
    #allocation21 [shape = 'u8[8192]{0}', space=vmem, size = 0x2000, scoped, tag = 'output window, operand 0, single buffered']
    %16 = vsyncpa [#allocation4], 0
    %17 = vsyncpa [#allocation7], 0
    %18 = vsyncpa [#allocation10], 0
    %19 = vsyncpa [#allocation13], 0
    %20 = vsyncpa [#allocation16], 0
    %21 = vsyncpa [#allocation19], 0
    %22 = vsyncpa [#allocation5], 0
    // Predicated region
    $region2: #{tpu_custom_call.1} parent=1 // pred_check
      _
    $region3: #{tpu_custom_call.1} parent=1 // pred_check_branch
      %24 = sbr.rel (0) target = $region5
    $region4: #{tpu_custom_call.1} parent=1 // pred_region
      %s26 = ssub.s32 128, 128
      %27 = vsyncadd [#allocation4], %s26
      %s28 = sshll.u32 [#allocation3], 4
      %s29 = int_to_ptr.vmem [resolvable:$true] %s28
      %34 = dma.hbm_to_vmem [thread:$0]  %s0, 128, %s29, [#allocation4], 32, 32, 2
    $region5: #{tpu_custom_call.1} parent=1 // pred_fallthru
      _
    // Predicated region
    $region6: #{tpu_custom_call.1} parent=1 // pred_check
      _
    $region7: #{tpu_custom_call.1} parent=1 // pred_check_branch
      %36 = sbr.rel (0) target = $region9
    $region8: #{tpu_custom_call.1} parent=1 // pred_region
      %s38 = ssub.s32 128, 128
      %39 = vsyncadd [#allocation7], %s38
      %s40 = sshll.u32 [#allocation6], 4
      %s41 = int_to_ptr.vmem [resolvable:$true] %s40
      %46 = dma.hbm_to_vmem [thread:$0]  %s1, 128, %s41, [#allocation7], 64, 64, 4
    $region9: #{tpu_custom_call.1} parent=1 // pred_fallthru
      _
    // Predicated region
    $region10: #{tpu_custom_call.1} parent=1 // pred_check
      _
    $region11: #{tpu_custom_call.1} parent=1 // pred_check_branch
      %48 = sbr.rel (0) target = $region13
    $region12: #{tpu_custom_call.1} parent=1 // pred_region
      %s50 = ssub.s32 256, 256
      %51 = vsyncadd [#allocation7], %s50
      %s52 = sshll.u32 [#allocation8], 4
      %s53 = int_to_ptr.vmem [resolvable:$true] %s52
      %58 = dma.hbm_to_vmem [thread:$0]  %s2, 256, %s53, [#allocation7], 128, 128, 8
    $region13: #{tpu_custom_call.1} parent=1 // pred_fallthru
      _
    // Predicated region
    $region14: #{tpu_custom_call.1} parent=1 // pred_check
      _
    $region15: #{tpu_custom_call.1} parent=1 // pred_check_branch
      %60 = sbr.rel (0) target = $region17
    $region16: #{tpu_custom_call.1} parent=1 // pred_region
      %s62 = ssub.s32 128, 128
      %63 = vsyncadd [#allocation10], %s62
      %s64 = sshll.u32 [#allocation9], 4
      %s65 = int_to_ptr.vmem [resolvable:$true] %s64
      %70 = dma.hbm_to_vmem [thread:$0]  %s3, 128, %s65, [#allocation10], 64, 64, 4
    $region17: #{tpu_custom_call.1} parent=1 // pred_fallthru
      _
    // Predicated region
    $region18: #{tpu_custom_call.1} parent=1 // pred_check
      _
    $region19: #{tpu_custom_call.1} parent=1 // pred_check_branch
      %72 = sbr.rel (0) target = $region21
    $region20: #{tpu_custom_call.1} parent=1 // pred_region
      %s74 = ssub.s32 128, 128
      %75 = vsyncadd [#allocation10], %s74
      %s76 = sshll.u32 [#allocation11], 4
      %s77 = int_to_ptr.vmem [resolvable:$true] %s76
      %82 = dma.hbm_to_vmem [thread:$0]  %s4, 128, %s77, [#allocation10], 64, 64, 4
    $region21: #{tpu_custom_call.1} parent=1 // pred_fallthru
      _
    // Predicated region
    $region22: #{tpu_custom_call.1} parent=1 // pred_check
      _
    $region23: #{tpu_custom_call.1} parent=1 // pred_check_branch
      %84 = sbr.rel (0) target = $region25
    $region24: #{tpu_custom_call.1} parent=1 // pred_region
      %s86 = ssub.s32 1024, 1024
      %87 = vsyncadd [#allocation13], %s86
      %s88 = sshll.u32 [#allocation12], 4
      %s89 = int_to_ptr.vmem [resolvable:$true] %s88
      %94 = dma.hbm_to_vmem [thread:$0]  %s5, 1024, %s89, [#allocation13], 128, 128, 8
    $region25: #{tpu_custom_call.1} parent=1 // pred_fallthru
      _
    // Predicated region
    $region26: #{tpu_custom_call.1} parent=1 // pred_check
      _
    $region27: #{tpu_custom_call.1} parent=1 // pred_check_branch
      %96 = sbr.rel (0) target = $region29
    $region28: #{tpu_custom_call.1} parent=1 // pred_region
      %s98 = ssub.s32 1024, 1024
      %99 = vsyncadd [#allocation13], %s98
      %s100 = sshll.u32 [#allocation14], 4
      %s101 = int_to_ptr.vmem [resolvable:$true] %s100
      %106 = dma.hbm_to_vmem [thread:$0]  %s6, 1024, %s101, [#allocation13], 128, 128, 8
    $region29: #{tpu_custom_call.1} parent=1 // pred_fallthru
      _
    // Predicated region
    $region30: #{tpu_custom_call.1} parent=1 // pred_check
      _
    $region31: #{tpu_custom_call.1} parent=1 // pred_check_branch
      %108 = sbr.rel (0) target = $region33
    $region32: #{tpu_custom_call.1} parent=1 // pred_region
      %s110 = ssub.s32 1024, 1024
      %111 = vsyncadd [#allocation16], %s110
      %s112 = sshll.u32 [#allocation15], 4
      %s113 = int_to_ptr.vmem [resolvable:$true] %s112
      %118 = dma.hbm_to_vmem [thread:$0]  %s7, 1024, %s113, [#allocation16], 128, 128, 8
    $region33: #{tpu_custom_call.1} parent=1 // pred_fallthru
      _
    // Predicated region
    $region34: #{tpu_custom_call.1} parent=1 // pred_check
      _
    $region35: #{tpu_custom_call.1} parent=1 // pred_check_branch
      %120 = sbr.rel (0) target = $region37
    $region36: #{tpu_custom_call.1} parent=1 // pred_region
      %s122 = ssub.s32 1024, 1024
      %123 = vsyncadd [#allocation16], %s122
      %s124 = sshll.u32 [#allocation17], 4
      %s125 = int_to_ptr.vmem [resolvable:$true] %s124
      %130 = dma.hbm_to_vmem [thread:$0]  %s8, 1024, %s125, [#allocation16], 128, 128, 8
    $region37: #{tpu_custom_call.1} parent=1 // pred_fallthru
      _
    // Predicated region
    $region38: #{tpu_custom_call.1} parent=1 // pred_check
      _
    $region39: #{tpu_custom_call.1} parent=1 // pred_check_branch
      %132 = sbr.rel (0) target = $region41
    $region40: #{tpu_custom_call.1} parent=1 // pred_region
      %s134 = ssub.s32 32, 32
      %135 = vsyncadd [#allocation19], %s134
      %s137 = sshll.u32 [#allocation18], 4
      %s138 = int_to_ptr.vmem [resolvable:$true] %s137
      %140 = dma.hbm_to_vmem [thread:$0]  %s9, 32, %s138, [#allocation19]
    $region41: #{tpu_custom_call.1} parent=1 // pred_fallthru
      _
    // Predicated region
    $region42: #{tpu_custom_call.1} parent=1 // pred_check
      _
    $region43: #{tpu_custom_call.1} parent=1 // pred_check_branch
      %142 = sbr.rel (0) target = $region45
    $region44: #{tpu_custom_call.1} parent=1 // pred_region
      %s144 = ssub.s32 64, 64
      %145 = vsyncadd [#allocation19], %s144
      %s147 = sshll.u32 [#allocation20], 4
      %s148 = int_to_ptr.vmem [resolvable:$true] %s147
      %150 = dma.hbm_to_vmem [thread:$0]  %s10, 64, %s148, [#allocation19]
    $region45: #{tpu_custom_call.1} parent=1 // pred_fallthru
      _
    // Predicated region
    $region46: #{tpu_custom_call.1} parent=1 // pred_check
      _
    $region47: #{tpu_custom_call.1} parent=1 // pred_check_branch
      %152 = sbr.rel (0) target = $region49
    $region48: #{tpu_custom_call.1} parent=1 // pred_region
      %153 = dma.done [#allocation4], 128
    $region49: #{tpu_custom_call.1} parent=1 // pred_fallthru
      _
    // Predicated region
    $region50: #{tpu_custom_call.1} parent=1 // pred_check
      _
    $region51: #{tpu_custom_call.1} parent=1 // pred_check_branch
      %155 = sbr.rel (0) target = $region53
    $region52: #{tpu_custom_call.1} parent=1 // pred_region
      %156 = dma.done [#allocation7], 128
    $region53: #{tpu_custom_call.1} parent=1 // pred_fallthru
      _
    // Predicated region
    $region54: #{tpu_custom_call.1} parent=1 // pred_check
      _
    $region55: #{tpu_custom_call.1} parent=1 // pred_check_branch
      %158 = sbr.rel (0) target = $region57
    $region56: #{tpu_custom_call.1} parent=1 // pred_region
      %159 = dma.done [#allocation7], 256
    $region57: #{tpu_custom_call.1} parent=1 // pred_fallthru
      _
    // Predicated region
    $region58: #{tpu_custom_call.1} parent=1 // pred_check
      _
    $region59: #{tpu_custom_call.1} parent=1 // pred_check_branch
      %161 = sbr.rel (0) target = $region61
    $region60: #{tpu_custom_call.1} parent=1 // pred_region
      %162 = dma.done [#allocation10], 128
    $region61: #{tpu_custom_call.1} parent=1 // pred_fallthru
      _
    // Predicated region
    $region62: #{tpu_custom_call.1} parent=1 // pred_check
      _
    $region63: #{tpu_custom_call.1} parent=1 // pred_check_branch
      %164 = sbr.rel (0) target = $region65
    $region64: #{tpu_custom_call.1} parent=1 // pred_region
      %165 = dma.done [#allocation10], 128
    $region65: #{tpu_custom_call.1} parent=1 // pred_fallthru
      _
    // Predicated region
    $region66: #{tpu_custom_call.1} parent=1 // pred_check
      _
    $region67: #{tpu_custom_call.1} parent=1 // pred_check_branch
      %167 = sbr.rel (0) target = $region69
    $region68: #{tpu_custom_call.1} parent=1 // pred_region
      %168 = dma.done [#allocation13], 1024
    $region69: #{tpu_custom_call.1} parent=1 // pred_fallthru
      _
    // Predicated region
    $region70: #{tpu_custom_call.1} parent=1 // pred_check
      _
    $region71: #{tpu_custom_call.1} parent=1 // pred_check_branch
      %170 = sbr.rel (0) target = $region73
    $region72: #{tpu_custom_call.1} parent=1 // pred_region
      %171 = dma.done [#allocation13], 1024
    $region73: #{tpu_custom_call.1} parent=1 // pred_fallthru
      _
    // Predicated region
    $region74: #{tpu_custom_call.1} parent=1 // pred_check
      _
    $region75: #{tpu_custom_call.1} parent=1 // pred_check_branch
      %173 = sbr.rel (0) target = $region77
    $region76: #{tpu_custom_call.1} parent=1 // pred_region
      %174 = dma.done [#allocation16], 1024
    $region77: #{tpu_custom_call.1} parent=1 // pred_fallthru
      _
    // Predicated region
    $region78: #{tpu_custom_call.1} parent=1 // pred_check
      _
    $region79: #{tpu_custom_call.1} parent=1 // pred_check_branch
      %176 = sbr.rel (0) target = $region81
    $region80: #{tpu_custom_call.1} parent=1 // pred_region
      %177 = dma.done [#allocation16], 1024
    $region81: #{tpu_custom_call.1} parent=1 // pred_fallthru
      _
    // Predicated region
    $region82: #{tpu_custom_call.1} parent=1 // pred_check
      _
    $region83: #{tpu_custom_call.1} parent=1 // pred_check_branch
      %179 = sbr.rel (0) target = $region85
    $region84: #{tpu_custom_call.1} parent=1 // pred_region
      %180 = dma.done [#allocation19], 32
    $region85: #{tpu_custom_call.1} parent=1 // pred_fallthru
      _
    // Predicated region
    $region86: #{tpu_custom_call.1} parent=1 // pred_check
      _
    $region87: #{tpu_custom_call.1} parent=1 // pred_check_branch
      %182 = sbr.rel (0) target = $region89
    $region88: #{tpu_custom_call.1} parent=1 // pred_region
      %183 = dma.done [#allocation19], 64
    $region89: #{tpu_custom_call.1} parent=1 // pred_fallthru
      _
    %v185 = vld [vmem:[#allocation6] sm:$0xf]
    %v186 = vld [vmem:[#allocation6 + $0x4] sm:$0xf]
    %v187 = vld [vmem:[#allocation3] sm:$0x3]
    %v188 = vld [vmem:[#allocation8] sm:$0xff]
    %v189 = vld [vmem:[#allocation8 + $0x8] sm:$0xff]
    %191 = vset.pattern.permute.xlu0 0
    %192 = vperm.xlu0 %191, %v188
    %v193 = vpop.permute.xlu0 %192
    %196 = vset.pattern.permute.xlu0 0
    %197 = vperm.xlu0 %196, %v189
    %v198 = vpop.permute.xlu0 %197
    %v202 = vunpack.c.l.b16 %v185
    %v203 = vunpack.c.l.b16 %v186
    %v204 = vpack.c.b16 %v203, %v202
    %vm205 = vcmask 31744
    %v207 = vsel %vm205, %v204, 0
    %vm209 = vcmask 1041408
    %v211 = vsel %vm209, %v187, 0
    %213 = vmatprep.subr.bf16.mxu0 0
    %214 = vmatpush1.bf16.msra.mxu0 %v211
    %215 = vmatprep.subr.bf16.mxu0 0
    %216 = vmatpush1.bf16.msra.mxu0 0
    %217 = vmatprep.subr.bf16.mxu0 0
    %218 = vmatpush1.bf16.msra.mxu0 0
    %219 = vmatprep.subr.bf16.mxu0 0
    %220 = vmatpush1.bf16.msra.mxu0 0
    %221 = vmatprep.subr.bf16.mxu0 0
    %222 = vmatpush1.bf16.msra.mxu0 0
    %223 = vmatprep.subr.bf16.mxu0 0
    %224 = vmatpush1.bf16.msra.mxu0 0
    %225 = vmatprep.subr.bf16.mxu0 0
    %226 = vmatpush1.bf16.msra.mxu0 0
    %227 = vmatprep.subr.bf16.mxu0 0
    %228 = vmatpush1.bf16.msra.mxu0 0
    %229 = vmatprep.subr.bf16.mxu0 0
    %230 = vmatpush1.bf16.msra.mxu0 0
    %231 = vmatprep.subr.bf16.mxu0 0
    %232 = vmatpush1.bf16.msra.mxu0 0
    %233 = vmatprep.subr.bf16.mxu0 0
    %234 = vmatpush1.bf16.msra.mxu0 0
    %235 = vmatprep.subr.bf16.mxu0 0
    %236 = vmatpush1.bf16.msra.mxu0 0
    %237 = vmatprep.subr.bf16.mxu0 0
    %238 = vmatpush1.bf16.msra.mxu0 0
    %239 = vmatprep.subr.bf16.mxu0 0
    %240 = vmatpush1.bf16.msra.mxu0 0
    %241 = vmatprep.subr.bf16.mxu0 0
    %242 = vmatpush1.bf16.msra.mxu0 0
    %243 = vmatprep.subr.bf16.mxu0 0
    %244 = vmatpush1.bf16.msra.mxu0 0
    %245 = vmatprep.mubr.bf16.mxu0 0
    %246 = vmatmul.mubr.bf16.gmra.mrb[0].mxu0 %v207
    %v247 = vpop.f32.mrb[0].mxu0
    %v248 = vadd.f32 %v193, %v247
    %v249 = vpop.f32.mrb[0].mxu0
    %v250 = vpop.f32.mrb[0].mxu0
    %v251 = vadd.f32 %v198, %v250
    %v252 = vpop.f32.mrb[0].mxu0
    %253 = vdwg.mxu0
    %v254 = vmax.f32 %v248, 0.0
    %v255 = vmax.f32 %v251, 0.0
    %v256 = vpack.c.bf16 %v255, %v254
    %vm257 = vcmask 130048
    %258 = vst.msk [vmem:[#allocation2] sm:$0xff] %vm257, %v256
    %v259 = vld [vmem:[#allocation6] sm:$0xf]
    %v260 = vld [vmem:[#allocation6 + $0x4] sm:$0xf]
    %s261 = scalar_lea.vmem [#allocation3], 2
    %v262 = vld [vmem:[%s261] sm:$0x3]
    %v263 = vld [vmem:[#allocation8] sm:$0xff]
    %v264 = vld [vmem:[#allocation8 + $0x8] sm:$0xff]
    %266 = vset.pattern.permute.xlu0 0
    %267 = vperm.xlu0 %266, %v263
    %v268 = vpop.permute.xlu0 %267
    %271 = vset.pattern.permute.xlu0 0
    %272 = vperm.xlu0 %271, %v264
    %v273 = vpop.permute.xlu0 %272
    %v277 = vunpack.c.l.b16 %v259
    %v278 = vunpack.c.l.b16 %v260
    %v279 = vpack.c.b16 %v278, %v277
    %v281 = vsel %vm205, %v279, 0
    %v284 = vsel %vm209, %v262, 0
    %286 = vmatprep.subr.bf16.mxu0 0
    %287 = vmatpush1.bf16.msra.mxu0 %v284
    %288 = vmatprep.subr.bf16.mxu0 0
    %289 = vmatpush1.bf16.msra.mxu0 0
    %290 = vmatprep.subr.bf16.mxu0 0
    %291 = vmatpush1.bf16.msra.mxu0 0
    %292 = vmatprep.subr.bf16.mxu0 0
    %293 = vmatpush1.bf16.msra.mxu0 0
    %294 = vmatprep.subr.bf16.mxu0 0
    %295 = vmatpush1.bf16.msra.mxu0 0
    %296 = vmatprep.subr.bf16.mxu0 0
    %297 = vmatpush1.bf16.msra.mxu0 0
    %298 = vmatprep.subr.bf16.mxu0 0
    %299 = vmatpush1.bf16.msra.mxu0 0
    %300 = vmatprep.subr.bf16.mxu0 0
    %301 = vmatpush1.bf16.msra.mxu0 0
    %302 = vmatprep.subr.bf16.mxu0 0
    %303 = vmatpush1.bf16.msra.mxu0 0
    %304 = vmatprep.subr.bf16.mxu0 0
    %305 = vmatpush1.bf16.msra.mxu0 0
    %306 = vmatprep.subr.bf16.mxu0 0
    %307 = vmatpush1.bf16.msra.mxu0 0
    %308 = vmatprep.subr.bf16.mxu0 0
    %309 = vmatpush1.bf16.msra.mxu0 0
    %310 = vmatprep.subr.bf16.mxu0 0
    %311 = vmatpush1.bf16.msra.mxu0 0
    %312 = vmatprep.subr.bf16.mxu0 0
    %313 = vmatpush1.bf16.msra.mxu0 0
    %314 = vmatprep.subr.bf16.mxu0 0
    %315 = vmatpush1.bf16.msra.mxu0 0
    %316 = vmatprep.subr.bf16.mxu0 0
    %317 = vmatpush1.bf16.msra.mxu0 0
    %318 = vmatprep.mubr.bf16.mxu0 0
    %319 = vmatmul.mubr.bf16.gmra.mrb[0].mxu0 %v281
    %v320 = vpop.f32.mrb[0].mxu0
    %v321 = vadd.f32 %v268, %v320
    %v322 = vpop.f32.mrb[0].mxu0
    %v323 = vpop.f32.mrb[0].mxu0
    %v324 = vadd.f32 %v273, %v323
    %v325 = vpop.f32.mrb[0].mxu0
    %326 = vdwg.mxu0
    %v327 = vmax.f32 %v321, 0.0
    %v328 = vmax.f32 %v324, 0.0
    %v329 = vpack.c.bf16 %v328, %v327
    %330 = vst.msk [vmem:[#allocation2 + $0x8] sm:$0xff] %vm257, %v329
    %v331 = vld [vmem:[#allocation6] sm:$0xf]
    %v332 = vld [vmem:[#allocation6 + $0x4] sm:$0xf]
    %s333 = scalar_lea.vmem [#allocation3], 4
    %v334 = vld [vmem:[%s333] sm:$0x3]
    %v335 = vld [vmem:[#allocation8] sm:$0xff]
    %v336 = vld [vmem:[#allocation8 + $0x8] sm:$0xff]
    %338 = vset.pattern.permute.xlu0 0
    %339 = vperm.xlu0 %338, %v335
    %v340 = vpop.permute.xlu0 %339
    %343 = vset.pattern.permute.xlu0 0
    %344 = vperm.xlu0 %343, %v336
    %v345 = vpop.permute.xlu0 %344
    %v349 = vunpack.c.l.b16 %v331
    %v350 = vunpack.c.l.b16 %v332
    %v351 = vpack.c.b16 %v350, %v349
    %v353 = vsel %vm205, %v351, 0
    %v356 = vsel %vm209, %v334, 0
    %358 = vmatprep.subr.bf16.mxu0 0
    %359 = vmatpush1.bf16.msra.mxu0 %v356
    %360 = vmatprep.subr.bf16.mxu0 0
    %361 = vmatpush1.bf16.msra.mxu0 0
    %362 = vmatprep.subr.bf16.mxu0 0
    %363 = vmatpush1.bf16.msra.mxu0 0
    %364 = vmatprep.subr.bf16.mxu0 0
    %365 = vmatpush1.bf16.msra.mxu0 0
    %366 = vmatprep.subr.bf16.mxu0 0
    %367 = vmatpush1.bf16.msra.mxu0 0
    %368 = vmatprep.subr.bf16.mxu0 0
    %369 = vmatpush1.bf16.msra.mxu0 0
    %370 = vmatprep.subr.bf16.mxu0 0
    %371 = vmatpush1.bf16.msra.mxu0 0
    %372 = vmatprep.subr.bf16.mxu0 0
    %373 = vmatpush1.bf16.msra.mxu0 0
    %374 = vmatprep.subr.bf16.mxu0 0
    %375 = vmatpush1.bf16.msra.mxu0 0
    %376 = vmatprep.subr.bf16.mxu0 0
    %377 = vmatpush1.bf16.msra.mxu0 0
    %378 = vmatprep.subr.bf16.mxu0 0
    %379 = vmatpush1.bf16.msra.mxu0 0
    %380 = vmatprep.subr.bf16.mxu0 0
    %381 = vmatpush1.bf16.msra.mxu0 0
    %382 = vmatprep.subr.bf16.mxu0 0
    %383 = vmatpush1.bf16.msra.mxu0 0
    %384 = vmatprep.subr.bf16.mxu0 0
    %385 = vmatpush1.bf16.msra.mxu0 0
    %386 = vmatprep.subr.bf16.mxu0 0
    %387 = vmatpush1.bf16.msra.mxu0 0
    %388 = vmatprep.subr.bf16.mxu0 0
    %389 = vmatpush1.bf16.msra.mxu0 0
    %390 = vmatprep.mubr.bf16.mxu0 0
    %391 = vmatmul.mubr.bf16.gmra.mrb[0].mxu0 %v353
    %v392 = vpop.f32.mrb[0].mxu0
    %v393 = vadd.f32 %v340, %v392
    %v394 = vpop.f32.mrb[0].mxu0
    %v395 = vpop.f32.mrb[0].mxu0
    %v396 = vadd.f32 %v345, %v395
    %v397 = vpop.f32.mrb[0].mxu0
    %398 = vdwg.mxu0
    %v399 = vmax.f32 %v393, 0.0
    %v400 = vmax.f32 %v396, 0.0
    %v401 = vpack.c.bf16 %v400, %v399
    %402 = vst.msk [vmem:[#allocation2 + $0x10] sm:$0xff] %vm257, %v401
    %v403 = vld [vmem:[#allocation6] sm:$0xf]
    %v404 = vld [vmem:[#allocation6 + $0x4] sm:$0xf]
    %s405 = scalar_lea.vmem [#allocation3], 6
    %v406 = vld [vmem:[%s405] sm:$0x3]
    %v407 = vld [vmem:[#allocation8] sm:$0xff]
    %v408 = vld [vmem:[#allocation8 + $0x8] sm:$0xff]
    %410 = vset.pattern.permute.xlu0 0
    %411 = vperm.xlu0 %410, %v407
    %v412 = vpop.permute.xlu0 %411
    %415 = vset.pattern.permute.xlu0 0
    %416 = vperm.xlu0 %415, %v408
    %v417 = vpop.permute.xlu0 %416
    %v421 = vunpack.c.l.b16 %v403
    %v422 = vunpack.c.l.b16 %v404
    %v423 = vpack.c.b16 %v422, %v421
    %v425 = vsel %vm205, %v423, 0
    %v428 = vsel %vm209, %v406, 0
    %430 = vmatprep.subr.bf16.mxu0 0
    %431 = vmatpush1.bf16.msra.mxu0 %v428
    %432 = vmatprep.subr.bf16.mxu0 0
    %433 = vmatpush1.bf16.msra.mxu0 0
    %434 = vmatprep.subr.bf16.mxu0 0
    %435 = vmatpush1.bf16.msra.mxu0 0
    %436 = vmatprep.subr.bf16.mxu0 0
    %437 = vmatpush1.bf16.msra.mxu0 0
    %438 = vmatprep.subr.bf16.mxu0 0
    %439 = vmatpush1.bf16.msra.mxu0 0
    %440 = vmatprep.subr.bf16.mxu0 0
    %441 = vmatpush1.bf16.msra.mxu0 0
    %442 = vmatprep.subr.bf16.mxu0 0
    %443 = vmatpush1.bf16.msra.mxu0 0
    %444 = vmatprep.subr.bf16.mxu0 0
    %445 = vmatpush1.bf16.msra.mxu0 0
    %446 = vmatprep.subr.bf16.mxu0 0
    %447 = vmatpush1.bf16.msra.mxu0 0
    %448 = vmatprep.subr.bf16.mxu0 0
    %449 = vmatpush1.bf16.msra.mxu0 0
    %450 = vmatprep.subr.bf16.mxu0 0
    %451 = vmatpush1.bf16.msra.mxu0 0
    %452 = vmatprep.subr.bf16.mxu0 0
    %453 = vmatpush1.bf16.msra.mxu0 0
    %454 = vmatprep.subr.bf16.mxu0 0
    %455 = vmatpush1.bf16.msra.mxu0 0
    %456 = vmatprep.subr.bf16.mxu0 0
    %457 = vmatpush1.bf16.msra.mxu0 0
    %458 = vmatprep.subr.bf16.mxu0 0
    %459 = vmatpush1.bf16.msra.mxu0 0
    %460 = vmatprep.subr.bf16.mxu0 0
    %461 = vmatpush1.bf16.msra.mxu0 0
    %462 = vmatprep.mubr.bf16.mxu0 0
    %463 = vmatmul.mubr.bf16.gmra.mrb[0].mxu0 %v425
    %v464 = vpop.f32.mrb[0].mxu0
    %v465 = vadd.f32 %v412, %v464
    %v466 = vpop.f32.mrb[0].mxu0
    %v467 = vpop.f32.mrb[0].mxu0
    %v468 = vadd.f32 %v417, %v467
    %v469 = vpop.f32.mrb[0].mxu0
    %470 = vdwg.mxu0
    %v471 = vmax.f32 %v465, 0.0
    %v472 = vmax.f32 %v468, 0.0
    %v473 = vpack.c.bf16 %v472, %v471
    %474 = vst.msk [vmem:[#allocation2 + $0x18] sm:$0xff] %vm257, %v473
    %v475 = vld [vmem:[#allocation2] sm:$0xff]
    %v476 = vld [vmem:[#allocation2 + $0x8] sm:$0xff]
    %v477 = vld [vmem:[#allocation2 + $0x10] sm:$0xff]
    %v478 = vld [vmem:[#allocation2 + $0x18] sm:$0xff]
    %v479 = vld [vmem:[#allocation9] sm:$0xf]
    %v480 = vld [vmem:[#allocation9 + $0x4] sm:$0xf]
    %v481 = vld [vmem:[#allocation11] sm:$0xf]
    %v482 = vld [vmem:[#allocation11 + $0x4] sm:$0xf]
    %v485 = vunpack.c.l.b16 %v479
    %v486 = vunpack.c.l.b16 %v480
    %v487 = vpack.c.b16 %v486, %v485
    %v490 = vsel %vm257, %v475, 0
    %v493 = vsel %vm257, %v476, 0
    %v496 = vsel %vm257, %v477, 0
    %v499 = vsel %vm257, %v478, 0
    %501 = vmatprep.subr.bf16.mxu0 0
    %502 = vmatpush1.bf16.msra.mxu0 %v487
    %503 = vmatprep.subr.bf16.mxu0 0
    %504 = vmatpush1.bf16.msra.mxu0 0
    %505 = vmatprep.subr.bf16.mxu0 0
    %506 = vmatpush1.bf16.msra.mxu0 0
    %507 = vmatprep.subr.bf16.mxu0 0
    %508 = vmatpush1.bf16.msra.mxu0 0
    %509 = vmatprep.subr.bf16.mxu0 0
    %510 = vmatpush1.bf16.msra.mxu0 0
    %511 = vmatprep.subr.bf16.mxu0 0
    %512 = vmatpush1.bf16.msra.mxu0 0
    %513 = vmatprep.subr.bf16.mxu0 0
    %514 = vmatpush1.bf16.msra.mxu0 0
    %515 = vmatprep.subr.bf16.mxu0 0
    %516 = vmatpush1.bf16.msra.mxu0 0
    %517 = vmatprep.subr.bf16.mxu0 0
    %518 = vmatpush1.bf16.msra.mxu0 0
    %519 = vmatprep.subr.bf16.mxu0 0
    %520 = vmatpush1.bf16.msra.mxu0 0
    %521 = vmatprep.subr.bf16.mxu0 0
    %522 = vmatpush1.bf16.msra.mxu0 0
    %523 = vmatprep.subr.bf16.mxu0 0
    %524 = vmatpush1.bf16.msra.mxu0 0
    %525 = vmatprep.subr.bf16.mxu0 0
    %526 = vmatpush1.bf16.msra.mxu0 0
    %527 = vmatprep.subr.bf16.mxu0 0
    %528 = vmatpush1.bf16.msra.mxu0 0
    %529 = vmatprep.subr.bf16.mxu0 0
    %530 = vmatpush1.bf16.msra.mxu0 0
    %531 = vmatprep.subr.bf16.mxu0 0
    %532 = vmatpush1.bf16.msra.mxu0 0
    %533 = vmatprep.mubr.bf16.mxu0 0
    %534 = vmatmul.mubr.bf16.gmra.mrb[0].mxu0 %v490
    %v535 = vpop.f32.mrb[0].mxu0
    %v536 = vadd.f32 0.0, %v535
    %v537 = vpop.f32.mrb[0].mxu0
    %v538 = vpop.f32.mrb[0].mxu0
    %v539 = vadd.f32 0.0, %v538
    %v540 = vpop.f32.mrb[0].mxu0
    %541 = vmatprep.mubr.bf16.mxu0 0
    %542 = vmatmul.mubr.bf16.gmra.mrb[0].mxu0 %v493
    %v543 = vpop.f32.mrb[0].mxu0
    %v544 = vadd.f32 0.0, %v543
    %v545 = vpop.f32.mrb[0].mxu0
    %v546 = vpop.f32.mrb[0].mxu0
    %v547 = vadd.f32 0.0, %v546
    %v548 = vpop.f32.mrb[0].mxu0
    %549 = vmatprep.mubr.bf16.mxu0 0
    %550 = vmatmul.mubr.bf16.gmra.mrb[0].mxu0 %v496
    %v551 = vpop.f32.mrb[0].mxu0
    %v552 = vadd.f32 0.0, %v551
    %v553 = vpop.f32.mrb[0].mxu0
    %v554 = vpop.f32.mrb[0].mxu0
    %v555 = vadd.f32 0.0, %v554
    %v556 = vpop.f32.mrb[0].mxu0
    %557 = vmatprep.mubr.bf16.mxu0 0
    %558 = vmatmul.mubr.bf16.gmra.mrb[0].mxu0 %v499
    %v559 = vpop.f32.mrb[0].mxu0
    %v560 = vadd.f32 0.0, %v559
    %v561 = vpop.f32.mrb[0].mxu0
    %v562 = vpop.f32.mrb[0].mxu0
    %v563 = vadd.f32 0.0, %v562
    %v564 = vpop.f32.mrb[0].mxu0
    %565 = vdwg.mxu0
    %v568 = vunpack.c.l.b16 %v481
    %v569 = vunpack.c.l.b16 %v482
    %v570 = vpack.c.b16 %v569, %v568
    %572 = vmatprep.subr.bf16.mxu0 0
    %573 = vmatpush1.bf16.msra.mxu0 %v570
    %574 = vmatprep.subr.bf16.mxu0 0
    %575 = vmatpush1.bf16.msra.mxu0 0
    %576 = vmatprep.subr.bf16.mxu0 0
    %577 = vmatpush1.bf16.msra.mxu0 0
    %578 = vmatprep.subr.bf16.mxu0 0
    %579 = vmatpush1.bf16.msra.mxu0 0
    %580 = vmatprep.subr.bf16.mxu0 0
    %581 = vmatpush1.bf16.msra.mxu0 0
    %582 = vmatprep.subr.bf16.mxu0 0
    %583 = vmatpush1.bf16.msra.mxu0 0
    %584 = vmatprep.subr.bf16.mxu0 0
    %585 = vmatpush1.bf16.msra.mxu0 0
    %586 = vmatprep.subr.bf16.mxu0 0
    %587 = vmatpush1.bf16.msra.mxu0 0
    %588 = vmatprep.subr.bf16.mxu0 0
    %589 = vmatpush1.bf16.msra.mxu0 0
    %590 = vmatprep.subr.bf16.mxu0 0
    %591 = vmatpush1.bf16.msra.mxu0 0
    %592 = vmatprep.subr.bf16.mxu0 0
    %593 = vmatpush1.bf16.msra.mxu0 0
    %594 = vmatprep.subr.bf16.mxu0 0
    %595 = vmatpush1.bf16.msra.mxu0 0
    %596 = vmatprep.subr.bf16.mxu0 0
    %597 = vmatpush1.bf16.msra.mxu0 0
    %598 = vmatprep.subr.bf16.mxu0 0
    %599 = vmatpush1.bf16.msra.mxu0 0
    %600 = vmatprep.subr.bf16.mxu0 0
    %601 = vmatpush1.bf16.msra.mxu0 0
    %602 = vmatprep.subr.bf16.mxu0 0
    %603 = vmatpush1.bf16.msra.mxu0 0
    %604 = vmatprep.mubr.bf16.mxu0 0
    %605 = vmatmul.mubr.bf16.gmra.mrb[0].mxu0 %v490
    %v606 = vpop.f32.mrb[0].mxu0
    %v607 = vadd.f32 0.0, %v606
    %v608 = vpop.f32.mrb[0].mxu0
    %v609 = vpop.f32.mrb[0].mxu0
    %v610 = vadd.f32 0.0, %v609
    %v611 = vpop.f32.mrb[0].mxu0
    %612 = vmatprep.mubr.bf16.mxu0 0
    %613 = vmatmul.mubr.bf16.gmra.mrb[0].mxu0 %v493
    %v614 = vpop.f32.mrb[0].mxu0
    %v615 = vadd.f32 0.0, %v614
    %v616 = vpop.f32.mrb[0].mxu0
    %v617 = vpop.f32.mrb[0].mxu0
    %v618 = vadd.f32 0.0, %v617
    %v619 = vpop.f32.mrb[0].mxu0
    %620 = vmatprep.mubr.bf16.mxu0 0
    %621 = vmatmul.mubr.bf16.gmra.mrb[0].mxu0 %v496
    %v622 = vpop.f32.mrb[0].mxu0
    %v623 = vadd.f32 0.0, %v622
    %v624 = vpop.f32.mrb[0].mxu0
    %v625 = vpop.f32.mrb[0].mxu0
    %v626 = vadd.f32 0.0, %v625
    %v627 = vpop.f32.mrb[0].mxu0
    %628 = vmatprep.mubr.bf16.mxu0 0
    %629 = vmatmul.mubr.bf16.gmra.mrb[0].mxu0 %v499
    %v630 = vpop.f32.mrb[0].mxu0
    %v631 = vadd.f32 0.0, %v630
    %v632 = vpop.f32.mrb[0].mxu0
    %v633 = vpop.f32.mrb[0].mxu0
    %v634 = vadd.f32 0.0, %v633
    %v635 = vpop.f32.mrb[0].mxu0
    %636 = vdwg.mxu0
    %v637 = vld [vmem:[#allocation12] sm:$0xff]
    %v638 = vld [vmem:[#allocation12 + $0x8] sm:$0xff]
    %v639 = vld [vmem:[#allocation12 + $0x10] sm:$0xff]
    %v640 = vld [vmem:[#allocation12 + $0x18] sm:$0xff]
    %v641 = vld [vmem:[#allocation12 + $0x20] sm:$0xff]
    %v642 = vld [vmem:[#allocation12 + $0x28] sm:$0xff]
    %v643 = vld [vmem:[#allocation12 + $0x30] sm:$0xff]
    %v644 = vld [vmem:[#allocation12 + $0x38] sm:$0xff]
    %v645 = vld [vmem:[#allocation14] sm:$0xff]
    %v646 = vld [vmem:[#allocation14 + $0x8] sm:$0xff]
    %v647 = vld [vmem:[#allocation14 + $0x10] sm:$0xff]
    %v648 = vld [vmem:[#allocation14 + $0x18] sm:$0xff]
    %v649 = vld [vmem:[#allocation14 + $0x20] sm:$0xff]
    %v650 = vld [vmem:[#allocation14 + $0x28] sm:$0xff]
    %v651 = vld [vmem:[#allocation14 + $0x30] sm:$0xff]
    %v652 = vld [vmem:[#allocation14 + $0x38] sm:$0xff]
    %654 = vset.pattern.permute.xlu0 0
    %655 = vperm.xlu0 %654, %v637
    %v656 = vpop.permute.xlu0 %655
    %659 = vset.pattern.permute.xlu0 0
    %660 = vperm.xlu0 %659, %v638
    %v661 = vpop.permute.xlu0 %660
    %664 = vset.pattern.permute.xlu0 0
    %665 = vperm.xlu0 %664, %v639
    %v666 = vpop.permute.xlu0 %665
    %669 = vset.pattern.permute.xlu0 0
    %670 = vperm.xlu0 %669, %v640
    %v671 = vpop.permute.xlu0 %670
    %674 = vset.pattern.permute.xlu0 0
    %675 = vperm.xlu0 %674, %v641
    %v676 = vpop.permute.xlu0 %675
    %679 = vset.pattern.permute.xlu0 0
    %680 = vperm.xlu0 %679, %v642
    %v681 = vpop.permute.xlu0 %680
    %684 = vset.pattern.permute.xlu0 0
    %685 = vperm.xlu0 %684, %v643
    %v686 = vpop.permute.xlu0 %685
    %689 = vset.pattern.permute.xlu0 0
    %690 = vperm.xlu0 %689, %v644
    %v691 = vpop.permute.xlu0 %690
    %v693 = vmul.f32 %v536, %v656
    %v694 = vmul.f32 %v539, %v661
    %v695 = vmul.f32 %v544, %v666
    %v696 = vmul.f32 %v547, %v671
    %v697 = vmul.f32 %v552, %v676
    %v698 = vmul.f32 %v555, %v681
    %v699 = vmul.f32 %v560, %v686
    %v700 = vmul.f32 %v563, %v691
    %702 = vset.pattern.permute.xlu0 0
    %703 = vperm.xlu0 %702, %v645
    %v704 = vpop.permute.xlu0 %703
    %707 = vset.pattern.permute.xlu0 0
    %708 = vperm.xlu0 %707, %v646
    %v709 = vpop.permute.xlu0 %708
    %712 = vset.pattern.permute.xlu0 0
    %713 = vperm.xlu0 %712, %v647
    %v714 = vpop.permute.xlu0 %713
    %717 = vset.pattern.permute.xlu0 0
    %718 = vperm.xlu0 %717, %v648
    %v719 = vpop.permute.xlu0 %718
    %722 = vset.pattern.permute.xlu0 0
    %723 = vperm.xlu0 %722, %v649
    %v724 = vpop.permute.xlu0 %723
    %727 = vset.pattern.permute.xlu0 0
    %728 = vperm.xlu0 %727, %v650
    %v729 = vpop.permute.xlu0 %728
    %732 = vset.pattern.permute.xlu0 0
    %733 = vperm.xlu0 %732, %v651
    %v734 = vpop.permute.xlu0 %733
    %737 = vset.pattern.permute.xlu0 0
    %738 = vperm.xlu0 %737, %v652
    %v739 = vpop.permute.xlu0 %738
    %v741 = vmul.f32 %v607, %v704
    %v742 = vmul.f32 %v610, %v709
    %v743 = vmul.f32 %v615, %v714
    %v744 = vmul.f32 %v618, %v719
    %v745 = vmul.f32 %v623, %v724
    %v746 = vmul.f32 %v626, %v729
    %v747 = vmul.f32 %v631, %v734
    %v748 = vmul.f32 %v634, %v739
    %v749 = vsub.f32 %v693, %v741
    %v750 = vsub.f32 %v694, %v742
    %v751 = vsub.f32 %v695, %v743
    %v752 = vsub.f32 %v696, %v744
    %v753 = vsub.f32 %v697, %v745
    %v754 = vsub.f32 %v698, %v746
    %v755 = vsub.f32 %v699, %v747
    %v756 = vsub.f32 %v700, %v748
    %v757 = vld [vmem:[#allocation15] sm:$0xff]
    %v758 = vld [vmem:[#allocation15 + $0x8] sm:$0xff]
    %v759 = vld [vmem:[#allocation15 + $0x10] sm:$0xff]
    %v760 = vld [vmem:[#allocation15 + $0x18] sm:$0xff]
    %v761 = vld [vmem:[#allocation15 + $0x20] sm:$0xff]
    %v762 = vld [vmem:[#allocation15 + $0x28] sm:$0xff]
    %v763 = vld [vmem:[#allocation15 + $0x30] sm:$0xff]
    %v764 = vld [vmem:[#allocation15 + $0x38] sm:$0xff]
    %766 = vset.pattern.permute.xlu0 0
    %767 = vperm.xlu0 %766, %v757
    %v768 = vpop.permute.xlu0 %767
    %771 = vset.pattern.permute.xlu0 0
    %772 = vperm.xlu0 %771, %v758
    %v773 = vpop.permute.xlu0 %772
    %776 = vset.pattern.permute.xlu0 0
    %777 = vperm.xlu0 %776, %v759
    %v778 = vpop.permute.xlu0 %777
    %781 = vset.pattern.permute.xlu0 0
    %782 = vperm.xlu0 %781, %v760
    %v783 = vpop.permute.xlu0 %782
    %786 = vset.pattern.permute.xlu0 0
    %787 = vperm.xlu0 %786, %v761
    %v788 = vpop.permute.xlu0 %787
    %791 = vset.pattern.permute.xlu0 0
    %792 = vperm.xlu0 %791, %v762
    %v793 = vpop.permute.xlu0 %792
    %796 = vset.pattern.permute.xlu0 0
    %797 = vperm.xlu0 %796, %v763
    %v798 = vpop.permute.xlu0 %797
    %801 = vset.pattern.permute.xlu0 0
    %802 = vperm.xlu0 %801, %v764
    %v803 = vpop.permute.xlu0 %802
    %v805 = vadd.f32 %v749, %v768
    %v806 = vadd.f32 %v750, %v773
    %v807 = vadd.f32 %v751, %v778
    %v808 = vadd.f32 %v752, %v783
    %v809 = vadd.f32 %v753, %v788
    %v810 = vadd.f32 %v754, %v793
    %v811 = vadd.f32 %v755, %v798
    %v812 = vadd.f32 %v756, %v803
    %v813 = vmax.f32 %v805, 0.0
    %v814 = vmax.f32 %v806, 0.0
    %v815 = vmax.f32 %v807, 0.0
    %v816 = vmax.f32 %v808, 0.0
    %v817 = vmax.f32 %v809, 0.0
    %v818 = vmax.f32 %v810, 0.0
    %v819 = vmax.f32 %v811, 0.0
    %v820 = vmax.f32 %v812, 0.0
    %v821 = vpack.c.bf16 %v814, %v813
    %v822 = vpack.c.bf16 %v816, %v815
    %v823 = vpack.c.bf16 %v818, %v817
    %v824 = vpack.c.bf16 %v820, %v819
    %v825 = vmul.f32 %v607, %v656
    %v826 = vmul.f32 %v610, %v661
    %v827 = vmul.f32 %v615, %v666
    %v828 = vmul.f32 %v618, %v671
    %v829 = vmul.f32 %v623, %v676
    %v830 = vmul.f32 %v626, %v681
    %v831 = vmul.f32 %v631, %v686
    %v832 = vmul.f32 %v634, %v691
    %v833 = vmul.f32 %v536, %v704
    %v834 = vmul.f32 %v539, %v709
    %v835 = vmul.f32 %v544, %v714
    %v836 = vmul.f32 %v547, %v719
    %v837 = vmul.f32 %v552, %v724
    %v838 = vmul.f32 %v555, %v729
    %v839 = vmul.f32 %v560, %v734
    %v840 = vmul.f32 %v563, %v739
    %v841 = vadd.f32 %v825, %v833
    %v842 = vadd.f32 %v826, %v834
    %v843 = vadd.f32 %v827, %v835
    %v844 = vadd.f32 %v828, %v836
    %v845 = vadd.f32 %v829, %v837
    %v846 = vadd.f32 %v830, %v838
    %v847 = vadd.f32 %v831, %v839
    %v848 = vadd.f32 %v832, %v840
    %v849 = vld [vmem:[#allocation17] sm:$0xff]
    %v850 = vld [vmem:[#allocation17 + $0x8] sm:$0xff]
    %v851 = vld [vmem:[#allocation17 + $0x10] sm:$0xff]
    %v852 = vld [vmem:[#allocation17 + $0x18] sm:$0xff]
    %v853 = vld [vmem:[#allocation17 + $0x20] sm:$0xff]
    %v854 = vld [vmem:[#allocation17 + $0x28] sm:$0xff]
    %v855 = vld [vmem:[#allocation17 + $0x30] sm:$0xff]
    %v856 = vld [vmem:[#allocation17 + $0x38] sm:$0xff]
    %858 = vset.pattern.permute.xlu0 0
    %859 = vperm.xlu0 %858, %v849
    %v860 = vpop.permute.xlu0 %859
    %863 = vset.pattern.permute.xlu0 0
    %864 = vperm.xlu0 %863, %v850
    %v865 = vpop.permute.xlu0 %864
    %868 = vset.pattern.permute.xlu0 0
    %869 = vperm.xlu0 %868, %v851
    %v870 = vpop.permute.xlu0 %869
    %873 = vset.pattern.permute.xlu0 0
    %874 = vperm.xlu0 %873, %v852
    %v875 = vpop.permute.xlu0 %874
    %878 = vset.pattern.permute.xlu0 0
    %879 = vperm.xlu0 %878, %v853
    %v880 = vpop.permute.xlu0 %879
    %883 = vset.pattern.permute.xlu0 0
    %884 = vperm.xlu0 %883, %v854
    %v885 = vpop.permute.xlu0 %884
    %888 = vset.pattern.permute.xlu0 0
    %889 = vperm.xlu0 %888, %v855
    %v890 = vpop.permute.xlu0 %889
    %893 = vset.pattern.permute.xlu0 0
    %894 = vperm.xlu0 %893, %v856
    %v895 = vpop.permute.xlu0 %894
    %v897 = vadd.f32 %v841, %v860
    %v898 = vadd.f32 %v842, %v865
    %v899 = vadd.f32 %v843, %v870
    %v900 = vadd.f32 %v844, %v875
    %v901 = vadd.f32 %v845, %v880
    %v902 = vadd.f32 %v846, %v885
    %v903 = vadd.f32 %v847, %v890
    %v904 = vadd.f32 %v848, %v895
    %v905 = vmax.f32 %v897, 0.0
    %v906 = vmax.f32 %v898, 0.0
    %v907 = vmax.f32 %v899, 0.0
    %v908 = vmax.f32 %v900, 0.0
    %v909 = vmax.f32 %v901, 0.0
    %v910 = vmax.f32 %v902, 0.0
    %v911 = vmax.f32 %v903, 0.0
    %v912 = vmax.f32 %v904, 0.0
    %v913 = vpack.c.bf16 %v906, %v905
    %v914 = vpack.c.bf16 %v908, %v907
    %v915 = vpack.c.bf16 %v910, %v909
    %v916 = vpack.c.bf16 %v912, %v911
    %v918 = vsel %vm257, %v913, 0
    %v921 = vsel %vm257, %v914, 0
    %v924 = vsel %vm257, %v915, 0
    %v927 = vsel %vm257, %v916, 0
    %929 = vmatprep.subr.bf16.mxu0 0
    %930 = vmatpush1.bf16.msra.mxu0 %v570
    %931 = vmatprep.subr.bf16.mxu0 0
    %932 = vmatpush1.bf16.msra.mxu0 0
    %933 = vmatprep.subr.bf16.mxu0 0
    %934 = vmatpush1.bf16.msra.mxu0 0
    %935 = vmatprep.subr.bf16.mxu0 0
    %936 = vmatpush1.bf16.msra.mxu0 0
    %937 = vmatprep.subr.bf16.mxu0 0
    %938 = vmatpush1.bf16.msra.mxu0 0
    %939 = vmatprep.subr.bf16.mxu0 0
    %940 = vmatpush1.bf16.msra.mxu0 0
    %941 = vmatprep.subr.bf16.mxu0 0
    %942 = vmatpush1.bf16.msra.mxu0 0
    %943 = vmatprep.subr.bf16.mxu0 0
    %944 = vmatpush1.bf16.msra.mxu0 0
    %945 = vmatprep.subr.bf16.mxu0 0
    %946 = vmatpush1.bf16.msra.mxu0 0
    %947 = vmatprep.subr.bf16.mxu0 0
    %948 = vmatpush1.bf16.msra.mxu0 0
    %949 = vmatprep.subr.bf16.mxu0 0
    %950 = vmatpush1.bf16.msra.mxu0 0
    %951 = vmatprep.subr.bf16.mxu0 0
    %952 = vmatpush1.bf16.msra.mxu0 0
    %953 = vmatprep.subr.bf16.mxu0 0
    %954 = vmatpush1.bf16.msra.mxu0 0
    %955 = vmatprep.subr.bf16.mxu0 0
    %956 = vmatpush1.bf16.msra.mxu0 0
    %957 = vmatprep.subr.bf16.mxu0 0
    %958 = vmatpush1.bf16.msra.mxu0 0
    %959 = vmatprep.subr.bf16.mxu0 0
    %960 = vmatpush1.bf16.msra.mxu0 0
    %961 = vmatprep.mubr.bf16.mxu0 0
    %962 = vmatmul.mubr.bf16.gmra.mrb[0].mxu0 %v918
    %v963 = vpop.f32.mrb[0].mxu0
    %v964 = vadd.f32 0.0, %v963
    %v965 = vpop.f32.mrb[0].mxu0
    %v966 = vpop.f32.mrb[0].mxu0
    %v967 = vadd.f32 0.0, %v966
    %v968 = vpop.f32.mrb[0].mxu0
    %969 = vmatprep.mubr.bf16.mxu0 0
    %970 = vmatmul.mubr.bf16.gmra.mrb[0].mxu0 %v921
    %v971 = vpop.f32.mrb[0].mxu0
    %v972 = vadd.f32 0.0, %v971
    %v973 = vpop.f32.mrb[0].mxu0
    %v974 = vpop.f32.mrb[0].mxu0
    %v975 = vadd.f32 0.0, %v974
    %v976 = vpop.f32.mrb[0].mxu0
    %977 = vmatprep.mubr.bf16.mxu0 0
    %978 = vmatmul.mubr.bf16.gmra.mrb[0].mxu0 %v924
    %v979 = vpop.f32.mrb[0].mxu0
    %v980 = vadd.f32 0.0, %v979
    %v981 = vpop.f32.mrb[0].mxu0
    %v982 = vpop.f32.mrb[0].mxu0
    %v983 = vadd.f32 0.0, %v982
    %v984 = vpop.f32.mrb[0].mxu0
    %985 = vmatprep.mubr.bf16.mxu0 0
    %986 = vmatmul.mubr.bf16.gmra.mrb[0].mxu0 %v927
    %v987 = vpop.f32.mrb[0].mxu0
    %v988 = vadd.f32 0.0, %v987
    %v989 = vpop.f32.mrb[0].mxu0
    %v990 = vpop.f32.mrb[0].mxu0
    %v991 = vadd.f32 0.0, %v990
    %v992 = vpop.f32.mrb[0].mxu0
    %993 = vdwg.mxu0
    %v995 = vsel %vm257, %v821, 0
    %v998 = vsel %vm257, %v822, 0
    %v1001 = vsel %vm257, %v823, 0
    %v1004 = vsel %vm257, %v824, 0
    %1006 = vmatprep.subr.bf16.mxu0 0
    %1007 = vmatpush1.bf16.msra.mxu0 %v487
    %1008 = vmatprep.subr.bf16.mxu0 0
    %1009 = vmatpush1.bf16.msra.mxu0 0
    %1010 = vmatprep.subr.bf16.mxu0 0
    %1011 = vmatpush1.bf16.msra.mxu0 0
    %1012 = vmatprep.subr.bf16.mxu0 0
    %1013 = vmatpush1.bf16.msra.mxu0 0
    %1014 = vmatprep.subr.bf16.mxu0 0
    %1015 = vmatpush1.bf16.msra.mxu0 0
    %1016 = vmatprep.subr.bf16.mxu0 0
    %1017 = vmatpush1.bf16.msra.mxu0 0
    %1018 = vmatprep.subr.bf16.mxu0 0
    %1019 = vmatpush1.bf16.msra.mxu0 0
    %1020 = vmatprep.subr.bf16.mxu0 0
    %1021 = vmatpush1.bf16.msra.mxu0 0
    %1022 = vmatprep.subr.bf16.mxu0 0
    %1023 = vmatpush1.bf16.msra.mxu0 0
    %1024 = vmatprep.subr.bf16.mxu0 0
    %1025 = vmatpush1.bf16.msra.mxu0 0
    %1026 = vmatprep.subr.bf16.mxu0 0
    %1027 = vmatpush1.bf16.msra.mxu0 0
    %1028 = vmatprep.subr.bf16.mxu0 0
    %1029 = vmatpush1.bf16.msra.mxu0 0
    %1030 = vmatprep.subr.bf16.mxu0 0
    %1031 = vmatpush1.bf16.msra.mxu0 0
    %1032 = vmatprep.subr.bf16.mxu0 0
    %1033 = vmatpush1.bf16.msra.mxu0 0
    %1034 = vmatprep.subr.bf16.mxu0 0
    %1035 = vmatpush1.bf16.msra.mxu0 0
    %1036 = vmatprep.subr.bf16.mxu0 0
    %1037 = vmatpush1.bf16.msra.mxu0 0
    %1038 = vmatprep.mubr.bf16.mxu0 0
    %1039 = vmatmul.mubr.bf16.gmra.mrb[0].mxu0 %v995
    %v1040 = vpop.f32.mrb[0].mxu0
    %v1041 = vadd.f32 %v964, %v1040
    %v1042 = vpop.f32.mrb[0].mxu0
    %v1043 = vpop.f32.mrb[0].mxu0
    %v1044 = vadd.f32 %v967, %v1043
    %v1045 = vpop.f32.mrb[0].mxu0
    %1046 = vmatprep.mubr.bf16.mxu0 0
    %1047 = vmatmul.mubr.bf16.gmra.mrb[0].mxu0 %v998
    %v1048 = vpop.f32.mrb[0].mxu0
    %v1049 = vadd.f32 %v972, %v1048
    %v1050 = vpop.f32.mrb[0].mxu0
    %v1051 = vpop.f32.mrb[0].mxu0
    %v1052 = vadd.f32 %v975, %v1051
    %v1053 = vpop.f32.mrb[0].mxu0
    %1054 = vmatprep.mubr.bf16.mxu0 0
    %1055 = vmatmul.mubr.bf16.gmra.mrb[0].mxu0 %v1001
    %v1056 = vpop.f32.mrb[0].mxu0
    %v1057 = vadd.f32 %v980, %v1056
    %v1058 = vpop.f32.mrb[0].mxu0
    %v1059 = vpop.f32.mrb[0].mxu0
    %v1060 = vadd.f32 %v983, %v1059
    %v1061 = vpop.f32.mrb[0].mxu0
    %1062 = vmatprep.mubr.bf16.mxu0 0
    %1063 = vmatmul.mubr.bf16.gmra.mrb[0].mxu0 %v1004
    %v1064 = vpop.f32.mrb[0].mxu0
    %v1065 = vadd.f32 %v988, %v1064
    %v1066 = vpop.f32.mrb[0].mxu0
    %v1067 = vpop.f32.mrb[0].mxu0
    %v1068 = vadd.f32 %v991, %v1067
    %v1069 = vpop.f32.mrb[0].mxu0
    %1070 = vdwg.mxu0
    %v1071 = vpack.c.bf16 %v1044, %v1041
    %v1072 = vpack.c.bf16 %v1052, %v1049
    %v1073 = vpack.c.bf16 %v1060, %v1057
    %v1074 = vpack.c.bf16 %v1068, %v1065
    %v1075 = vld [vmem:[#allocation18] sm:$0x3]
    %v1076 = vld [vmem:[#allocation20] sm:$0xf]
    %1078 = vset.pattern.permute.xlu0 0
    %1079 = vperm.xlu0 %1078, %v1076
    %v1080 = vpop.permute.xlu0 %1079
    %v1083 = vsel %vm257, %v1075, 0
    %1085 = vmatprep.subr.bf16.mxu0 0
    %1086 = vmatpush1.bf16.msra.mxu0 %v1071
    %1087 = vmatprep.subr.bf16.mxu0 0
    %1088 = vmatpush1.bf16.msra.mxu0 0
    %1089 = vmatprep.subr.bf16.mxu0 0
    %1090 = vmatpush1.bf16.msra.mxu0 0
    %1091 = vmatprep.subr.bf16.mxu0 0
    %1092 = vmatpush1.bf16.msra.mxu0 0
    %1093 = vmatprep.subr.bf16.mxu0 0
    %1094 = vmatpush1.bf16.msra.mxu0 0
    %1095 = vmatprep.subr.bf16.mxu0 0
    %1096 = vmatpush1.bf16.msra.mxu0 0
    %1097 = vmatprep.subr.bf16.mxu0 0
    %1098 = vmatpush1.bf16.msra.mxu0 0
    %1099 = vmatprep.subr.bf16.mxu0 0
    %1100 = vmatpush1.bf16.msra.mxu0 0
    %1101 = vmatprep.subr.bf16.mxu0 0
    %1102 = vmatpush1.bf16.msra.mxu0 0
    %1103 = vmatprep.subr.bf16.mxu0 0
    %1104 = vmatpush1.bf16.msra.mxu0 0
    %1105 = vmatprep.subr.bf16.mxu0 0
    %1106 = vmatpush1.bf16.msra.mxu0 0
    %1107 = vmatprep.subr.bf16.mxu0 0
    %1108 = vmatpush1.bf16.msra.mxu0 0
    %1109 = vmatprep.subr.bf16.mxu0 0
    %1110 = vmatpush1.bf16.msra.mxu0 0
    %1111 = vmatprep.subr.bf16.mxu0 0
    %1112 = vmatpush1.bf16.msra.mxu0 0
    %1113 = vmatprep.subr.bf16.mxu0 0
    %1114 = vmatpush1.bf16.msra.mxu0 0
    %1115 = vmatprep.subr.bf16.mxu0 0
    %1116 = vmatpush1.bf16.msra.mxu0 0
    %1117 = vmatprep.mubr.bf16.mxu0 0
    %1118 = vmatmul.mubr.bf16.gmra.mrb[0].mxu0 %v1083
    %v1119 = vpop.f32.mrb[0].mxu0
    %v1120 = vadd.f32 %v1080, %v1119
    %v1121 = vpop.f32.mrb[0].mxu0
    %v1122 = vpop.f32.mrb[0].mxu0
    %v1123 = vpop.f32.mrb[0].mxu0
    %1124 = vdwg.mxu0
    %vm1125 = vcmask 125952
    %1126 = vst.msk [vmem:[#allocation21] sm:$0xf] %vm1125, %v1120
    %v1127 = vld [vmem:[#allocation18] sm:$0x3]
    %v1128 = vld [vmem:[#allocation20] sm:$0xf]
    %1130 = vset.pattern.permute.xlu0 0
    %1131 = vperm.xlu0 %1130, %v1128
    %v1132 = vpop.permute.xlu0 %1131
    %v1135 = vsel %vm257, %v1127, 0
    %1137 = vmatprep.subr.bf16.mxu0 0
    %1138 = vmatpush1.bf16.msra.mxu0 %v1072
    %1139 = vmatprep.subr.bf16.mxu0 0
    %1140 = vmatpush1.bf16.msra.mxu0 0
    %1141 = vmatprep.subr.bf16.mxu0 0
    %1142 = vmatpush1.bf16.msra.mxu0 0
    %1143 = vmatprep.subr.bf16.mxu0 0
    %1144 = vmatpush1.bf16.msra.mxu0 0
    %1145 = vmatprep.subr.bf16.mxu0 0
    %1146 = vmatpush1.bf16.msra.mxu0 0
    %1147 = vmatprep.subr.bf16.mxu0 0
    %1148 = vmatpush1.bf16.msra.mxu0 0
    %1149 = vmatprep.subr.bf16.mxu0 0
    %1150 = vmatpush1.bf16.msra.mxu0 0
    %1151 = vmatprep.subr.bf16.mxu0 0
    %1152 = vmatpush1.bf16.msra.mxu0 0
    %1153 = vmatprep.subr.bf16.mxu0 0
    %1154 = vmatpush1.bf16.msra.mxu0 0
    %1155 = vmatprep.subr.bf16.mxu0 0
    %1156 = vmatpush1.bf16.msra.mxu0 0
    %1157 = vmatprep.subr.bf16.mxu0 0
    %1158 = vmatpush1.bf16.msra.mxu0 0
    %1159 = vmatprep.subr.bf16.mxu0 0
    %1160 = vmatpush1.bf16.msra.mxu0 0
    %1161 = vmatprep.subr.bf16.mxu0 0
    %1162 = vmatpush1.bf16.msra.mxu0 0
    %1163 = vmatprep.subr.bf16.mxu0 0
    %1164 = vmatpush1.bf16.msra.mxu0 0
    %1165 = vmatprep.subr.bf16.mxu0 0
    %1166 = vmatpush1.bf16.msra.mxu0 0
    %1167 = vmatprep.subr.bf16.mxu0 0
    %1168 = vmatpush1.bf16.msra.mxu0 0
    %1169 = vmatprep.mubr.bf16.mxu0 0
    %1170 = vmatmul.mubr.bf16.gmra.mrb[0].mxu0 %v1135
    %v1171 = vpop.f32.mrb[0].mxu0
    %v1172 = vadd.f32 %v1132, %v1171
    %v1173 = vpop.f32.mrb[0].mxu0
    %v1174 = vpop.f32.mrb[0].mxu0
    %v1175 = vpop.f32.mrb[0].mxu0
    %1176 = vdwg.mxu0
    %s1177 = scalar_lea.vmem [#allocation21], 4
    %1178 = vst.msk [vmem:[%s1177] sm:$0xf] %vm1125, %v1172
    %v1179 = vld [vmem:[#allocation18] sm:$0x3]
    %v1180 = vld [vmem:[#allocation20] sm:$0xf]
    %1182 = vset.pattern.permute.xlu0 0
    %1183 = vperm.xlu0 %1182, %v1180
    %v1184 = vpop.permute.xlu0 %1183
    %v1187 = vsel %vm257, %v1179, 0
    %1189 = vmatprep.subr.bf16.mxu0 0
    %1190 = vmatpush1.bf16.msra.mxu0 %v1073
    %1191 = vmatprep.subr.bf16.mxu0 0
    %1192 = vmatpush1.bf16.msra.mxu0 0
    %1193 = vmatprep.subr.bf16.mxu0 0
    %1194 = vmatpush1.bf16.msra.mxu0 0
    %1195 = vmatprep.subr.bf16.mxu0 0
    %1196 = vmatpush1.bf16.msra.mxu0 0
    %1197 = vmatprep.subr.bf16.mxu0 0
    %1198 = vmatpush1.bf16.msra.mxu0 0
    %1199 = vmatprep.subr.bf16.mxu0 0
    %1200 = vmatpush1.bf16.msra.mxu0 0
    %1201 = vmatprep.subr.bf16.mxu0 0
    %1202 = vmatpush1.bf16.msra.mxu0 0
    %1203 = vmatprep.subr.bf16.mxu0 0
    %1204 = vmatpush1.bf16.msra.mxu0 0
    %1205 = vmatprep.subr.bf16.mxu0 0
    %1206 = vmatpush1.bf16.msra.mxu0 0
    %1207 = vmatprep.subr.bf16.mxu0 0
    %1208 = vmatpush1.bf16.msra.mxu0 0
    %1209 = vmatprep.subr.bf16.mxu0 0
    %1210 = vmatpush1.bf16.msra.mxu0 0
    %1211 = vmatprep.subr.bf16.mxu0 0
    %1212 = vmatpush1.bf16.msra.mxu0 0
    %1213 = vmatprep.subr.bf16.mxu0 0
    %1214 = vmatpush1.bf16.msra.mxu0 0
    %1215 = vmatprep.subr.bf16.mxu0 0
    %1216 = vmatpush1.bf16.msra.mxu0 0
    %1217 = vmatprep.subr.bf16.mxu0 0
    %1218 = vmatpush1.bf16.msra.mxu0 0
    %1219 = vmatprep.subr.bf16.mxu0 0
    %1220 = vmatpush1.bf16.msra.mxu0 0
    %1221 = vmatprep.mubr.bf16.mxu0 0
    %1222 = vmatmul.mubr.bf16.gmra.mrb[0].mxu0 %v1187
    %v1223 = vpop.f32.mrb[0].mxu0
    %v1224 = vadd.f32 %v1184, %v1223
    %v1225 = vpop.f32.mrb[0].mxu0
    %v1226 = vpop.f32.mrb[0].mxu0
    %v1227 = vpop.f32.mrb[0].mxu0
    %1228 = vdwg.mxu0
    %s1229 = scalar_lea.vmem [#allocation21], 8
    %1230 = vst.msk [vmem:[%s1229] sm:$0xf] %vm1125, %v1224
    %v1231 = vld [vmem:[#allocation18] sm:$0x3]
    %v1232 = vld [vmem:[#allocation20] sm:$0xf]
    %1234 = vset.pattern.permute.xlu0 0
    %1235 = vperm.xlu0 %1234, %v1232
    %v1236 = vpop.permute.xlu0 %1235
    %v1239 = vsel %vm257, %v1231, 0
    %1241 = vmatprep.subr.bf16.mxu0 0
    %1242 = vmatpush1.bf16.msra.mxu0 %v1074
    %1243 = vmatprep.subr.bf16.mxu0 0
    %1244 = vmatpush1.bf16.msra.mxu0 0
    %1245 = vmatprep.subr.bf16.mxu0 0
    %1246 = vmatpush1.bf16.msra.mxu0 0
    %1247 = vmatprep.subr.bf16.mxu0 0
    %1248 = vmatpush1.bf16.msra.mxu0 0
    %1249 = vmatprep.subr.bf16.mxu0 0
    %1250 = vmatpush1.bf16.msra.mxu0 0
    %1251 = vmatprep.subr.bf16.mxu0 0
    %1252 = vmatpush1.bf16.msra.mxu0 0
    %1253 = vmatprep.subr.bf16.mxu0 0
    %1254 = vmatpush1.bf16.msra.mxu0 0
    %1255 = vmatprep.subr.bf16.mxu0 0
    %1256 = vmatpush1.bf16.msra.mxu0 0
    %1257 = vmatprep.subr.bf16.mxu0 0
    %1258 = vmatpush1.bf16.msra.mxu0 0
    %1259 = vmatprep.subr.bf16.mxu0 0
    %1260 = vmatpush1.bf16.msra.mxu0 0
    %1261 = vmatprep.subr.bf16.mxu0 0
    %1262 = vmatpush1.bf16.msra.mxu0 0
    %1263 = vmatprep.subr.bf16.mxu0 0
    %1264 = vmatpush1.bf16.msra.mxu0 0
    %1265 = vmatprep.subr.bf16.mxu0 0
    %1266 = vmatpush1.bf16.msra.mxu0 0
    %1267 = vmatprep.subr.bf16.mxu0 0
    %1268 = vmatpush1.bf16.msra.mxu0 0
    %1269 = vmatprep.subr.bf16.mxu0 0
    %1270 = vmatpush1.bf16.msra.mxu0 0
    %1271 = vmatprep.subr.bf16.mxu0 0
    %1272 = vmatpush1.bf16.msra.mxu0 0
    %1273 = vmatprep.mubr.bf16.mxu0 0
    %1274 = vmatmul.mubr.bf16.gmra.mrb[0].mxu0 %v1239
    %v1275 = vpop.f32.mrb[0].mxu0
    %v1276 = vadd.f32 %v1236, %v1275
    %v1277 = vpop.f32.mrb[0].mxu0
    %v1278 = vpop.f32.mrb[0].mxu0
    %v1279 = vpop.f32.mrb[0].mxu0
    %1280 = vdwg.mxu0
    %s1281 = scalar_lea.vmem [#allocation21], 12
    %1282 = vst.msk [vmem:[%s1281] sm:$0xf] %vm1125, %v1276
    // Predicated region
    $region90: #{tpu_custom_call.1} parent=1 // pred_check
      _
    $region91: #{tpu_custom_call.1} parent=1 // pred_check_branch
      %1284 = sbr.rel (0) target = $region93
    $region92: #{tpu_custom_call.1} parent=1 // pred_region
      %s1286 = ssub.s32 256, 256
      %1287 = vsyncadd [#allocation5], %s1286
      %s1288 = sshll.u32 [#allocation21], 4
      %s1289 = int_to_ptr.vmem [resolvable:$true] %s1288
      %1294 = dma.vmem_to_hbm [thread:$0]  %s1289, 256, %s11, [#allocation5], 64, 64, 4
    $region93: #{tpu_custom_call.1} parent=1 // pred_fallthru
      _
    // Predicated region
    $region94: #{tpu_custom_call.1} parent=1 // pred_check
      _
    $region95: #{tpu_custom_call.1} parent=1 // pred_check_branch
      %1296 = sbr.rel (0) target = $region97
    $region96: #{tpu_custom_call.1} parent=1 // pred_region
      %1297 = dma.done [#allocation5], 256
    $region97: #{tpu_custom_call.1} parent=1 // pred_fallthru
      _
    %1298 = vsyncpa [#allocation4], 1
    %1299 = vsyncpa [#allocation7], 1
    %1300 = vsyncpa [#allocation10], 1
    %1301 = vsyncpa [#allocation13], 1
    %1302 = vsyncpa [#allocation16], 1
    %1303 = vsyncpa [#allocation19], 1
    %1304 = vsyncpa [#allocation5], 1

</llo_original>
